<compile_context>
chip_gen: v5e
topology: v5e:2x2
jax: 0.10.0
libtpu: 0.0.40
codegen_flags: <defaults>
</compile_context>

<pallas_src>
import functools

import jax
import jax.numpy as jnp
from jax.experimental import pallas as pl
from jax.experimental.pallas import tpu as pltpu

HIDDEN = 512   # MLP hidden width
K_PAD = 128    # z_dim zero-padded to a lane-aligned K for the first matmul
N_PAD = 128    # layer-3 output padded to a lane-dense 128-wide slab
TB = 256       # batch tile (multiple of 256 for v6e/v7x MXU, multiple of 128 for v5e)


def _discriminator_kernel(z_ref, w1_ref, b1_ref, w2_ref, b2_ref, w3_ref, b3_ref,
                          out_ref, *, compute_dtype):
    # One (TB, K_PAD) batch tile per grid step; all weights are resident in VMEM
    # (constant index maps), so each step is 3 MXU matmuls + VPU/EUP epilogues,
    # fully overlapped with the DMA of the next z tile / previous out tile.
    z = z_ref[...].astype(compute_dtype)

    # Layer 1: Linear(z_dim, 512) + ReLU   (bf16 operands, f32 accumulation)
    h1 = jnp.dot(z, w1_ref[...], preferred_element_type=jnp.float32) + b1_ref[...]
    h1 = jnp.maximum(h1, 0.0)

    # Layer 2: Linear(512, 512) + ReLU
    h2 = jnp.dot(h1.astype(compute_dtype), w2_ref[...],
                 preferred_element_type=jnp.float32) + b2_ref[...]
    h2 = jnp.maximum(h2, 0.0)

    # Layer 3: Linear(512, 1) + Sigmoid.  w3 is zero-padded to (512, N_PAD) so the
    # store is a lane-dense (TB, 128) slab; only column 0 carries real data.
    logits = jnp.dot(h2.astype(compute_dtype), w3_ref[...],
                     preferred_element_type=jnp.float32) + b3_ref[0, 0]

    # Sigmoid on the EUP: exp + approximate reciprocal, plus one cheap Newton step
    # to recover full f32 precision.  Clamp keeps exp() finite; sigmoid already
    # saturates to 0/1 well inside +-30.
    x = jnp.clip(logits, -30.0, 30.0)
    denom = 1.0 + jnp.exp(-x)
    inv = pl.reciprocal(denom, approx=True)
    inv = inv * (2.0 - denom * inv)          # Newton refinement (VALU, negligible)
    out_ref[...] = inv.astype(out_ref.dtype)


def discriminator_forward(z, params, *, tb=TB, compute_dtype=jnp.bfloat16):
    """z: (B, z_dim) float32.  params: dict from init_params ((in, out) layout, f32)."""
    w1, b1, w2, b2, w3, b3 = (params["w1"], params["b1"], params["w2"],
                              params["b2"], params["w3"], params["b3"])
    B, z_dim = z.shape
    assert w1.shape == (z_dim, HIDDEN) and w2.shape == (HIDDEN, HIDDEN)
    assert w3.shape == (HIDDEN, 1)

    b_pad = pl.cdiv(B, tb) * tb       # pad B to a multiple of the tile (tail handling)
    nb = b_pad // tb

    # One-time wrapper-side padding / casting (tiny arrays):
    #  - batch padded to a multiple of TB (padded rows sliced off below),
    #  - z_dim zero-padded to K_PAD (exact: padded w1 rows are zero),
    #  - w3 zero-padded to a lane-dense 128-wide output slab,
    #  - weights cast to the MXU compute dtype (bf16); biases & accumulation stay f32.
    z_p = jnp.zeros((b_pad, K_PAD), jnp.float32).at[:B, :z_dim].set(z)
    w1_p = jnp.zeros((K_PAD, HIDDEN), compute_dtype).at[:z_dim, :].set(
        w1.astype(compute_dtype))
    w2_p = w2.astype(compute_dtype)
    w3_p = jnp.zeros((HIDDEN, N_PAD), compute_dtype).at[:, :1].set(
        w3.astype(compute_dtype))
    b1_p = b1.reshape(1, HIDDEN).astype(jnp.float32)
    b2_p = b2.reshape(1, HIDDEN).astype(jnp.float32)
    b3_p = b3.reshape(1, 1).astype(jnp.float32)

    kernel = functools.partial(_discriminator_kernel, compute_dtype=compute_dtype)
    resident = lambda i: (0, 0)   # same block every step -> stays resident in VMEM

    out = pl.pallas_call(
        kernel,
        out_shape=jax.ShapeDtypeStruct((b_pad, N_PAD), jnp.float32),
        grid=(nb,),
        in_specs=[
            pl.BlockSpec((tb, K_PAD), lambda i: (i, 0)),        # z: streamed per tile
            pl.BlockSpec((K_PAD, HIDDEN), resident),            # w1 (K-padded)
            pl.BlockSpec((1, HIDDEN), resident),                # b1
            pl.BlockSpec((HIDDEN, HIDDEN), resident),           # w2
            pl.BlockSpec((1, HIDDEN), resident),                # b2
            pl.BlockSpec((HIDDEN, N_PAD), resident),            # w3 (lane-padded)
            pl.BlockSpec(memory_space=pltpu.MemorySpace.SMEM),  # b3 scalar in SMEM
        ],
        out_specs=pl.BlockSpec((tb, N_PAD), lambda i: (i, 0)),  # lane-dense out slab
        compiler_params=pltpu.CompilerParams(
            # Batch tiles are independent -> shard across both TCs on v7x.
            dimension_semantics=("parallel",),
        ),
    )(z_p, w1_p, b1_p, w2_p, b2_p, w3_p, b3_p)

    return out[:B, :1]


def init_params(key, z_dim=10):
    """Kaiming-normal (fan_in, gain=sqrt(2)) weights, zero biases — matching
    kaiming_init() applied to each nn.Linear in self.net.  Stored as (in, out)
    so the kernel computes z @ W (same math as PyTorch's x @ W.T)."""
    k1, k2, k3 = jax.random.split(key, 3)

    def kaiming(k, fan_in, fan_out):
        std = (2.0 / fan_in) ** 0.5
        return std * jax.random.normal(k, (fan_in, fan_out), dtype=jnp.float32)

    return {
        "w1": kaiming(k1, z_dim, HIDDEN),
        "b1": jnp.zeros((1, HIDDEN), jnp.float32),
        "w2": kaiming(k2, HIDDEN, HIDDEN),
        "b2": jnp.zeros((1, HIDDEN), jnp.float32),
        "w3": kaiming(k3, HIDDEN, 1),
        "b3": jnp.zeros((1, 1), jnp.float32),
    }


def reference_forward_f32(z, p):
    """Original module semantics (pure f32)."""
    h1 = jnp.maximum(z @ p["w1"] + p["b1"], 0.0)
    h2 = jnp.maximum(h1 @ p["w2"] + p["b2"], 0.0)
    return jax.nn.sigmoid(h2 @ p["w3"] + p["b3"])


def reference_forward_mixed(z, p, compute_dtype=jnp.bfloat16):
    """Mirrors the kernel's bf16-operand / f32-accumulate matmuls exactly."""
    dot = lambda a, b: jnp.dot(a.astype(compute_dtype), b.astype(compute_dtype),
                               preferred_element_type=jnp.float32)
    h1 = jnp.maximum(dot(z, p["w1"]) + p["b1"], 0.0)
    h2 = jnp.maximum(dot(h1, p["w2"]) + p["b2"], 0.0)
    return jax.nn.sigmoid(dot(h2, p["w3"]) + p["b3"])


if __name__ == "__main__":
    key = jax.random.PRNGKey(0)
    kz, kp = jax.random.split(key)

    B, Z_DIM = 300, 10   # B deliberately NOT a multiple of TB to exercise tail padding
    z = jax.random.normal(kz, (B, Z_DIM), dtype=jnp.float32)
    params = init_params(kp, z_dim=Z_DIM)

    out = jax.block_until_ready(discriminator_forward(z, params))
    assert out.shape == (B, 1)

    ref_mixed = reference_forward_mixed(z, params)   # same bf16/f32 math as the kernel
    ref_f32 = reference_forward_f32(z, params)       # original f32 module semantics
    assert jnp.allclose(out, ref_mixed, atol=5e-4, rtol=0), \
        float(jnp.max(jnp.abs(out - ref_mixed)))
    assert jnp.allclose(out, ref_f32, atol=4e-2, rtol=0), \
        float(jnp.max(jnp.abs(out - ref_f32)))

    print("KERNEL_OK")
</pallas_src>

<mosaic_0001>
module attributes {stable_mosaic.version = 11 : i64} {
  func.func @_discriminator_kernel(%arg0: i32, %arg1: memref<256x128xf32, #tpu.memory_space<vmem>>, %arg2: memref<128x512xbf16, #tpu.memory_space<vmem>>, %arg3: memref<1x512xf32, #tpu.memory_space<vmem>>, %arg4: memref<512x512xbf16, #tpu.memory_space<vmem>>, %arg5: memref<1x512xf32, #tpu.memory_space<vmem>>, %arg6: memref<512x128xbf16, #tpu.memory_space<vmem>>, %arg7: memref<1x1xf32, #tpu.memory_space<smem>>, %arg8: memref<256x128xf32, #tpu.memory_space<vmem>>) attributes {dimension_semantics = [#tpu.dimension_semantics<parallel>], iteration_bounds = array<i64: 2>, scalar_prefetch = 0 : i64, scratch_operands = 0 : i64, tpu.core_type = #tpu.core_type<tc>, window_params = [{transform_indices = @transform_0, window_bounds = array<i64: 256, 128>}, {pipeline_mode = #tpu.pipeline_mode<synchronous>, transform_indices = @transform_1, window_bounds = array<i64: 128, 512>}, {pipeline_mode = #tpu.pipeline_mode<synchronous>, transform_indices = @transform_2, window_bounds = array<i64: 1, 512>}, {pipeline_mode = #tpu.pipeline_mode<synchronous>, transform_indices = @transform_3, window_bounds = array<i64: 512, 512>}, {pipeline_mode = #tpu.pipeline_mode<synchronous>, transform_indices = @transform_4, window_bounds = array<i64: 1, 512>}, {pipeline_mode = #tpu.pipeline_mode<synchronous>, transform_indices = @transform_5, window_bounds = array<i64: 512, 128>}, {transform_indices = @transform_6, window_bounds = array<i64: 1, 1>}, {transform_indices = @transform_7, window_bounds = array<i64: 256, 128>}]} {
    %c0 = arith.constant 0 : index
    %c0_0 = arith.constant 0 : index
    %0 = vector.load %arg1[%c0, %c0_0] : memref<256x128xf32, #tpu.memory_space<vmem>>, vector<256x128xf32>
    %1 = arith.truncf %0 : vector<256x128xf32> to vector<256x128xbf16>
    %c0_1 = arith.constant 0 : index
    %c0_2 = arith.constant 0 : index
    %2 = vector.load %arg2[%c0_1, %c0_2] : memref<128x512xbf16, #tpu.memory_space<vmem>>, vector<128x512xbf16>
    %cst = arith.constant dense<0.000000e+00> : vector<256x512xf32>
    %3 = tpu.matmul %1, %2, %cst {dimension_numbers = #tpu.dot_dimension_numbers<[1], [0], [0], [1], [0, 0, 1, 1], [], []>} : vector<256x128xbf16>, vector<128x512xbf16>, vector<256x512xf32> -> vector<256x512xf32>
    %c0_3 = arith.constant 0 : index
    %c0_4 = arith.constant 0 : index
    %4 = vector.load %arg3[%c0_3, %c0_4] : memref<1x512xf32, #tpu.memory_space<vmem>>, vector<1x512xf32>
    %5 = vector.broadcast %4 : vector<1x512xf32> to vector<256x512xf32>
    %6 = arith.addf %3, %5 : vector<256x512xf32>
    %cst_5 = arith.constant 0.000000e+00 : f32
    %7 = vector.broadcast %cst_5 : f32 to vector<256x512xf32>
    %8 = arith.maximumf %6, %7 : vector<256x512xf32>
    %9 = arith.truncf %8 : vector<256x512xf32> to vector<256x512xbf16>
    %c0_6 = arith.constant 0 : index
    %c0_7 = arith.constant 0 : index
    %10 = vector.load %arg4[%c0_6, %c0_7] : memref<512x512xbf16, #tpu.memory_space<vmem>>, vector<512x512xbf16>
    %cst_8 = arith.constant dense<0.000000e+00> : vector<256x512xf32>
    %11 = tpu.matmul %9, %10, %cst_8 {dimension_numbers = #tpu.dot_dimension_numbers<[1], [0], [0], [1], [0, 0, 1, 1], [], []>} : vector<256x512xbf16>, vector<512x512xbf16>, vector<256x512xf32> -> vector<256x512xf32>
    %c0_9 = arith.constant 0 : index
    %c0_10 = arith.constant 0 : index
    %12 = vector.load %arg5[%c0_9, %c0_10] : memref<1x512xf32, #tpu.memory_space<vmem>>, vector<1x512xf32>
    %13 = vector.broadcast %12 : vector<1x512xf32> to vector<256x512xf32>
    %14 = arith.addf %11, %13 : vector<256x512xf32>
    %cst_11 = arith.constant 0.000000e+00 : f32
    %15 = vector.broadcast %cst_11 : f32 to vector<256x512xf32>
    %16 = arith.maximumf %14, %15 : vector<256x512xf32>
    %17 = arith.truncf %16 : vector<256x512xf32> to vector<256x512xbf16>
    %c0_12 = arith.constant 0 : index
    %c0_13 = arith.constant 0 : index
    %18 = vector.load %arg6[%c0_12, %c0_13] : memref<512x128xbf16, #tpu.memory_space<vmem>>, vector<512x128xbf16>
    %cst_14 = arith.constant dense<0.000000e+00> : vector<256x128xf32>
    %19 = tpu.matmul %17, %18, %cst_14 {dimension_numbers = #tpu.dot_dimension_numbers<[1], [0], [0], [1], [0, 0, 1, 1], [], []>} : vector<256x512xbf16>, vector<512x128xbf16>, vector<256x128xf32> -> vector<256x128xf32>
    %c0_15 = arith.constant 0 : index
    %c0_16 = arith.constant 0 : index
    %20 = memref.load %arg7[%c0_15, %c0_16] : memref<1x1xf32, #tpu.memory_space<smem>>
    %21 = vector.broadcast %20 : f32 to vector<256x128xf32>
    %22 = arith.addf %19, %21 : vector<256x128xf32>
    %cst_17 = arith.constant -3.000000e+01 : f32
    %cst_18 = arith.constant 3.000000e+01 : f32
    %23 = vector.broadcast %cst_17 : f32 to vector<256x128xf32>
    %24 = arith.maximumf %23, %22 : vector<256x128xf32>
    %25 = vector.broadcast %cst_18 : f32 to vector<256x128xf32>
    %26 = arith.minimumf %25, %24 : vector<256x128xf32>
    %cst_19 = arith.constant 0.000000e+00 : f32
    %27 = vector.broadcast %cst_19 : f32 to vector<256x128xf32>
    %28 = arith.subf %27, %26 : vector<256x128xf32>
    %29 = math.exp %28 : vector<256x128xf32>
    %cst_20 = arith.constant 1.000000e+00 : f32
    %30 = vector.broadcast %cst_20 : f32 to vector<256x128xf32>
    %31 = arith.addf %30, %29 : vector<256x128xf32>
    %32 = tpu.reciprocal %31 {approx = true} : vector<256x128xf32> -> vector<256x128xf32>
    %33 = arith.mulf %31, %32 : vector<256x128xf32>
    %cst_21 = arith.constant 2.000000e+00 : f32
    %34 = vector.broadcast %cst_21 : f32 to vector<256x128xf32>
    %35 = arith.subf %34, %33 : vector<256x128xf32>
    %36 = arith.mulf %32, %35 : vector<256x128xf32>
    %c0_22 = arith.constant 0 : index
    %c0_23 = arith.constant 0 : index
    %37 = vector.load %arg8[%c0_22, %c0_23] : memref<256x128xf32, #tpu.memory_space<vmem>>, vector<256x128xf32>
    tpu.vector_store %arg8[%c0_22, %c0_23], %36 {strides = array<i32>} : memref<256x128xf32, #tpu.memory_space<vmem>>, vector<256x128xf32>,
    return
  }
  func.func @transform_0(%arg0: i32) -> (i32, i32) {
    %c0_i32 = arith.constant 0 : i32
    %c0_i32_0 = arith.constant 0 : i32
    return %arg0, %c0_i32 : i32, i32
  }
  func.func @transform_1(%arg0: i32) -> (i32, i32) {
    %c0_i32 = arith.constant 0 : i32
    %c0_i32_0 = arith.constant 0 : i32
    %c0_i32_1 = arith.constant 0 : i32
    return %c0_i32, %c0_i32_0 : i32, i32
  }
  func.func @transform_2(%arg0: i32) -> (i32, i32) {
    %c0_i32 = arith.constant 0 : i32
    %c0_i32_0 = arith.constant 0 : i32
    %c0_i32_1 = arith.constant 0 : i32
    return %c0_i32, %c0_i32_0 : i32, i32
  }
  func.func @transform_3(%arg0: i32) -> (i32, i32) {
    %c0_i32 = arith.constant 0 : i32
    %c0_i32_0 = arith.constant 0 : i32
    %c0_i32_1 = arith.constant 0 : i32
    return %c0_i32, %c0_i32_0 : i32, i32
  }
  func.func @transform_4(%arg0: i32) -> (i32, i32) {
    %c0_i32 = arith.constant 0 : i32
    %c0_i32_0 = arith.constant 0 : i32
    %c0_i32_1 = arith.constant 0 : i32
    return %c0_i32, %c0_i32_0 : i32, i32
  }
  func.func @transform_5(%arg0: i32) -> (i32, i32) {
    %c0_i32 = arith.constant 0 : i32
    %c0_i32_0 = arith.constant 0 : i32
    %c0_i32_1 = arith.constant 0 : i32
    return %c0_i32, %c0_i32_0 : i32, i32
  }
  func.func @transform_6(%arg0: i32) -> (i32, i32) {
    %c0_i32 = arith.constant 0 : i32
    %c0_i32_0 = arith.constant 0 : i32
    %c0_i32_1 = arith.constant 0 : i32
    return %c0_i32, %c0_i32_0 : i32, i32
  }
  func.func @transform_7(%arg0: i32) -> (i32, i32) {
    %c0_i32 = arith.constant 0 : i32
    %c0_i32_0 = arith.constant 0 : i32
    return %arg0, %c0_i32 : i32, i32
  }
}

</mosaic_0001>

<llo_original>
// kernel: tpu_custom_call.1
$region0: #{tpu_custom_call.1}
  #allocation0 [shape = 'u32[]', space=smem, size = 0x4, offset = 0x4, fixed_abs, tag = 'smem constant byte address 0x4 - core index']
  #allocation1 [shape = 'u32[72,128]{1,0:T(1,128)}', space=vmem, size = 0x9000, scoped, tag = 'internal scratch']
  #allocation2 [shape = 'f32[1,1]{1,0:T(1,128)S(6)}', space=smem, size = 0x200, scoped, tag = 'scoped memory for tpu_custom_call.1']
  %s0 = inlined_call_operand.hbm [shape: f32[512,128], index: 0, kind: input, shape index: {}]
  %s1 = inlined_call_operand.hbm [shape: bf16[128,512], index: 1, kind: input, shape index: {}]
  %s2 = inlined_call_operand.hbm [shape: f32[1,512], index: 2, kind: input, shape index: {}]
  %s3 = inlined_call_operand.hbm [shape: bf16[512,512], index: 3, kind: input, shape index: {}]
  %s4 = inlined_call_operand.vmem [shape: f32[1,512], index: 4, kind: input, shape index: {}]
  %s5 = inlined_call_operand.hbm [shape: bf16[512,128], index: 5, kind: input, shape index: {}]
  %s6 = inlined_call_operand.<no memory space> [shape: f32[1,1], index: 6, kind: input, shape index: {}]
  %s7 = inlined_call_operand.hbm [shape: f32[512,128], index: 7, kind: output, shape index: {}]
  %s8 = sld [smem:[#allocation0]]
  $region81: #{tpu_custom_call.1} parent=0
    _
  %s10 = ssub.s32 1, %s8
  %s11 = scalar_select 0, %s10, %s8
  %12 = sst [smem:[#allocation2]] %s6
  $region1: #{tpu_custom_call.1} parent=0
    #allocation3 [shape = 'u8[262144]{0}', space=vmem, size = 0x40000, scoped, tag = 'input window, operand 0']
    #allocation4 [shape = 's32[2]{0}', space=sflag, size = 0x8, scoped, tag = 'scoped memory for tpu_custom_call.1']
    #allocation5 [shape = 's32[2]{0}', space=sflag, size = 0x8, scoped, tag = 'scoped memory for tpu_custom_call.1']
    #allocation6 [shape = 'u8[131072]{0}', space=vmem, size = 0x20000, scoped, tag = 'input window, operand 1, single buffered']
    #allocation7 [shape = 's32[1]{0}', space=sflag, size = 0x4, scoped, tag = 'scoped memory for tpu_custom_call.1']
    #allocation8 [shape = 'u8[2048]{0}', space=vmem, size = 0x800, scoped, tag = 'input window, operand 2, single buffered']
    #allocation9 [shape = 'u8[524288]{0}', space=vmem, size = 0x80000, scoped, tag = 'input window, operand 3, single buffered']
    #allocation10 [shape = 's32[1]{0}', space=sflag, size = 0x4, scoped, tag = 'scoped memory for tpu_custom_call.1']
    #allocation11 [shape = 'u8[131072]{0}', space=vmem, size = 0x20000, scoped, tag = 'input window, operand 5, single buffered']
    #allocation12 [shape = 'u8[262144]{0}', space=vmem, size = 0x40000, scoped, tag = 'output window, operand 0']
    %13 = vsyncpa [#allocation4], 0
    %s14 = scalar_lea.sflag [#allocation4], 1
    %15 = vsyncpa %s14, 0
    %16 = vsyncpa [#allocation7], 0
    %17 = vsyncpa [#allocation10], 0
    %18 = vsyncpa [#allocation5], 0
    %s19 = scalar_lea.sflag [#allocation5], 1
    %20 = vsyncpa %s19, 0
    loop: start=0, step=1, limit=4
    $region2: #{tpu_custom_call.1} parent=1 // loop_pre_header
      _
    $region3: #{tpu_custom_call.1} parent=1 // loop_header
      %s22 = sphi 0, %s26
      %p23 = scmp.ge.s32.totalorder %s22, 4
      %s32 = sphi 0, %s34
      %s35 = sphi 0, %s32
      %s36 = sphi 0, %s35
      %s52 = sphi 0, %s36
      %s56 = sphi 0, %s56
      %s58 = sphi 0, %s56
      %s59 = sphi 0, %s58
      %s73 = sphi 0, %s59
      %s77 = sphi 0, %s77
      %s79 = sphi 0, %s77
      %s80 = sphi 0, %s79
      %s94 = sphi 0, %s80
      %s98 = sphi 0, %s98
      %s100 = sphi 0, %s98
      %s101 = sphi 0, %s100
      %s115 = sphi 0, %s101
      %s119 = sphi 0, %s119
      %s121 = sphi 0, %s119
      %s122 = sphi 0, %s121
      %s136 = sphi 0, %s122
      %s140 = sphi 0, %s140
      %s142 = sphi 0, %s140
      %s143 = sphi 0, %s142
      %s157 = sphi 0, %s143
      %s161 = sphi 0, %s161
      %s163 = sphi 0, %s161
      %s164 = sphi 0, %s163
      %s178 = sphi 0, %s164
      %s184 = sphi 0, %s186
      %s187 = sphi 0, %s184
      %s188 = sphi 0, %s187
      %s204 = sphi 0, %s188
    $region4: #{tpu_custom_call.1} parent=1 // loop_header_branch
      %25 = sbr.rel (%p23) target = $region8
    $region5: #{tpu_custom_call.1} parent=1 // loop_body
      %s27 = ssub.s32 %s22, 1
      %s28 = ssub.s32 %s22, 2
      %s29 = sadd.s32 %s22, 1
      %s30 = ssub.s32 %s22, %s29
      %p31 = scmp.eq.s32.totalorder %s30, 0
      %s33 = sadd.s32 %s32, 1
      %s34 = scalar_select %p31, %s32, %s33
      %p37 = pneg %p31
      %p38 = scmp.eq.s32.totalorder %s22, 1
      %p39 = por %p37, %p38
      %p40 = scmp.ne.s32.totalorder %s32, %s35
      %p41 = scmp.eq.s32.totalorder %s22, 0
      %p42 = por %p40, %p41
      %p43 = scmp.ne.s32.totalorder %s32, %s35
      %p44 = scmp.eq.s32.totalorder %s27, 1
      %p45 = por %p43, %p44
      %p46 = scmp.ne.s32.totalorder %s35, %s36
      %p47 = scmp.eq.s32.totalorder %s27, 0
      %p48 = por %p46, %p47
      %p49 = scmp.ne.s32.totalorder %s35, %s36
      %p50 = scmp.eq.s32.totalorder %s28, 1
      %p51 = por %p49, %p50
      %p53 = scmp.ne.s32.totalorder %s36, %s52
      %p54 = scmp.eq.s32.totalorder %s28, 0
      %p55 = por %p53, %p54
      %s57 = sadd.s32 %s56, 1
      %p60 = scmp.eq.s32.totalorder %s22, 1
      %p61 = scmp.ne.s32.totalorder %s56, %s58
      %p62 = scmp.eq.s32.totalorder %s22, 0
      %p63 = por %p61, %p62
      %p64 = scmp.ne.s32.totalorder %s56, %s58
      %p65 = scmp.eq.s32.totalorder %s27, 1
      %p66 = por %p64, %p65
      %p67 = scmp.ne.s32.totalorder %s58, %s59
      %p68 = scmp.eq.s32.totalorder %s27, 0
      %p69 = por %p67, %p68
      %p70 = scmp.ne.s32.totalorder %s58, %s59
      %p71 = scmp.eq.s32.totalorder %s28, 1
      %p72 = por %p70, %p71
      %p74 = scmp.ne.s32.totalorder %s59, %s73
      %p75 = scmp.eq.s32.totalorder %s28, 0
      %p76 = por %p74, %p75
      %s78 = sadd.s32 %s77, 1
      %p81 = scmp.eq.s32.totalorder %s22, 1
      %p82 = scmp.ne.s32.totalorder %s77, %s79
      %p83 = scmp.eq.s32.totalorder %s22, 0
      %p84 = por %p82, %p83
      %p85 = scmp.ne.s32.totalorder %s77, %s79
      %p86 = scmp.eq.s32.totalorder %s27, 1
      %p87 = por %p85, %p86
      %p88 = scmp.ne.s32.totalorder %s79, %s80
      %p89 = scmp.eq.s32.totalorder %s27, 0
      %p90 = por %p88, %p89
      %p91 = scmp.ne.s32.totalorder %s79, %s80
      %p92 = scmp.eq.s32.totalorder %s28, 1
      %p93 = por %p91, %p92
      %p95 = scmp.ne.s32.totalorder %s80, %s94
      %p96 = scmp.eq.s32.totalorder %s28, 0
      %p97 = por %p95, %p96
      %s99 = sadd.s32 %s98, 1
      %p102 = scmp.eq.s32.totalorder %s22, 1
      %p103 = scmp.ne.s32.totalorder %s98, %s100
      %p104 = scmp.eq.s32.totalorder %s22, 0
      %p105 = por %p103, %p104
      %p106 = scmp.ne.s32.totalorder %s98, %s100
      %p107 = scmp.eq.s32.totalorder %s27, 1
      %p108 = por %p106, %p107
      %p109 = scmp.ne.s32.totalorder %s100, %s101
      %p110 = scmp.eq.s32.totalorder %s27, 0
      %p111 = por %p109, %p110
      %p112 = scmp.ne.s32.totalorder %s100, %s101
      %p113 = scmp.eq.s32.totalorder %s28, 1
      %p114 = por %p112, %p113
      %p116 = scmp.ne.s32.totalorder %s101, %s115
      %p117 = scmp.eq.s32.totalorder %s28, 0
      %p118 = por %p116, %p117
      %s120 = sadd.s32 %s119, 1
      %p123 = scmp.eq.s32.totalorder %s22, 1
      %p124 = scmp.ne.s32.totalorder %s119, %s121
      %p125 = scmp.eq.s32.totalorder %s22, 0
      %p126 = por %p124, %p125
      %p127 = scmp.ne.s32.totalorder %s119, %s121
      %p128 = scmp.eq.s32.totalorder %s27, 1
      %p129 = por %p127, %p128
      %p130 = scmp.ne.s32.totalorder %s121, %s122
      %p131 = scmp.eq.s32.totalorder %s27, 0
      %p132 = por %p130, %p131
      %p133 = scmp.ne.s32.totalorder %s121, %s122
      %p134 = scmp.eq.s32.totalorder %s28, 1
      %p135 = por %p133, %p134
      %p137 = scmp.ne.s32.totalorder %s122, %s136
      %p138 = scmp.eq.s32.totalorder %s28, 0
      %p139 = por %p137, %p138
      %s141 = sadd.s32 %s140, 1
      %p144 = scmp.eq.s32.totalorder %s22, 1
      %p145 = scmp.ne.s32.totalorder %s140, %s142
      %p146 = scmp.eq.s32.totalorder %s22, 0
      %p147 = por %p145, %p146
      %p148 = scmp.ne.s32.totalorder %s140, %s142
      %p149 = scmp.eq.s32.totalorder %s27, 1
      %p150 = por %p148, %p149
      %p151 = scmp.ne.s32.totalorder %s142, %s143
      %p152 = scmp.eq.s32.totalorder %s27, 0
      %p153 = por %p151, %p152
      %p154 = scmp.ne.s32.totalorder %s142, %s143
      %p155 = scmp.eq.s32.totalorder %s28, 1
      %p156 = por %p154, %p155
      %p158 = scmp.ne.s32.totalorder %s143, %s157
      %p159 = scmp.eq.s32.totalorder %s28, 0
      %p160 = por %p158, %p159
      %s162 = sadd.s32 %s161, 1
      %p165 = scmp.eq.s32.totalorder %s22, 1
      %p166 = scmp.ne.s32.totalorder %s161, %s163
      %p167 = scmp.eq.s32.totalorder %s22, 0
      %p168 = por %p166, %p167
      %p169 = scmp.ne.s32.totalorder %s161, %s163
      %p170 = scmp.eq.s32.totalorder %s27, 1
      %p171 = por %p169, %p170
      %p172 = scmp.ne.s32.totalorder %s163, %s164
      %p173 = scmp.eq.s32.totalorder %s27, 0
      %p174 = por %p172, %p173
      %p175 = scmp.ne.s32.totalorder %s163, %s164
      %p176 = scmp.eq.s32.totalorder %s28, 1
      %p177 = por %p175, %p176
      %p179 = scmp.ne.s32.totalorder %s164, %s178
      %p180 = scmp.eq.s32.totalorder %s28, 0
      %p181 = por %p179, %p180
      %s182 = ssub.s32 %s22, %s29
      %p183 = scmp.eq.s32.totalorder %s182, 0
      %s185 = sadd.s32 %s184, 1
      %s186 = scalar_select %p183, %s184, %s185
      %p189 = pneg %p183
      %p190 = scmp.eq.s32.totalorder %s22, 1
      %p191 = por %p189, %p190
      %p192 = scmp.ne.s32.totalorder %s184, %s187
      %p193 = scmp.eq.s32.totalorder %s22, 0
      %p194 = por %p192, %p193
      %p195 = scmp.ne.s32.totalorder %s184, %s187
      %p196 = scmp.eq.s32.totalorder %s27, 1
      %p197 = por %p195, %p196
      %p198 = scmp.ne.s32.totalorder %s187, %s188
      %p199 = scmp.eq.s32.totalorder %s27, 0
      %p200 = por %p198, %p199
      %p201 = scmp.ne.s32.totalorder %s187, %s188
      %p202 = scmp.eq.s32.totalorder %s28, 1
      %p203 = por %p201, %p202
      %p205 = scmp.ne.s32.totalorder %s188, %s204
      %p206 = scmp.eq.s32.totalorder %s28, 0
      %p207 = por %p205, %p206
      %p208 = scmp.le.s32.totalorder 1, %s22
      %p209 = scmp.lt.s32.totalorder %s22, 3
      %p210 = pnand %p208, %p209
      %p211 = pneg %p210
      // Predicated region
      $region9: #{tpu_custom_call.1} parent=5 // pred_check
        _
      $region10: #{tpu_custom_call.1} parent=5 // pred_check_branch
        %213 = sbr.rel (%p210) target = $region12
      $region11: #{tpu_custom_call.1} parent=5 // pred_region
        %s214 = ssub.s32 %s22, 1
        // Predicated region
        $region13: #{tpu_custom_call.1} parent=11 // pred_check
          %p215 = pneg %p69
        $region14: #{tpu_custom_call.1} parent=11 // pred_check_branch
          %217 = sbr.rel (%p215) target = $region16
        $region15: #{tpu_custom_call.1} parent=11 // pred_region
          %219 = vsyncadd [#allocation7], 0
          %s220 = sshll.u32 %s1, 4
          %s221 = int_to_ptr.hbm [resolvable:$true] %s220
          %s222 = sshll.u32 [#allocation6], 4
          %s223 = int_to_ptr.vmem [resolvable:$true] %s222
          %228 = dma.hbm_to_vmem [thread:$0]  %s221, 4096, %s223, [#allocation7], 256, 256, 16
        $region16: #{tpu_custom_call.1} parent=11 // pred_fallthru
          _
        // Predicated region
        $region17: #{tpu_custom_call.1} parent=11 // pred_check
          %p229 = pneg %p90
        $region18: #{tpu_custom_call.1} parent=11 // pred_check_branch
          %231 = sbr.rel (%p229) target = $region20
        $region19: #{tpu_custom_call.1} parent=11 // pred_region
          %233 = vsyncadd [#allocation7], 0
          %s235 = sshll.u32 %s2, 4
          %s236 = int_to_ptr.hbm [resolvable:$true] %s235
          %s237 = sshll.u32 [#allocation8], 4
          %s238 = int_to_ptr.vmem [resolvable:$true] %s237
          %240 = dma.hbm_to_vmem [thread:$0]  %s236, 64, %s238, [#allocation7]
        $region20: #{tpu_custom_call.1} parent=11 // pred_fallthru
          _
        // Predicated region
        $region21: #{tpu_custom_call.1} parent=11 // pred_check
          %p241 = pneg %p111
        $region22: #{tpu_custom_call.1} parent=11 // pred_check_branch
          %243 = sbr.rel (%p241) target = $region24
        $region23: #{tpu_custom_call.1} parent=11 // pred_region
          %245 = vsyncadd [#allocation10], 0
          %s246 = sshll.u32 %s3, 4
          %s247 = int_to_ptr.hbm [resolvable:$true] %s246
          %s248 = sshll.u32 [#allocation9], 4
          %s249 = int_to_ptr.vmem [resolvable:$true] %s248
          %254 = dma.hbm_to_vmem [thread:$0]  %s247, 16384, %s249, [#allocation10], 256, 256, 16
        $region24: #{tpu_custom_call.1} parent=11 // pred_fallthru
          _
        // Predicated region
        $region25: #{tpu_custom_call.1} parent=11 // pred_check
          %p255 = pneg %p132
        $region26: #{tpu_custom_call.1} parent=11 // pred_check_branch
          %257 = sbr.rel (%p255) target = $region28
        $region27: #{tpu_custom_call.1} parent=11 // pred_region
          _
        $region28: #{tpu_custom_call.1} parent=11 // pred_fallthru
          _
        // Predicated region
        $region29: #{tpu_custom_call.1} parent=11 // pred_check
          %p258 = pneg %p153
        $region30: #{tpu_custom_call.1} parent=11 // pred_check_branch
          %260 = sbr.rel (%p258) target = $region32
        $region31: #{tpu_custom_call.1} parent=11 // pred_region
          %262 = vsyncadd [#allocation10], 0
          %s263 = sshll.u32 %s5, 4
          %s264 = int_to_ptr.hbm [resolvable:$true] %s263
          %s265 = sshll.u32 [#allocation11], 4
          %s266 = int_to_ptr.vmem [resolvable:$true] %s265
          %271 = dma.hbm_to_vmem [thread:$0]  %s264, 4096, %s266, [#allocation10], 64, 64, 4
        $region32: #{tpu_custom_call.1} parent=11 // pred_fallthru
          _
        // Predicated region
        $region33: #{tpu_custom_call.1} parent=11 // pred_check
          %p272 = pneg %p174
        $region34: #{tpu_custom_call.1} parent=11 // pred_check_branch
          %274 = sbr.rel (%p272) target = $region36
        $region35: #{tpu_custom_call.1} parent=11 // pred_region
          _
        $region36: #{tpu_custom_call.1} parent=11 // pred_fallthru
          _
      $region12: #{tpu_custom_call.1} parent=5 // pred_fallthru
        _
      %p275 = scmp.lt.s32.totalorder %s22, 2
      // Predicated region
      $region37: #{tpu_custom_call.1} parent=5 // pred_check
        %p276 = pneg %p275
      $region38: #{tpu_custom_call.1} parent=5 // pred_check_branch
        %278 = sbr.rel (%p276) target = $region40
      $region39: #{tpu_custom_call.1} parent=5 // pred_region
        // Predicated region
        $region41: #{tpu_custom_call.1} parent=39 // pred_check
          %p279 = pneg %p42
        $region42: #{tpu_custom_call.1} parent=39 // pred_check_branch
          %281 = sbr.rel (%p279) target = $region44
        $region43: #{tpu_custom_call.1} parent=39 // pred_region
          %s282 = sand.u32 %s32, 1
          %s283 = scalar_lea.sflag [#allocation4], %s282
          %s284 = sand.u32 %s32, 1
          %s285 = smul.addr %s284, 256
          %s286 = scalar_lea.vmem [#allocation3], %s285
          %s287 = smul.u32 32, %s22
          %289 = vsyncadd %s283, 0
          %s290 = smul.addr %s287, 8
          %s291 = scalar_lea.hbm %s0, %s290
          %s292 = sshll.u32 %s291, 4
          %s293 = int_to_ptr.hbm [resolvable:$true] %s292
          %s294 = sshll.u32 %s286, 4
          %s295 = int_to_ptr.vmem [resolvable:$true] %s294
          %300 = dma.hbm_to_vmem [thread:$0]  %s293, 4096, %s295, %s283, 128, 128, 8
        $region44: #{tpu_custom_call.1} parent=39 // pred_fallthru
          _
      $region40: #{tpu_custom_call.1} parent=5 // pred_fallthru
        _
      %p301 = scmp.le.s32.totalorder 1, %s22
      %p302 = scmp.lt.s32.totalorder %s22, 3
      %p303 = pnand %p301, %p302
      %p304 = pneg %p303
      // Predicated region
      $region45: #{tpu_custom_call.1} parent=5 // pred_check
        _
      $region46: #{tpu_custom_call.1} parent=5 // pred_check_branch
        %306 = sbr.rel (%p303) target = $region48
      $region47: #{tpu_custom_call.1} parent=5 // pred_region
        %s307 = ssub.s32 %s22, 1
        %s308 = sand.u32 %s35, 1
        %s309 = scalar_lea.sflag [#allocation4], %s308
        %s310 = sand.u32 %s35, 1
        %s311 = smul.addr %s310, 256
        %s312 = scalar_lea.vmem [#allocation3], %s311
        // Predicated region
        $region49: #{tpu_custom_call.1} parent=47 // pred_check
          %p313 = pneg %p48
        $region50: #{tpu_custom_call.1} parent=47 // pred_check_branch
          %315 = sbr.rel (%p313) target = $region52
        $region51: #{tpu_custom_call.1} parent=47 // pred_region
          %317 = dma.done %s309, 4096
        $region52: #{tpu_custom_call.1} parent=47 // pred_fallthru
          _
        // Predicated region
        $region53: #{tpu_custom_call.1} parent=47 // pred_check
          %p318 = pneg %p69
        $region54: #{tpu_custom_call.1} parent=47 // pred_check_branch
          %320 = sbr.rel (%p318) target = $region56
        $region55: #{tpu_custom_call.1} parent=47 // pred_region
          %322 = dma.done [#allocation7], 4096
        $region56: #{tpu_custom_call.1} parent=47 // pred_fallthru
          _
        // Predicated region
        $region57: #{tpu_custom_call.1} parent=47 // pred_check
          %p323 = pneg %p90
        $region58: #{tpu_custom_call.1} parent=47 // pred_check_branch
          %325 = sbr.rel (%p323) target = $region60
        $region59: #{tpu_custom_call.1} parent=47 // pred_region
          %327 = dma.done [#allocation7], 64
        $region60: #{tpu_custom_call.1} parent=47 // pred_fallthru
          _
        // Predicated region
        $region61: #{tpu_custom_call.1} parent=47 // pred_check
          %p328 = pneg %p111
        $region62: #{tpu_custom_call.1} parent=47 // pred_check_branch
          %330 = sbr.rel (%p328) target = $region64
        $region63: #{tpu_custom_call.1} parent=47 // pred_region
          %332 = dma.done [#allocation10], 16384
        $region64: #{tpu_custom_call.1} parent=47 // pred_fallthru
          _
        // Predicated region
        $region65: #{tpu_custom_call.1} parent=47 // pred_check
          %p333 = pneg %p153
        $region66: #{tpu_custom_call.1} parent=47 // pred_check_branch
          %335 = sbr.rel (%p333) target = $region68
        $region67: #{tpu_custom_call.1} parent=47 // pred_region
          %337 = dma.done [#allocation10], 4096
        $region68: #{tpu_custom_call.1} parent=47 // pred_fallthru
          _
        %s338 = sand.u32 %s35, 1
        %s339 = scalar_lea.sflag [#allocation4], %s338
        %s340 = sand.u32 %s35, 1
        %s341 = smul.addr %s340, 256
        %s342 = scalar_lea.vmem [#allocation3], %s341
        %p343 = pneg %p48
        %p344 = pneg %p45
        %p345 = pneg %p69
        %p346 = pneg %p66
        %p347 = pneg %p90
        %p348 = pneg %p87
        %p349 = pneg %p111
        %p350 = pneg %p108
        %p351 = pneg %p132
        %p352 = pneg %p129
        %p353 = pneg %p153
        %p354 = pneg %p150
        %p355 = pneg %p174
        %p356 = pneg %p171
        %p357 = pneg %p200
        %p358 = pneg %p197
        %s359 = sand.u32 %s187, 1
        %s360 = scalar_lea.sflag [#allocation5], %s359
        %s361 = sand.u32 %s187, 1
        %s362 = smul.addr %s361, 256
        %s363 = scalar_lea.vmem [#allocation12], %s362
        %s364 = smul.u32 32, %s27
        %s365 = smul.u32 32, %s27
        %v366 = vld [vmem:[%s312] sm:$0xff]
        %v367 = vld [vmem:[%s312 + $0x8] sm:$0xff]
        %v368 = vld [vmem:[%s312 + $0x10] sm:$0xff]
        %v369 = vld [vmem:[%s312 + $0x18] sm:$0xff]
        %v370 = vld [vmem:[%s312 + $0x20] sm:$0xff]
        %v371 = vld [vmem:[%s312 + $0x28] sm:$0xff]
        %v372 = vld [vmem:[%s312 + $0x30] sm:$0xff]
        %v373 = vld [vmem:[%s312 + $0x38] sm:$0xff]
        %v374 = vld [vmem:[%s312 + $0x40] sm:$0xff]
        %v375 = vld [vmem:[%s312 + $0x48] sm:$0xff]
        %v376 = vld [vmem:[%s312 + $0x50] sm:$0xff]
        %v377 = vld [vmem:[%s312 + $0x58] sm:$0xff]
        %v378 = vld [vmem:[%s312 + $0x60] sm:$0xff]
        %v379 = vld [vmem:[%s312 + $0x68] sm:$0xff]
        %v380 = vld [vmem:[%s312 + $0x70] sm:$0xff]
        %v381 = vld [vmem:[%s312 + $0x78] sm:$0xff]
        %v382 = vld [vmem:[%s312 + $0x80] sm:$0xff]
        %v383 = vld [vmem:[%s312 + $0x88] sm:$0xff]
        %v384 = vld [vmem:[%s312 + $0x90] sm:$0xff]
        %v385 = vld [vmem:[%s312 + $0x98] sm:$0xff]
        %v386 = vld [vmem:[%s312 + $0xa0] sm:$0xff]
        %v387 = vld [vmem:[%s312 + $0xa8] sm:$0xff]
        %v388 = vld [vmem:[%s312 + $0xb0] sm:$0xff]
        %v389 = vld [vmem:[%s312 + $0xb8] sm:$0xff]
        %v390 = vld [vmem:[%s312 + $0xc0] sm:$0xff]
        %v391 = vld [vmem:[%s312 + $0xc8] sm:$0xff]
        %v392 = vld [vmem:[%s312 + $0xd0] sm:$0xff]
        %v393 = vld [vmem:[%s312 + $0xd8] sm:$0xff]
        %v394 = vld [vmem:[%s312 + $0xe0] sm:$0xff]
        %v395 = vld [vmem:[%s312 + $0xe8] sm:$0xff]
        %v396 = vld [vmem:[%s312 + $0xf0] sm:$0xff]
        %v397 = vld [vmem:[%s312 + $0xf8] sm:$0xff]
        %v398 = vpack.c.bf16 %v367, %v366
        %v399 = vpack.c.bf16 %v369, %v368
        %v400 = vpack.c.bf16 %v371, %v370
        %v401 = vpack.c.bf16 %v373, %v372
        %v402 = vpack.c.bf16 %v375, %v374
        %v403 = vpack.c.bf16 %v377, %v376
        %v404 = vpack.c.bf16 %v379, %v378
        %v405 = vpack.c.bf16 %v381, %v380
        %v406 = vpack.c.bf16 %v383, %v382
        %v407 = vpack.c.bf16 %v385, %v384
        %v408 = vpack.c.bf16 %v387, %v386
        %v409 = vpack.c.bf16 %v389, %v388
        %v410 = vpack.c.bf16 %v391, %v390
        %v411 = vpack.c.bf16 %v393, %v392
        %v412 = vpack.c.bf16 %v395, %v394
        %v413 = vpack.c.bf16 %v397, %v396
        %v414 = vld [vmem:[#allocation6] sm:$0xff]
        %v415 = vld [vmem:[#allocation6 + $0x8] sm:$0xff]
        %v416 = vld [vmem:[#allocation6 + $0x10] sm:$0xff]
        %v417 = vld [vmem:[#allocation6 + $0x18] sm:$0xff]
        %v418 = vld [vmem:[#allocation6 + $0x20] sm:$0xff]
        %v419 = vld [vmem:[#allocation6 + $0x28] sm:$0xff]
        %v420 = vld [vmem:[#allocation6 + $0x30] sm:$0xff]
        %v421 = vld [vmem:[#allocation6 + $0x38] sm:$0xff]
        %v422 = vld [vmem:[#allocation6 + $0x40] sm:$0xff]
        %v423 = vld [vmem:[#allocation6 + $0x48] sm:$0xff]
        %v424 = vld [vmem:[#allocation6 + $0x50] sm:$0xff]
        %v425 = vld [vmem:[#allocation6 + $0x58] sm:$0xff]
        %v426 = vld [vmem:[#allocation6 + $0x60] sm:$0xff]
        %v427 = vld [vmem:[#allocation6 + $0x68] sm:$0xff]
        %v428 = vld [vmem:[#allocation6 + $0x70] sm:$0xff]
        %v429 = vld [vmem:[#allocation6 + $0x78] sm:$0xff]
        %v430 = vld [vmem:[#allocation6 + $0x80] sm:$0xff]
        %v431 = vld [vmem:[#allocation6 + $0x88] sm:$0xff]
        %v432 = vld [vmem:[#allocation6 + $0x90] sm:$0xff]
        %v433 = vld [vmem:[#allocation6 + $0x98] sm:$0xff]
        %v434 = vld [vmem:[#allocation6 + $0xa0] sm:$0xff]
        %v435 = vld [vmem:[#allocation6 + $0xa8] sm:$0xff]
        %v436 = vld [vmem:[#allocation6 + $0xb0] sm:$0xff]
        %v437 = vld [vmem:[#allocation6 + $0xb8] sm:$0xff]
        %v438 = vld [vmem:[#allocation6 + $0xc0] sm:$0xff]
        %v439 = vld [vmem:[#allocation6 + $0xc8] sm:$0xff]
        %v440 = vld [vmem:[#allocation6 + $0xd0] sm:$0xff]
        %v441 = vld [vmem:[#allocation6 + $0xd8] sm:$0xff]
        %v442 = vld [vmem:[#allocation6 + $0xe0] sm:$0xff]
        %v443 = vld [vmem:[#allocation6 + $0xe8] sm:$0xff]
        %v444 = vld [vmem:[#allocation6 + $0xf0] sm:$0xff]
        %v445 = vld [vmem:[#allocation6 + $0xf8] sm:$0xff]
        %v446 = vld [vmem:[#allocation8] sm:$0xf]
        %v448 = vperm.slane %v446, 0
        %v449 = vperm.slane %v446, 1
        %v450 = vperm.slane %v446, 2
        %v451 = vperm.slane %v446, 3
        %v488 = vunpack.c.l.b16 %v414
        %v489 = vunpack.c.h.b16 %v414
        %v490 = vunpack.c.l.b16 %v415
        %v491 = vunpack.c.h.b16 %v415
        %v492 = vunpack.c.l.b16 %v416
        %v493 = vunpack.c.h.b16 %v416
        %v494 = vunpack.c.l.b16 %v417
        %v495 = vunpack.c.h.b16 %v417
        %v496 = vunpack.c.l.b16 %v418
        %v497 = vunpack.c.h.b16 %v418
        %v498 = vunpack.c.l.b16 %v419
        %v499 = vunpack.c.h.b16 %v419
        %v500 = vunpack.c.l.b16 %v420
        %v501 = vunpack.c.h.b16 %v420
        %v502 = vunpack.c.l.b16 %v421
        %v503 = vunpack.c.h.b16 %v421
        %v504 = vunpack.c.l.b16 %v422
        %v505 = vunpack.c.h.b16 %v422
        %v506 = vunpack.c.l.b16 %v423
        %v507 = vunpack.c.h.b16 %v423
        %v508 = vunpack.c.l.b16 %v424
        %v509 = vunpack.c.h.b16 %v424
        %v510 = vunpack.c.l.b16 %v425
        %v511 = vunpack.c.h.b16 %v425
        %v512 = vunpack.c.l.b16 %v426
        %v513 = vunpack.c.h.b16 %v426
        %v514 = vunpack.c.l.b16 %v427
        %v515 = vunpack.c.h.b16 %v427
        %v516 = vunpack.c.l.b16 %v428
        %v517 = vunpack.c.h.b16 %v428
        %v518 = vunpack.c.l.b16 %v429
        %v519 = vunpack.c.h.b16 %v429
        %v520 = vunpack.c.l.b16 %v430
        %v521 = vunpack.c.h.b16 %v430
        %v522 = vunpack.c.l.b16 %v431
        %v523 = vunpack.c.h.b16 %v431
        %v524 = vunpack.c.l.b16 %v432
        %v525 = vunpack.c.h.b16 %v432
        %v526 = vunpack.c.l.b16 %v433
        %v527 = vunpack.c.h.b16 %v433
        %v528 = vunpack.c.l.b16 %v434
        %v529 = vunpack.c.h.b16 %v434
        %v530 = vunpack.c.l.b16 %v435
        %v531 = vunpack.c.h.b16 %v435
        %v532 = vunpack.c.l.b16 %v436
        %v533 = vunpack.c.h.b16 %v436
        %v534 = vunpack.c.l.b16 %v437
        %v535 = vunpack.c.h.b16 %v437
        %v536 = vunpack.c.l.b16 %v438
        %v537 = vunpack.c.h.b16 %v438
        %v538 = vunpack.c.l.b16 %v439
        %v539 = vunpack.c.h.b16 %v439
        %v540 = vunpack.c.l.b16 %v440
        %v541 = vunpack.c.h.b16 %v440
        %v542 = vunpack.c.l.b16 %v441
        %v543 = vunpack.c.h.b16 %v441
        %v544 = vunpack.c.l.b16 %v442
        %v545 = vunpack.c.h.b16 %v442
        %v546 = vunpack.c.l.b16 %v443
        %v547 = vunpack.c.h.b16 %v443
        %v548 = vunpack.c.l.b16 %v444
        %v549 = vunpack.c.h.b16 %v444
        %v550 = vunpack.c.l.b16 %v445
        %v551 = vunpack.c.h.b16 %v445
        %v552 = vpack.c.b16 %v492, %v488
        %v553 = vpack.c.b16 %v493, %v489
        %v554 = vpack.c.b16 %v494, %v490
        %v555 = vpack.c.b16 %v495, %v491
        %v556 = vpack.c.b16 %v500, %v496
        %v557 = vpack.c.b16 %v501, %v497
        %v558 = vpack.c.b16 %v502, %v498
        %v559 = vpack.c.b16 %v503, %v499
        %v560 = vpack.c.b16 %v508, %v504
        %v561 = vpack.c.b16 %v509, %v505
        %v562 = vpack.c.b16 %v510, %v506
        %v563 = vpack.c.b16 %v511, %v507
        %v564 = vpack.c.b16 %v516, %v512
        %v565 = vpack.c.b16 %v517, %v513
        %v566 = vpack.c.b16 %v518, %v514
        %v567 = vpack.c.b16 %v519, %v515
        %v568 = vpack.c.b16 %v524, %v520
        %v569 = vpack.c.b16 %v525, %v521
        %v570 = vpack.c.b16 %v526, %v522
        %v571 = vpack.c.b16 %v527, %v523
        %v572 = vpack.c.b16 %v532, %v528
        %v573 = vpack.c.b16 %v533, %v529
        %v574 = vpack.c.b16 %v534, %v530
        %v575 = vpack.c.b16 %v535, %v531
        %v576 = vpack.c.b16 %v540, %v536
        %v577 = vpack.c.b16 %v541, %v537
        %v578 = vpack.c.b16 %v542, %v538
        %v579 = vpack.c.b16 %v543, %v539
        %v580 = vpack.c.b16 %v548, %v544
        %v581 = vpack.c.b16 %v549, %v545
        %v582 = vpack.c.b16 %v550, %v546
        %v583 = vpack.c.b16 %v551, %v547
        %616 = vmatpush.bf16.msra.mxu0 %v580
        %617 = vmatpush.bf16.msra.mxu0 %v576
        %618 = vmatpush.bf16.msra.mxu0 %v572
        %619 = vmatpush.bf16.msra.mxu0 %v568
        %620 = vmatpush.bf16.msra.mxu0 %v564
        %621 = vmatpush.bf16.msra.mxu0 %v560
        %622 = vmatpush.bf16.msra.mxu0 %v556
        %623 = vmatpush.bf16.msra.mxu0 %v552
        %624 = vmatmul.bf16.gmra.mxu0 %v398
        %v625 = vpop.f32.mrf.mxu0
        %v626 = vadd.f32 %v448, %v625
        %v627 = vpop.f32.mrf.mxu0
        %v628 = vadd.f32 %v448, %v627
        %629 = vmatmul.bf16.gmra.mxu0 %v399
        %v630 = vpop.f32.mrf.mxu0
        %v631 = vadd.f32 %v448, %v630
        %v632 = vpop.f32.mrf.mxu0
        %v633 = vadd.f32 %v448, %v632
        %634 = vmatmul.bf16.gmra.mxu0 %v400
        %v635 = vpop.f32.mrf.mxu0
        %v636 = vadd.f32 %v448, %v635
        %v637 = vpop.f32.mrf.mxu0
        %v638 = vadd.f32 %v448, %v637
        %639 = vmatmul.bf16.gmra.mxu0 %v401
        %v640 = vpop.f32.mrf.mxu0
        %v641 = vadd.f32 %v448, %v640
        %v642 = vpop.f32.mrf.mxu0
        %v643 = vadd.f32 %v448, %v642
        %644 = vmatmul.bf16.gmra.mxu0 %v402
        %v645 = vpop.f32.mrf.mxu0
        %v646 = vadd.f32 %v448, %v645
        %v647 = vpop.f32.mrf.mxu0
        %v648 = vadd.f32 %v448, %v647
        %649 = vmatmul.bf16.gmra.mxu0 %v403
        %v650 = vpop.f32.mrf.mxu0
        %v651 = vadd.f32 %v448, %v650
        %v652 = vpop.f32.mrf.mxu0
        %v653 = vadd.f32 %v448, %v652
        %654 = vmatmul.bf16.gmra.mxu0 %v404
        %v655 = vpop.f32.mrf.mxu0
        %v656 = vadd.f32 %v448, %v655
        %v657 = vpop.f32.mrf.mxu0
        %v658 = vadd.f32 %v448, %v657
        %659 = vmatmul.bf16.gmra.mxu0 %v405
        %v660 = vpop.f32.mrf.mxu0
        %v661 = vadd.f32 %v448, %v660
        %v662 = vpop.f32.mrf.mxu0
        %v663 = vadd.f32 %v448, %v662
        %664 = vmatmul.bf16.gmra.mxu0 %v406
        %v665 = vpop.f32.mrf.mxu0
        %v666 = vadd.f32 %v448, %v665
        %v667 = vpop.f32.mrf.mxu0
        %v668 = vadd.f32 %v448, %v667
        %669 = vmatmul.bf16.gmra.mxu0 %v407
        %v670 = vpop.f32.mrf.mxu0
        %v671 = vadd.f32 %v448, %v670
        %v672 = vpop.f32.mrf.mxu0
        %v673 = vadd.f32 %v448, %v672
        %674 = vmatmul.bf16.gmra.mxu0 %v408
        %v675 = vpop.f32.mrf.mxu0
        %v676 = vadd.f32 %v448, %v675
        %v677 = vpop.f32.mrf.mxu0
        %v678 = vadd.f32 %v448, %v677
        %679 = vmatmul.bf16.gmra.mxu0 %v409
        %v680 = vpop.f32.mrf.mxu0
        %v681 = vadd.f32 %v448, %v680
        %v682 = vpop.f32.mrf.mxu0
        %v683 = vadd.f32 %v448, %v682
        %684 = vmatmul.bf16.gmra.mxu0 %v410
        %v685 = vpop.f32.mrf.mxu0
        %v686 = vadd.f32 %v448, %v685
        %v687 = vpop.f32.mrf.mxu0
        %v688 = vadd.f32 %v448, %v687
        %689 = vmatmul.bf16.gmra.mxu0 %v411
        %v690 = vpop.f32.mrf.mxu0
        %v691 = vadd.f32 %v448, %v690
        %v692 = vpop.f32.mrf.mxu0
        %v693 = vadd.f32 %v448, %v692
        %694 = vmatmul.bf16.gmra.mxu0 %v412
        %v695 = vpop.f32.mrf.mxu0
        %v696 = vadd.f32 %v448, %v695
        %v697 = vpop.f32.mrf.mxu0
        %v698 = vadd.f32 %v448, %v697
        %699 = vmatmul.bf16.gmra.mxu0 %v413
        %v700 = vpop.f32.mrf.mxu0
        %v701 = vadd.f32 %v448, %v700
        %v702 = vpop.f32.mrf.mxu0
        %v703 = vadd.f32 %v448, %v702
        %704 = vdwg.mxu0
        %705 = vmatpush.bf16.msra.mxu0 %v581
        %706 = vmatpush.bf16.msra.mxu0 %v577
        %707 = vmatpush.bf16.msra.mxu0 %v573
        %708 = vmatpush.bf16.msra.mxu0 %v569
        %709 = vmatpush.bf16.msra.mxu0 %v565
        %710 = vmatpush.bf16.msra.mxu0 %v561
        %711 = vmatpush.bf16.msra.mxu0 %v557
        %712 = vmatpush.bf16.msra.mxu0 %v553
        %713 = vmatmul.bf16.gmra.mxu0 %v398
        %v714 = vpop.f32.mrf.mxu0
        %v715 = vadd.f32 %v449, %v714
        %v716 = vpop.f32.mrf.mxu0
        %v717 = vadd.f32 %v449, %v716
        %718 = vmatmul.bf16.gmra.mxu0 %v399
        %v719 = vpop.f32.mrf.mxu0
        %v720 = vadd.f32 %v449, %v719
        %v721 = vpop.f32.mrf.mxu0
        %v722 = vadd.f32 %v449, %v721
        %723 = vmatmul.bf16.gmra.mxu0 %v400
        %v724 = vpop.f32.mrf.mxu0
        %v725 = vadd.f32 %v449, %v724
        %v726 = vpop.f32.mrf.mxu0
        %v727 = vadd.f32 %v449, %v726
        %728 = vmatmul.bf16.gmra.mxu0 %v401
        %v729 = vpop.f32.mrf.mxu0
        %v730 = vadd.f32 %v449, %v729
        %v731 = vpop.f32.mrf.mxu0
        %v732 = vadd.f32 %v449, %v731
        %733 = vmatmul.bf16.gmra.mxu0 %v402
        %v734 = vpop.f32.mrf.mxu0
        %v735 = vadd.f32 %v449, %v734
        %v736 = vpop.f32.mrf.mxu0
        %v737 = vadd.f32 %v449, %v736
        %738 = vmatmul.bf16.gmra.mxu0 %v403
        %v739 = vpop.f32.mrf.mxu0
        %v740 = vadd.f32 %v449, %v739
        %v741 = vpop.f32.mrf.mxu0
        %v742 = vadd.f32 %v449, %v741
        %743 = vmatmul.bf16.gmra.mxu0 %v404
        %v744 = vpop.f32.mrf.mxu0
        %v745 = vadd.f32 %v449, %v744
        %v746 = vpop.f32.mrf.mxu0
        %v747 = vadd.f32 %v449, %v746
        %748 = vmatmul.bf16.gmra.mxu0 %v405
        %v749 = vpop.f32.mrf.mxu0
        %v750 = vadd.f32 %v449, %v749
        %v751 = vpop.f32.mrf.mxu0
        %v752 = vadd.f32 %v449, %v751
        %753 = vmatmul.bf16.gmra.mxu0 %v406
        %v754 = vpop.f32.mrf.mxu0
        %v755 = vadd.f32 %v449, %v754
        %v756 = vpop.f32.mrf.mxu0
        %v757 = vadd.f32 %v449, %v756
        %758 = vmatmul.bf16.gmra.mxu0 %v407
        %v759 = vpop.f32.mrf.mxu0
        %v760 = vadd.f32 %v449, %v759
        %v761 = vpop.f32.mrf.mxu0
        %v762 = vadd.f32 %v449, %v761
        %763 = vmatmul.bf16.gmra.mxu0 %v408
        %v764 = vpop.f32.mrf.mxu0
        %v765 = vadd.f32 %v449, %v764
        %v766 = vpop.f32.mrf.mxu0
        %v767 = vadd.f32 %v449, %v766
        %768 = vmatmul.bf16.gmra.mxu0 %v409
        %v769 = vpop.f32.mrf.mxu0
        %v770 = vadd.f32 %v449, %v769
        %v771 = vpop.f32.mrf.mxu0
        %v772 = vadd.f32 %v449, %v771
        %773 = vmatmul.bf16.gmra.mxu0 %v410
        %v774 = vpop.f32.mrf.mxu0
        %v775 = vadd.f32 %v449, %v774
        %v776 = vpop.f32.mrf.mxu0
        %v777 = vadd.f32 %v449, %v776
        %778 = vmatmul.bf16.gmra.mxu0 %v411
        %v779 = vpop.f32.mrf.mxu0
        %v780 = vadd.f32 %v449, %v779
        %v781 = vpop.f32.mrf.mxu0
        %v782 = vadd.f32 %v449, %v781
        %783 = vmatmul.bf16.gmra.mxu0 %v412
        %v784 = vpop.f32.mrf.mxu0
        %v785 = vadd.f32 %v449, %v784
        %v786 = vpop.f32.mrf.mxu0
        %v787 = vadd.f32 %v449, %v786
        %788 = vmatmul.bf16.gmra.mxu0 %v413
        %v789 = vpop.f32.mrf.mxu0
        %v790 = vadd.f32 %v449, %v789
        %v791 = vpop.f32.mrf.mxu0
        %v792 = vadd.f32 %v449, %v791
        %793 = vdwg.mxu0
        %794 = vmatpush.bf16.msra.mxu0 %v582
        %795 = vmatpush.bf16.msra.mxu0 %v578
        %796 = vmatpush.bf16.msra.mxu0 %v574
        %797 = vmatpush.bf16.msra.mxu0 %v570
        %798 = vmatpush.bf16.msra.mxu0 %v566
        %799 = vmatpush.bf16.msra.mxu0 %v562
        %800 = vmatpush.bf16.msra.mxu0 %v558
        %801 = vmatpush.bf16.msra.mxu0 %v554
        %802 = vmatmul.bf16.gmra.mxu0 %v398
        %v803 = vpop.f32.mrf.mxu0
        %v804 = vadd.f32 %v450, %v803
        %v805 = vpop.f32.mrf.mxu0
        %v806 = vadd.f32 %v450, %v805
        %807 = vmatmul.bf16.gmra.mxu0 %v399
        %v808 = vpop.f32.mrf.mxu0
        %v809 = vadd.f32 %v450, %v808
        %v810 = vpop.f32.mrf.mxu0
        %v811 = vadd.f32 %v450, %v810
        %812 = vmatmul.bf16.gmra.mxu0 %v400
        %v813 = vpop.f32.mrf.mxu0
        %v814 = vadd.f32 %v450, %v813
        %v815 = vpop.f32.mrf.mxu0
        %v816 = vadd.f32 %v450, %v815
        %817 = vmatmul.bf16.gmra.mxu0 %v401
        %v818 = vpop.f32.mrf.mxu0
        %v819 = vadd.f32 %v450, %v818
        %v820 = vpop.f32.mrf.mxu0
        %v821 = vadd.f32 %v450, %v820
        %822 = vmatmul.bf16.gmra.mxu0 %v402
        %v823 = vpop.f32.mrf.mxu0
        %v824 = vadd.f32 %v450, %v823
        %v825 = vpop.f32.mrf.mxu0
        %v826 = vadd.f32 %v450, %v825
        %827 = vmatmul.bf16.gmra.mxu0 %v403
        %v828 = vpop.f32.mrf.mxu0
        %v829 = vadd.f32 %v450, %v828
        %v830 = vpop.f32.mrf.mxu0
        %v831 = vadd.f32 %v450, %v830
        %832 = vmatmul.bf16.gmra.mxu0 %v404
        %v833 = vpop.f32.mrf.mxu0
        %v834 = vadd.f32 %v450, %v833
        %v835 = vpop.f32.mrf.mxu0
        %v836 = vadd.f32 %v450, %v835
        %837 = vmatmul.bf16.gmra.mxu0 %v405
        %v838 = vpop.f32.mrf.mxu0
        %v839 = vadd.f32 %v450, %v838
        %v840 = vpop.f32.mrf.mxu0
        %v841 = vadd.f32 %v450, %v840
        %842 = vmatmul.bf16.gmra.mxu0 %v406
        %v843 = vpop.f32.mrf.mxu0
        %v844 = vadd.f32 %v450, %v843
        %v845 = vpop.f32.mrf.mxu0
        %v846 = vadd.f32 %v450, %v845
        %847 = vmatmul.bf16.gmra.mxu0 %v407
        %v848 = vpop.f32.mrf.mxu0
        %v849 = vadd.f32 %v450, %v848
        %v850 = vpop.f32.mrf.mxu0
        %v851 = vadd.f32 %v450, %v850
        %852 = vmatmul.bf16.gmra.mxu0 %v408
        %v853 = vpop.f32.mrf.mxu0
        %v854 = vadd.f32 %v450, %v853
        %v855 = vpop.f32.mrf.mxu0
        %v856 = vadd.f32 %v450, %v855
        %857 = vmatmul.bf16.gmra.mxu0 %v409
        %v858 = vpop.f32.mrf.mxu0
        %v859 = vadd.f32 %v450, %v858
        %v860 = vpop.f32.mrf.mxu0
        %v861 = vadd.f32 %v450, %v860
        %862 = vmatmul.bf16.gmra.mxu0 %v410
        %v863 = vpop.f32.mrf.mxu0
        %v864 = vadd.f32 %v450, %v863
        %v865 = vpop.f32.mrf.mxu0
        %v866 = vadd.f32 %v450, %v865
        %867 = vmatmul.bf16.gmra.mxu0 %v411
        %v868 = vpop.f32.mrf.mxu0
        %v869 = vadd.f32 %v450, %v868
        %v870 = vpop.f32.mrf.mxu0
        %v871 = vadd.f32 %v450, %v870
        %872 = vmatmul.bf16.gmra.mxu0 %v412
        %v873 = vpop.f32.mrf.mxu0
        %v874 = vadd.f32 %v450, %v873
        %v875 = vpop.f32.mrf.mxu0
        %v876 = vadd.f32 %v450, %v875
        %877 = vmatmul.bf16.gmra.mxu0 %v413
        %v878 = vpop.f32.mrf.mxu0
        %v879 = vadd.f32 %v450, %v878
        %v880 = vpop.f32.mrf.mxu0
        %v881 = vadd.f32 %v450, %v880
        %882 = vdwg.mxu0
        %883 = vmatpush.bf16.msra.mxu0 %v583
        %884 = vmatpush.bf16.msra.mxu0 %v579
        %885 = vmatpush.bf16.msra.mxu0 %v575
        %886 = vmatpush.bf16.msra.mxu0 %v571
        %887 = vmatpush.bf16.msra.mxu0 %v567
        %888 = vmatpush.bf16.msra.mxu0 %v563
        %889 = vmatpush.bf16.msra.mxu0 %v559
        %890 = vmatpush.bf16.msra.mxu0 %v555
        %891 = vmatmul.bf16.gmra.mxu0 %v398
        %v892 = vpop.f32.mrf.mxu0
        %v893 = vadd.f32 %v451, %v892
        %v894 = vpop.f32.mrf.mxu0
        %v895 = vadd.f32 %v451, %v894
        %896 = vmatmul.bf16.gmra.mxu0 %v399
        %v897 = vpop.f32.mrf.mxu0
        %v898 = vadd.f32 %v451, %v897
        %v899 = vpop.f32.mrf.mxu0
        %v900 = vadd.f32 %v451, %v899
        %901 = vmatmul.bf16.gmra.mxu0 %v400
        %v902 = vpop.f32.mrf.mxu0
        %v903 = vadd.f32 %v451, %v902
        %v904 = vpop.f32.mrf.mxu0
        %v905 = vadd.f32 %v451, %v904
        %906 = vmatmul.bf16.gmra.mxu0 %v401
        %v907 = vpop.f32.mrf.mxu0
        %v908 = vadd.f32 %v451, %v907
        %v909 = vpop.f32.mrf.mxu0
        %v910 = vadd.f32 %v451, %v909
        %911 = vmatmul.bf16.gmra.mxu0 %v402
        %v912 = vpop.f32.mrf.mxu0
        %v913 = vadd.f32 %v451, %v912
        %v914 = vpop.f32.mrf.mxu0
        %v915 = vadd.f32 %v451, %v914
        %916 = vmatmul.bf16.gmra.mxu0 %v403
        %v917 = vpop.f32.mrf.mxu0
        %v918 = vadd.f32 %v451, %v917
        %v919 = vpop.f32.mrf.mxu0
        %v920 = vadd.f32 %v451, %v919
        %921 = vmatmul.bf16.gmra.mxu0 %v404
        %v922 = vpop.f32.mrf.mxu0
        %v923 = vadd.f32 %v451, %v922
        %v924 = vpop.f32.mrf.mxu0
        %v925 = vadd.f32 %v451, %v924
        %926 = vmatmul.bf16.gmra.mxu0 %v405
        %v927 = vpop.f32.mrf.mxu0
        %v928 = vadd.f32 %v451, %v927
        %v929 = vpop.f32.mrf.mxu0
        %v930 = vadd.f32 %v451, %v929
        %931 = vmatmul.bf16.gmra.mxu0 %v406
        %v932 = vpop.f32.mrf.mxu0
        %v933 = vadd.f32 %v451, %v932
        %v934 = vpop.f32.mrf.mxu0
        %v935 = vadd.f32 %v451, %v934
        %936 = vmatmul.bf16.gmra.mxu0 %v407
        %v937 = vpop.f32.mrf.mxu0
        %v938 = vadd.f32 %v451, %v937
        %v939 = vpop.f32.mrf.mxu0
        %v940 = vadd.f32 %v451, %v939
        %941 = vmatmul.bf16.gmra.mxu0 %v408
        %v942 = vpop.f32.mrf.mxu0
        %v943 = vadd.f32 %v451, %v942
        %v944 = vpop.f32.mrf.mxu0
        %v945 = vadd.f32 %v451, %v944
        %946 = vmatmul.bf16.gmra.mxu0 %v409
        %v947 = vpop.f32.mrf.mxu0
        %v948 = vadd.f32 %v451, %v947
        %v949 = vpop.f32.mrf.mxu0
        %v950 = vadd.f32 %v451, %v949
        %951 = vmatmul.bf16.gmra.mxu0 %v410
        %v952 = vpop.f32.mrf.mxu0
        %v953 = vadd.f32 %v451, %v952
        %v954 = vpop.f32.mrf.mxu0
        %v955 = vadd.f32 %v451, %v954
        %956 = vmatmul.bf16.gmra.mxu0 %v411
        %v957 = vpop.f32.mrf.mxu0
        %v958 = vadd.f32 %v451, %v957
        %v959 = vpop.f32.mrf.mxu0
        %v960 = vadd.f32 %v451, %v959
        %961 = vmatmul.bf16.gmra.mxu0 %v412
        %v962 = vpop.f32.mrf.mxu0
        %v963 = vadd.f32 %v451, %v962
        %v964 = vpop.f32.mrf.mxu0
        %v965 = vadd.f32 %v451, %v964
        %966 = vmatmul.bf16.gmra.mxu0 %v413
        %v967 = vpop.f32.mrf.mxu0
        %v968 = vadd.f32 %v451, %v967
        %v969 = vpop.f32.mrf.mxu0
        %v970 = vadd.f32 %v451, %v969
        %971 = vdwg.mxu0
        %v972 = vmax.f32 %v626, 0.0
        %v973 = vmax.f32 %v715, 0.0
        %v974 = vmax.f32 %v804, 0.0
        %v975 = vmax.f32 %v893, 0.0
        %v976 = vmax.f32 %v628, 0.0
        %v977 = vmax.f32 %v717, 0.0
        %v978 = vmax.f32 %v806, 0.0
        %v979 = vmax.f32 %v895, 0.0
        %v980 = vmax.f32 %v631, 0.0
        %v981 = vmax.f32 %v720, 0.0
        %v982 = vmax.f32 %v809, 0.0
        %v983 = vmax.f32 %v898, 0.0
        %v984 = vmax.f32 %v633, 0.0
        %v985 = vmax.f32 %v722, 0.0
        %v986 = vmax.f32 %v811, 0.0
        %v987 = vmax.f32 %v900, 0.0
        %v988 = vmax.f32 %v636, 0.0
        %v989 = vmax.f32 %v725, 0.0
        %v990 = vmax.f32 %v814, 0.0
        %v991 = vmax.f32 %v903, 0.0
        %v992 = vmax.f32 %v638, 0.0
        %v993 = vmax.f32 %v727, 0.0
        %v994 = vmax.f32 %v816, 0.0
        %v995 = vmax.f32 %v905, 0.0
        %v996 = vmax.f32 %v641, 0.0
        %v997 = vmax.f32 %v730, 0.0
        %v998 = vmax.f32 %v819, 0.0
        %v999 = vmax.f32 %v908, 0.0
        %v1000 = vmax.f32 %v643, 0.0
        %v1001 = vmax.f32 %v732, 0.0
        %v1002 = vmax.f32 %v821, 0.0
        %v1003 = vmax.f32 %v910, 0.0
        %v1004 = vmax.f32 %v646, 0.0
        %v1005 = vmax.f32 %v735, 0.0
        %v1006 = vmax.f32 %v824, 0.0
        %v1007 = vmax.f32 %v913, 0.0
        %v1008 = vmax.f32 %v648, 0.0
        %v1009 = vmax.f32 %v737, 0.0
        %v1010 = vmax.f32 %v826, 0.0
        %v1011 = vmax.f32 %v915, 0.0
        %v1012 = vmax.f32 %v651, 0.0
        %v1013 = vmax.f32 %v740, 0.0
        %v1014 = vmax.f32 %v829, 0.0
        %v1015 = vmax.f32 %v918, 0.0
        %v1016 = vmax.f32 %v653, 0.0
        %v1017 = vmax.f32 %v742, 0.0
        %v1018 = vmax.f32 %v831, 0.0
        %v1019 = vmax.f32 %v920, 0.0
        %v1020 = vmax.f32 %v656, 0.0
        %v1021 = vmax.f32 %v745, 0.0
        %v1022 = vmax.f32 %v834, 0.0
        %v1023 = vmax.f32 %v923, 0.0
        %v1024 = vmax.f32 %v658, 0.0
        %v1025 = vmax.f32 %v747, 0.0
        %v1026 = vmax.f32 %v836, 0.0
        %v1027 = vmax.f32 %v925, 0.0
        %v1028 = vmax.f32 %v661, 0.0
        %v1029 = vmax.f32 %v750, 0.0
        %v1030 = vmax.f32 %v839, 0.0
        %v1031 = vmax.f32 %v928, 0.0
        %v1032 = vmax.f32 %v663, 0.0
        %v1033 = vmax.f32 %v752, 0.0
        %v1034 = vmax.f32 %v841, 0.0
        %v1035 = vmax.f32 %v930, 0.0
        %v1036 = vmax.f32 %v666, 0.0
        %v1037 = vmax.f32 %v755, 0.0
        %v1038 = vmax.f32 %v844, 0.0
        %v1039 = vmax.f32 %v933, 0.0
        %v1040 = vmax.f32 %v668, 0.0
        %v1041 = vmax.f32 %v757, 0.0
        %v1042 = vmax.f32 %v846, 0.0
        %v1043 = vmax.f32 %v935, 0.0
        %v1044 = vmax.f32 %v671, 0.0
        %v1045 = vmax.f32 %v760, 0.0
        %v1046 = vmax.f32 %v849, 0.0
        %v1047 = vmax.f32 %v938, 0.0
        %v1048 = vmax.f32 %v673, 0.0
        %v1049 = vmax.f32 %v762, 0.0
        %v1050 = vmax.f32 %v851, 0.0
        %v1051 = vmax.f32 %v940, 0.0
        %v1052 = vmax.f32 %v676, 0.0
        %v1053 = vmax.f32 %v765, 0.0
        %v1054 = vmax.f32 %v854, 0.0
        %v1055 = vmax.f32 %v943, 0.0
        %v1056 = vmax.f32 %v678, 0.0
        %v1057 = vmax.f32 %v767, 0.0
        %v1058 = vmax.f32 %v856, 0.0
        %v1059 = vmax.f32 %v945, 0.0
        %v1060 = vmax.f32 %v681, 0.0
        %v1061 = vmax.f32 %v770, 0.0
        %v1062 = vmax.f32 %v859, 0.0
        %v1063 = vmax.f32 %v948, 0.0
        %v1064 = vmax.f32 %v683, 0.0
        %v1065 = vmax.f32 %v772, 0.0
        %v1066 = vmax.f32 %v861, 0.0
        %v1067 = vmax.f32 %v950, 0.0
        %v1068 = vmax.f32 %v686, 0.0
        %v1069 = vmax.f32 %v775, 0.0
        %v1070 = vmax.f32 %v864, 0.0
        %v1071 = vmax.f32 %v953, 0.0
        %v1072 = vmax.f32 %v688, 0.0
        %v1073 = vmax.f32 %v777, 0.0
        %v1074 = vmax.f32 %v866, 0.0
        %v1075 = vmax.f32 %v955, 0.0
        %v1076 = vmax.f32 %v691, 0.0
        %v1077 = vmax.f32 %v780, 0.0
        %v1078 = vmax.f32 %v869, 0.0
        %v1079 = vmax.f32 %v958, 0.0
        %v1080 = vmax.f32 %v693, 0.0
        %v1081 = vmax.f32 %v782, 0.0
        %v1082 = vmax.f32 %v871, 0.0
        %v1083 = vmax.f32 %v960, 0.0
        %v1084 = vmax.f32 %v696, 0.0
        %v1085 = vmax.f32 %v785, 0.0
        %v1086 = vmax.f32 %v874, 0.0
        %v1087 = vmax.f32 %v963, 0.0
        %v1088 = vmax.f32 %v698, 0.0
        %v1089 = vmax.f32 %v787, 0.0
        %v1090 = vmax.f32 %v876, 0.0
        %v1091 = vmax.f32 %v965, 0.0
        %v1092 = vmax.f32 %v701, 0.0
        %v1093 = vmax.f32 %v790, 0.0
        %v1094 = vmax.f32 %v879, 0.0
        %v1095 = vmax.f32 %v968, 0.0
        %v1096 = vmax.f32 %v703, 0.0
        %v1097 = vmax.f32 %v792, 0.0
        %v1098 = vmax.f32 %v881, 0.0
        %v1099 = vmax.f32 %v970, 0.0
        %v1100 = vpack.c.bf16 %v976, %v972
        %v1101 = vpack.c.bf16 %v977, %v973
        %v1102 = vpack.c.bf16 %v978, %v974
        %v1103 = vpack.c.bf16 %v979, %v975
        %v1104 = vpack.c.bf16 %v984, %v980
        %v1105 = vpack.c.bf16 %v985, %v981
        %v1106 = vpack.c.bf16 %v986, %v982
        %v1107 = vpack.c.bf16 %v987, %v983
        %v1108 = vpack.c.bf16 %v992, %v988
        %v1109 = vpack.c.bf16 %v993, %v989
        %v1110 = vpack.c.bf16 %v994, %v990
        %v1111 = vpack.c.bf16 %v995, %v991
        %v1112 = vpack.c.bf16 %v1000, %v996
        %v1113 = vpack.c.bf16 %v1001, %v997
        %v1114 = vpack.c.bf16 %v1002, %v998
        %v1115 = vpack.c.bf16 %v1003, %v999
        %v1116 = vpack.c.bf16 %v1008, %v1004
        %v1117 = vpack.c.bf16 %v1009, %v1005
        %v1118 = vpack.c.bf16 %v1010, %v1006
        %v1119 = vpack.c.bf16 %v1011, %v1007
        %v1120 = vpack.c.bf16 %v1016, %v1012
        %v1121 = vpack.c.bf16 %v1017, %v1013
        %v1122 = vpack.c.bf16 %v1018, %v1014
        %v1123 = vpack.c.bf16 %v1019, %v1015
        %v1124 = vpack.c.bf16 %v1024, %v1020
        %v1125 = vpack.c.bf16 %v1025, %v1021
        %v1126 = vpack.c.bf16 %v1026, %v1022
        %v1127 = vpack.c.bf16 %v1027, %v1023
        %v1128 = vpack.c.bf16 %v1032, %v1028
        %v1129 = vpack.c.bf16 %v1033, %v1029
        %v1130 = vpack.c.bf16 %v1034, %v1030
        %v1131 = vpack.c.bf16 %v1035, %v1031
        %v1132 = vpack.c.bf16 %v1040, %v1036
        %v1133 = vpack.c.bf16 %v1041, %v1037
        %v1134 = vpack.c.bf16 %v1042, %v1038
        %v1135 = vpack.c.bf16 %v1043, %v1039
        %v1136 = vpack.c.bf16 %v1048, %v1044
        %v1137 = vpack.c.bf16 %v1049, %v1045
        %v1138 = vpack.c.bf16 %v1050, %v1046
        %v1139 = vpack.c.bf16 %v1051, %v1047
        %v1140 = vpack.c.bf16 %v1056, %v1052
        %v1141 = vpack.c.bf16 %v1057, %v1053
        %v1142 = vpack.c.bf16 %v1058, %v1054
        %v1143 = vpack.c.bf16 %v1059, %v1055
        %v1144 = vpack.c.bf16 %v1064, %v1060
        %v1145 = vpack.c.bf16 %v1065, %v1061
        %v1146 = vpack.c.bf16 %v1066, %v1062
        %v1147 = vpack.c.bf16 %v1067, %v1063
        %v1148 = vpack.c.bf16 %v1072, %v1068
        %v1149 = vpack.c.bf16 %v1073, %v1069
        %v1150 = vpack.c.bf16 %v1074, %v1070
        %v1151 = vpack.c.bf16 %v1075, %v1071
        %v1152 = vpack.c.bf16 %v1080, %v1076
        %v1153 = vpack.c.bf16 %v1081, %v1077
        %v1154 = vpack.c.bf16 %v1082, %v1078
        %v1155 = vpack.c.bf16 %v1083, %v1079
        %v1156 = vpack.c.bf16 %v1088, %v1084
        %v1157 = vpack.c.bf16 %v1089, %v1085
        %v1158 = vpack.c.bf16 %v1090, %v1086
        %v1159 = vpack.c.bf16 %v1091, %v1087
        %v1160 = vpack.c.bf16 %v1096, %v1092
        %v1161 = vpack.c.bf16 %v1097, %v1093
        %v1162 = vpack.c.bf16 %v1098, %v1094
        %v1163 = vpack.c.bf16 %v1099, %v1095
        %v1164 = vld [vmem:[#allocation9] sm:$0xff]
        %v1165 = vld [vmem:[#allocation9 + $0x8] sm:$0xff]
        %v1166 = vld [vmem:[#allocation9 + $0x10] sm:$0xff]
        %v1167 = vld [vmem:[#allocation9 + $0x18] sm:$0xff]
        %v1168 = vld [vmem:[#allocation9 + $0x20] sm:$0xff]
        %v1169 = vld [vmem:[#allocation9 + $0x28] sm:$0xff]
        %v1170 = vld [vmem:[#allocation9 + $0x30] sm:$0xff]
        %v1171 = vld [vmem:[#allocation9 + $0x38] sm:$0xff]
        %v1172 = vld [vmem:[#allocation9 + $0x40] sm:$0xff]
        %v1173 = vld [vmem:[#allocation9 + $0x48] sm:$0xff]
        %v1174 = vld [vmem:[#allocation9 + $0x50] sm:$0xff]
        %v1175 = vld [vmem:[#allocation9 + $0x58] sm:$0xff]
        %v1176 = vld [vmem:[#allocation9 + $0x60] sm:$0xff]
        %v1177 = vld [vmem:[#allocation9 + $0x68] sm:$0xff]
        %v1178 = vld [vmem:[#allocation9 + $0x70] sm:$0xff]
        %v1179 = vld [vmem:[#allocation9 + $0x78] sm:$0xff]
        %v1180 = vld [vmem:[#allocation9 + $0x80] sm:$0xff]
        %v1181 = vld [vmem:[#allocation9 + $0x88] sm:$0xff]
        %v1182 = vld [vmem:[#allocation9 + $0x90] sm:$0xff]
        %v1183 = vld [vmem:[#allocation9 + $0x98] sm:$0xff]
        %v1184 = vld [vmem:[#allocation9 + $0xa0] sm:$0xff]
        %v1185 = vld [vmem:[#allocation9 + $0xa8] sm:$0xff]
        %v1186 = vld [vmem:[#allocation9 + $0xb0] sm:$0xff]
        %v1187 = vld [vmem:[#allocation9 + $0xb8] sm:$0xff]
        %v1188 = vld [vmem:[#allocation9 + $0xc0] sm:$0xff]
        %v1189 = vld [vmem:[#allocation9 + $0xc8] sm:$0xff]
        %v1190 = vld [vmem:[#allocation9 + $0xd0] sm:$0xff]
        %v1191 = vld [vmem:[#allocation9 + $0xd8] sm:$0xff]
        %v1192 = vld [vmem:[#allocation9 + $0xe0] sm:$0xff]
        %v1193 = vld [vmem:[#allocation9 + $0xe8] sm:$0xff]
        %v1194 = vld [vmem:[#allocation9 + $0xf0] sm:$0xff]
        %v1195 = vld [vmem:[#allocation9 + $0xf8] sm:$0xff]
        %v1196 = vld [vmem:[#allocation9 + $0x100] sm:$0xff]
        %v1197 = vld [vmem:[#allocation9 + $0x108] sm:$0xff]
        %v1198 = vld [vmem:[#allocation9 + $0x110] sm:$0xff]
        %v1199 = vld [vmem:[#allocation9 + $0x118] sm:$0xff]
        %v1200 = vld [vmem:[#allocation9 + $0x120] sm:$0xff]
        %v1201 = vld [vmem:[#allocation9 + $0x128] sm:$0xff]
        %v1202 = vld [vmem:[#allocation9 + $0x130] sm:$0xff]
        %v1203 = vld [vmem:[#allocation9 + $0x138] sm:$0xff]
        %v1204 = vld [vmem:[#allocation9 + $0x140] sm:$0xff]
        %v1205 = vld [vmem:[#allocation9 + $0x148] sm:$0xff]
        %v1206 = vld [vmem:[#allocation9 + $0x150] sm:$0xff]
        %v1207 = vld [vmem:[#allocation9 + $0x158] sm:$0xff]
        %v1208 = vld [vmem:[#allocation9 + $0x160] sm:$0xff]
        %v1209 = vld [vmem:[#allocation9 + $0x168] sm:$0xff]
        %v1210 = vld [vmem:[#allocation9 + $0x170] sm:$0xff]
        %v1211 = vld [vmem:[#allocation9 + $0x178] sm:$0xff]
        %v1212 = vld [vmem:[#allocation9 + $0x180] sm:$0xff]
        %v1213 = vld [vmem:[#allocation9 + $0x188] sm:$0xff]
        %v1214 = vld [vmem:[#allocation9 + $0x190] sm:$0xff]
        %v1215 = vld [vmem:[#allocation9 + $0x198] sm:$0xff]
        %v1216 = vld [vmem:[#allocation9 + $0x1a0] sm:$0xff]
        %v1217 = vld [vmem:[#allocation9 + $0x1a8] sm:$0xff]
        %v1218 = vld [vmem:[#allocation9 + $0x1b0] sm:$0xff]
        %v1219 = vld [vmem:[#allocation9 + $0x1b8] sm:$0xff]
        %v1220 = vld [vmem:[#allocation9 + $0x1c0] sm:$0xff]
        %v1221 = vld [vmem:[#allocation9 + $0x1c8] sm:$0xff]
        %v1222 = vld [vmem:[#allocation9 + $0x1d0] sm:$0xff]
        %v1223 = vld [vmem:[#allocation9 + $0x1d8] sm:$0xff]
        %v1224 = vld [vmem:[#allocation9 + $0x1e0] sm:$0xff]
        %v1225 = vld [vmem:[#allocation9 + $0x1e8] sm:$0xff]
        %v1226 = vld [vmem:[#allocation9 + $0x1f0] sm:$0xff]
        %v1227 = vld [vmem:[#allocation9 + $0x1f8] sm:$0xff]
        %v1228 = vld [vmem:[#allocation9 + $0x200] sm:$0xff]
        %v1229 = vld [vmem:[#allocation9 + $0x208] sm:$0xff]
        %v1230 = vld [vmem:[#allocation9 + $0x210] sm:$0xff]
        %v1231 = vld [vmem:[#allocation9 + $0x218] sm:$0xff]
        %v1232 = vld [vmem:[#allocation9 + $0x220] sm:$0xff]
        %v1233 = vld [vmem:[#allocation9 + $0x228] sm:$0xff]
        %v1234 = vld [vmem:[#allocation9 + $0x230] sm:$0xff]
        %v1235 = vld [vmem:[#allocation9 + $0x238] sm:$0xff]
        %v1236 = vld [vmem:[#allocation9 + $0x240] sm:$0xff]
        %v1237 = vld [vmem:[#allocation9 + $0x248] sm:$0xff]
        %v1238 = vld [vmem:[#allocation9 + $0x250] sm:$0xff]
        %v1239 = vld [vmem:[#allocation9 + $0x258] sm:$0xff]
        %v1240 = vld [vmem:[#allocation9 + $0x260] sm:$0xff]
        %v1241 = vld [vmem:[#allocation9 + $0x268] sm:$0xff]
        %v1242 = vld [vmem:[#allocation9 + $0x270] sm:$0xff]
        %v1243 = vld [vmem:[#allocation9 + $0x278] sm:$0xff]
        %v1244 = vld [vmem:[#allocation9 + $0x280] sm:$0xff]
        %v1245 = vld [vmem:[#allocation9 + $0x288] sm:$0xff]
        %v1246 = vld [vmem:[#allocation9 + $0x290] sm:$0xff]
        %v1247 = vld [vmem:[#allocation9 + $0x298] sm:$0xff]
        %v1248 = vld [vmem:[#allocation9 + $0x2a0] sm:$0xff]
        %v1249 = vld [vmem:[#allocation9 + $0x2a8] sm:$0xff]
        %v1250 = vld [vmem:[#allocation9 + $0x2b0] sm:$0xff]
        %v1251 = vld [vmem:[#allocation9 + $0x2b8] sm:$0xff]
        %v1252 = vld [vmem:[#allocation9 + $0x2c0] sm:$0xff]
        %v1253 = vld [vmem:[#allocation9 + $0x2c8] sm:$0xff]
        %v1254 = vld [vmem:[#allocation9 + $0x2d0] sm:$0xff]
        %v1255 = vld [vmem:[#allocation9 + $0x2d8] sm:$0xff]
        %v1256 = vld [vmem:[#allocation9 + $0x2e0] sm:$0xff]
        %v1257 = vld [vmem:[#allocation9 + $0x2e8] sm:$0xff]
        %v1258 = vld [vmem:[#allocation9 + $0x2f0] sm:$0xff]
        %v1259 = vld [vmem:[#allocation9 + $0x2f8] sm:$0xff]
        %v1260 = vld [vmem:[#allocation9 + $0x300] sm:$0xff]
        %v1261 = vld [vmem:[#allocation9 + $0x308] sm:$0xff]
        %v1262 = vld [vmem:[#allocation9 + $0x310] sm:$0xff]
        %v1263 = vld [vmem:[#allocation9 + $0x318] sm:$0xff]
        %v1264 = vld [vmem:[#allocation9 + $0x320] sm:$0xff]
        %v1265 = vld [vmem:[#allocation9 + $0x328] sm:$0xff]
        %v1266 = vld [vmem:[#allocation9 + $0x330] sm:$0xff]
        %v1267 = vld [vmem:[#allocation9 + $0x338] sm:$0xff]
        %v1268 = vld [vmem:[#allocation9 + $0x340] sm:$0xff]
        %v1269 = vld [vmem:[#allocation9 + $0x348] sm:$0xff]
        %v1270 = vld [vmem:[#allocation9 + $0x350] sm:$0xff]
        %v1271 = vld [vmem:[#allocation9 + $0x358] sm:$0xff]
        %v1272 = vld [vmem:[#allocation9 + $0x360] sm:$0xff]
        %v1273 = vld [vmem:[#allocation9 + $0x368] sm:$0xff]
        %v1274 = vld [vmem:[#allocation9 + $0x370] sm:$0xff]
        %v1275 = vld [vmem:[#allocation9 + $0x378] sm:$0xff]
        %v1276 = vld [vmem:[#allocation9 + $0x380] sm:$0xff]
        %v1277 = vld [vmem:[#allocation9 + $0x388] sm:$0xff]
        %v1278 = vld [vmem:[#allocation9 + $0x390] sm:$0xff]
        %v1279 = vld [vmem:[#allocation9 + $0x398] sm:$0xff]
        %v1280 = vld [vmem:[#allocation9 + $0x3a0] sm:$0xff]
        %v1281 = vld [vmem:[#allocation9 + $0x3a8] sm:$0xff]
        %v1282 = vld [vmem:[#allocation9 + $0x3b0] sm:$0xff]
        %v1283 = vld [vmem:[#allocation9 + $0x3b8] sm:$0xff]
        %v1284 = vld [vmem:[#allocation9 + $0x3c0] sm:$0xff]
        %v1285 = vld [vmem:[#allocation9 + $0x3c8] sm:$0xff]
        %v1286 = vld [vmem:[#allocation9 + $0x3d0] sm:$0xff]
        %v1287 = vld [vmem:[#allocation9 + $0x3d8] sm:$0xff]
        %v1288 = vld [vmem:[#allocation9 + $0x3e0] sm:$0xff]
        %v1289 = vld [vmem:[#allocation9 + $0x3e8] sm:$0xff]
        %v1290 = vld [vmem:[#allocation9 + $0x3f0] sm:$0xff]
        %v1291 = vld [vmem:[#allocation9 + $0x3f8] sm:$0xff]
        %v1292 = vld [vmem:[%s4] sm:$0xf]
        %v1294 = vperm.slane %v1292, 0
        %v1295 = vperm.slane %v1292, 1
        %v1296 = vperm.slane %v1292, 2
        %v1297 = vperm.slane %v1292, 3
        %v1430 = vunpack.c.l.b16 %v1164
        %v1431 = vunpack.c.h.b16 %v1164
        %v1432 = vunpack.c.l.b16 %v1165
        %v1433 = vunpack.c.h.b16 %v1165
        %v1434 = vunpack.c.l.b16 %v1166
        %v1435 = vunpack.c.h.b16 %v1166
        %v1436 = vunpack.c.l.b16 %v1167
        %v1437 = vunpack.c.h.b16 %v1167
        %v1438 = vunpack.c.l.b16 %v1168
        %v1439 = vunpack.c.h.b16 %v1168
        %v1440 = vunpack.c.l.b16 %v1169
        %v1441 = vunpack.c.h.b16 %v1169
        %v1442 = vunpack.c.l.b16 %v1170
        %v1443 = vunpack.c.h.b16 %v1170
        %v1444 = vunpack.c.l.b16 %v1171
        %v1445 = vunpack.c.h.b16 %v1171
        %v1446 = vunpack.c.l.b16 %v1172
        %v1447 = vunpack.c.h.b16 %v1172
        %v1448 = vunpack.c.l.b16 %v1173
        %v1449 = vunpack.c.h.b16 %v1173
        %v1450 = vunpack.c.l.b16 %v1174
        %v1451 = vunpack.c.h.b16 %v1174
        %v1452 = vunpack.c.l.b16 %v1175
        %v1453 = vunpack.c.h.b16 %v1175
        %v1454 = vunpack.c.l.b16 %v1176
        %v1455 = vunpack.c.h.b16 %v1176
        %v1456 = vunpack.c.l.b16 %v1177
        %v1457 = vunpack.c.h.b16 %v1177
        %v1458 = vunpack.c.l.b16 %v1178
        %v1459 = vunpack.c.h.b16 %v1178
        %v1460 = vunpack.c.l.b16 %v1179
        %v1461 = vunpack.c.h.b16 %v1179
        %v1462 = vunpack.c.l.b16 %v1180
        %v1463 = vunpack.c.h.b16 %v1180
        %v1464 = vunpack.c.l.b16 %v1181
        %v1465 = vunpack.c.h.b16 %v1181
        %v1466 = vunpack.c.l.b16 %v1182
        %v1467 = vunpack.c.h.b16 %v1182
        %v1468 = vunpack.c.l.b16 %v1183
        %v1469 = vunpack.c.h.b16 %v1183
        %v1470 = vunpack.c.l.b16 %v1184
        %v1471 = vunpack.c.h.b16 %v1184
        %v1472 = vunpack.c.l.b16 %v1185
        %v1473 = vunpack.c.h.b16 %v1185
        %v1474 = vunpack.c.l.b16 %v1186
        %v1475 = vunpack.c.h.b16 %v1186
        %v1476 = vunpack.c.l.b16 %v1187
        %v1477 = vunpack.c.h.b16 %v1187
        %v1478 = vunpack.c.l.b16 %v1188
        %v1479 = vunpack.c.h.b16 %v1188
        %v1480 = vunpack.c.l.b16 %v1189
        %v1481 = vunpack.c.h.b16 %v1189
        %v1482 = vunpack.c.l.b16 %v1190
        %v1483 = vunpack.c.h.b16 %v1190
        %v1484 = vunpack.c.l.b16 %v1191
        %v1485 = vunpack.c.h.b16 %v1191
        %v1486 = vunpack.c.l.b16 %v1192
        %v1487 = vunpack.c.h.b16 %v1192
        %v1488 = vunpack.c.l.b16 %v1193
        %v1489 = vunpack.c.h.b16 %v1193
        %v1490 = vunpack.c.l.b16 %v1194
        %v1491 = vunpack.c.h.b16 %v1194
        %v1492 = vunpack.c.l.b16 %v1195
        %v1493 = vunpack.c.h.b16 %v1195
        %v1494 = vunpack.c.l.b16 %v1196
        %v1495 = vunpack.c.h.b16 %v1196
        %v1496 = vunpack.c.l.b16 %v1197
        %v1497 = vunpack.c.h.b16 %v1197
        %v1498 = vunpack.c.l.b16 %v1198
        %v1499 = vunpack.c.h.b16 %v1198
        %v1500 = vunpack.c.l.b16 %v1199
        %v1501 = vunpack.c.h.b16 %v1199
        %v1502 = vunpack.c.l.b16 %v1200
        %v1503 = vunpack.c.h.b16 %v1200
        %v1504 = vunpack.c.l.b16 %v1201
        %v1505 = vunpack.c.h.b16 %v1201
        %v1506 = vunpack.c.l.b16 %v1202
        %v1507 = vunpack.c.h.b16 %v1202
        %v1508 = vunpack.c.l.b16 %v1203
        %v1509 = vunpack.c.h.b16 %v1203
        %v1510 = vunpack.c.l.b16 %v1204
        %v1511 = vunpack.c.h.b16 %v1204
        %v1512 = vunpack.c.l.b16 %v1205
        %v1513 = vunpack.c.h.b16 %v1205
        %v1514 = vunpack.c.l.b16 %v1206
        %v1515 = vunpack.c.h.b16 %v1206
        %v1516 = vunpack.c.l.b16 %v1207
        %v1517 = vunpack.c.h.b16 %v1207
        %v1518 = vunpack.c.l.b16 %v1208
        %v1519 = vunpack.c.h.b16 %v1208
        %v1520 = vunpack.c.l.b16 %v1209
        %v1521 = vunpack.c.h.b16 %v1209
        %v1522 = vunpack.c.l.b16 %v1210
        %v1523 = vunpack.c.h.b16 %v1210
        %v1524 = vunpack.c.l.b16 %v1211
        %v1525 = vunpack.c.h.b16 %v1211
        %v1526 = vunpack.c.l.b16 %v1212
        %v1527 = vunpack.c.h.b16 %v1212
        %v1528 = vunpack.c.l.b16 %v1213
        %v1529 = vunpack.c.h.b16 %v1213
        %v1530 = vunpack.c.l.b16 %v1214
        %v1531 = vunpack.c.h.b16 %v1214
        %v1532 = vunpack.c.l.b16 %v1215
        %v1533 = vunpack.c.h.b16 %v1215
        %v1534 = vunpack.c.l.b16 %v1216
        %v1535 = vunpack.c.h.b16 %v1216
        %v1536 = vunpack.c.l.b16 %v1217
        %v1537 = vunpack.c.h.b16 %v1217
        %v1538 = vunpack.c.l.b16 %v1218
        %v1539 = vunpack.c.h.b16 %v1218
        %v1540 = vunpack.c.l.b16 %v1219
        %v1541 = vunpack.c.h.b16 %v1219
        %v1542 = vunpack.c.l.b16 %v1220
        %v1543 = vunpack.c.h.b16 %v1220
        %v1544 = vunpack.c.l.b16 %v1221
        %v1545 = vunpack.c.h.b16 %v1221
        %v1546 = vunpack.c.l.b16 %v1222
        %v1547 = vunpack.c.h.b16 %v1222
        %v1548 = vunpack.c.l.b16 %v1223
        %v1549 = vunpack.c.h.b16 %v1223
        %v1550 = vunpack.c.l.b16 %v1224
        %v1551 = vunpack.c.h.b16 %v1224
        %v1552 = vunpack.c.l.b16 %v1225
        %v1553 = vunpack.c.h.b16 %v1225
        %v1554 = vunpack.c.l.b16 %v1226
        %v1555 = vunpack.c.h.b16 %v1226
        %v1556 = vunpack.c.l.b16 %v1227
        %v1557 = vunpack.c.h.b16 %v1227
        %v1558 = vunpack.c.l.b16 %v1228
        %v1559 = vunpack.c.h.b16 %v1228
        %v1560 = vunpack.c.l.b16 %v1229
        %v1561 = vunpack.c.h.b16 %v1229
        %v1562 = vunpack.c.l.b16 %v1230
        %v1563 = vunpack.c.h.b16 %v1230
        %v1564 = vunpack.c.l.b16 %v1231
        %v1565 = vunpack.c.h.b16 %v1231
        %v1566 = vunpack.c.l.b16 %v1232
        %v1567 = vunpack.c.h.b16 %v1232
        %v1568 = vunpack.c.l.b16 %v1233
        %v1569 = vunpack.c.h.b16 %v1233
        %v1570 = vunpack.c.l.b16 %v1234
        %v1571 = vunpack.c.h.b16 %v1234
        %v1572 = vunpack.c.l.b16 %v1235
        %v1573 = vunpack.c.h.b16 %v1235
        %v1574 = vunpack.c.l.b16 %v1236
        %v1575 = vunpack.c.h.b16 %v1236
        %v1576 = vunpack.c.l.b16 %v1237
        %v1577 = vunpack.c.h.b16 %v1237
        %v1578 = vunpack.c.l.b16 %v1238
        %v1579 = vunpack.c.h.b16 %v1238
        %v1580 = vunpack.c.l.b16 %v1239
        %v1581 = vunpack.c.h.b16 %v1239
        %v1582 = vunpack.c.l.b16 %v1240
        %v1583 = vunpack.c.h.b16 %v1240
        %v1584 = vunpack.c.l.b16 %v1241
        %v1585 = vunpack.c.h.b16 %v1241
        %v1586 = vunpack.c.l.b16 %v1242
        %v1587 = vunpack.c.h.b16 %v1242
        %v1588 = vunpack.c.l.b16 %v1243
        %v1589 = vunpack.c.h.b16 %v1243
        %v1590 = vunpack.c.l.b16 %v1244
        %v1591 = vunpack.c.h.b16 %v1244
        %v1592 = vunpack.c.l.b16 %v1245
        %v1593 = vunpack.c.h.b16 %v1245
        %v1594 = vunpack.c.l.b16 %v1246
        %v1595 = vunpack.c.h.b16 %v1246
        %v1596 = vunpack.c.l.b16 %v1247
        %v1597 = vunpack.c.h.b16 %v1247
        %v1598 = vunpack.c.l.b16 %v1248
        %v1599 = vunpack.c.h.b16 %v1248
        %v1600 = vunpack.c.l.b16 %v1249
        %v1601 = vunpack.c.h.b16 %v1249
        %v1602 = vunpack.c.l.b16 %v1250
        %v1603 = vunpack.c.h.b16 %v1250
        %v1604 = vunpack.c.l.b16 %v1251
        %v1605 = vunpack.c.h.b16 %v1251
        %v1606 = vunpack.c.l.b16 %v1252
        %v1607 = vunpack.c.h.b16 %v1252
        %v1608 = vunpack.c.l.b16 %v1253
        %v1609 = vunpack.c.h.b16 %v1253
        %v1610 = vunpack.c.l.b16 %v1254
        %v1611 = vunpack.c.h.b16 %v1254
        %v1612 = vunpack.c.l.b16 %v1255
        %v1613 = vunpack.c.h.b16 %v1255
        %v1614 = vunpack.c.l.b16 %v1256
        %v1615 = vunpack.c.h.b16 %v1256
        %v1616 = vunpack.c.l.b16 %v1257
        %v1617 = vunpack.c.h.b16 %v1257
        %v1618 = vunpack.c.l.b16 %v1258
        %v1619 = vunpack.c.h.b16 %v1258
        %v1620 = vunpack.c.l.b16 %v1259
        %v1621 = vunpack.c.h.b16 %v1259
        %v1622 = vunpack.c.l.b16 %v1260
        %v1623 = vunpack.c.h.b16 %v1260
        %v1624 = vunpack.c.l.b16 %v1261
        %v1625 = vunpack.c.h.b16 %v1261
        %v1626 = vunpack.c.l.b16 %v1262
        %v1627 = vunpack.c.h.b16 %v1262
        %v1628 = vunpack.c.l.b16 %v1263
        %v1629 = vunpack.c.h.b16 %v1263
        %v1630 = vunpack.c.l.b16 %v1264
        %v1631 = vunpack.c.h.b16 %v1264
        %v1632 = vunpack.c.l.b16 %v1265
        %v1633 = vunpack.c.h.b16 %v1265
        %v1634 = vunpack.c.l.b16 %v1266
        %v1635 = vunpack.c.h.b16 %v1266
        %v1636 = vunpack.c.l.b16 %v1267
        %v1637 = vunpack.c.h.b16 %v1267
        %v1638 = vunpack.c.l.b16 %v1268
        %v1639 = vunpack.c.h.b16 %v1268
        %v1640 = vunpack.c.l.b16 %v1269
        %v1641 = vunpack.c.h.b16 %v1269
        %v1642 = vunpack.c.l.b16 %v1270
        %v1643 = vunpack.c.h.b16 %v1270
        %v1644 = vunpack.c.l.b16 %v1271
        %v1645 = vunpack.c.h.b16 %v1271
        %v1646 = vunpack.c.l.b16 %v1272
        %v1647 = vunpack.c.h.b16 %v1272
        %v1648 = vunpack.c.l.b16 %v1273
        %v1649 = vunpack.c.h.b16 %v1273
        %v1650 = vunpack.c.l.b16 %v1274
        %v1651 = vunpack.c.h.b16 %v1274
        %v1652 = vunpack.c.l.b16 %v1275
        %v1653 = vunpack.c.h.b16 %v1275
        %v1654 = vunpack.c.l.b16 %v1276
        %v1655 = vunpack.c.h.b16 %v1276
        %v1656 = vunpack.c.l.b16 %v1277
        %v1657 = vunpack.c.h.b16 %v1277
        %v1658 = vunpack.c.l.b16 %v1278
        %v1659 = vunpack.c.h.b16 %v1278
        %v1660 = vunpack.c.l.b16 %v1279
        %v1661 = vunpack.c.h.b16 %v1279
        %v1662 = vunpack.c.l.b16 %v1280
        %v1663 = vunpack.c.h.b16 %v1280
        %v1664 = vunpack.c.l.b16 %v1281
        %v1665 = vunpack.c.h.b16 %v1281
        %v1666 = vunpack.c.l.b16 %v1282
        %v1667 = vunpack.c.h.b16 %v1282
        %v1668 = vunpack.c.l.b16 %v1283
        %v1669 = vunpack.c.h.b16 %v1283
        %v1670 = vunpack.c.l.b16 %v1284
        %v1671 = vunpack.c.h.b16 %v1284
        %v1672 = vunpack.c.l.b16 %v1285
        %v1673 = vunpack.c.h.b16 %v1285
        %v1674 = vunpack.c.l.b16 %v1286
        %v1675 = vunpack.c.h.b16 %v1286
        %v1676 = vunpack.c.l.b16 %v1287
        %v1677 = vunpack.c.h.b16 %v1287
        %v1678 = vunpack.c.l.b16 %v1288
        %v1679 = vunpack.c.h.b16 %v1288
        %v1680 = vunpack.c.l.b16 %v1289
        %v1681 = vunpack.c.h.b16 %v1289
        %v1682 = vunpack.c.l.b16 %v1290
        %v1683 = vunpack.c.h.b16 %v1290
        %v1684 = vunpack.c.l.b16 %v1291
        %v1685 = vunpack.c.h.b16 %v1291
        %v1686 = vpack.c.b16 %v1434, %v1430
        %v1687 = vpack.c.b16 %v1435, %v1431
        %v1688 = vpack.c.b16 %v1436, %v1432
        %v1689 = vpack.c.b16 %v1437, %v1433
        %v1690 = vpack.c.b16 %v1442, %v1438
        %v1691 = vpack.c.b16 %v1443, %v1439
        %v1692 = vpack.c.b16 %v1444, %v1440
        %v1693 = vpack.c.b16 %v1445, %v1441
        %v1694 = vpack.c.b16 %v1450, %v1446
        %v1695 = vpack.c.b16 %v1451, %v1447
        %v1696 = vpack.c.b16 %v1452, %v1448
        %v1697 = vpack.c.b16 %v1453, %v1449
        %v1698 = vpack.c.b16 %v1458, %v1454
        %v1699 = vpack.c.b16 %v1459, %v1455
        %v1700 = vpack.c.b16 %v1460, %v1456
        %v1701 = vpack.c.b16 %v1461, %v1457
        %v1702 = vpack.c.b16 %v1466, %v1462
        %v1703 = vpack.c.b16 %v1467, %v1463
        %v1704 = vpack.c.b16 %v1468, %v1464
        %v1705 = vpack.c.b16 %v1469, %v1465
        %v1706 = vpack.c.b16 %v1474, %v1470
        %v1707 = vpack.c.b16 %v1475, %v1471
        %v1708 = vpack.c.b16 %v1476, %v1472
        %v1709 = vpack.c.b16 %v1477, %v1473
        %v1710 = vpack.c.b16 %v1482, %v1478
        %v1711 = vpack.c.b16 %v1483, %v1479
        %v1712 = vpack.c.b16 %v1484, %v1480
        %v1713 = vpack.c.b16 %v1485, %v1481
        %v1714 = vpack.c.b16 %v1490, %v1486
        %v1715 = vpack.c.b16 %v1491, %v1487
        %v1716 = vpack.c.b16 %v1492, %v1488
        %v1717 = vpack.c.b16 %v1493, %v1489
        %v1718 = vpack.c.b16 %v1498, %v1494
        %v1719 = vpack.c.b16 %v1499, %v1495
        %v1720 = vpack.c.b16 %v1500, %v1496
        %v1721 = vpack.c.b16 %v1501, %v1497
        %v1722 = vpack.c.b16 %v1506, %v1502
        %v1723 = vpack.c.b16 %v1507, %v1503
        %v1724 = vpack.c.b16 %v1508, %v1504
        %v1725 = vpack.c.b16 %v1509, %v1505
        %v1726 = vpack.c.b16 %v1514, %v1510
        %v1727 = vpack.c.b16 %v1515, %v1511
        %v1728 = vpack.c.b16 %v1516, %v1512
        %v1729 = vpack.c.b16 %v1517, %v1513
        %v1730 = vpack.c.b16 %v1522, %v1518
        %v1731 = vpack.c.b16 %v1523, %v1519
        %v1732 = vpack.c.b16 %v1524, %v1520
        %v1733 = vpack.c.b16 %v1525, %v1521
        %v1734 = vpack.c.b16 %v1530, %v1526
        %v1735 = vpack.c.b16 %v1531, %v1527
        %v1736 = vpack.c.b16 %v1532, %v1528
        %v1737 = vpack.c.b16 %v1533, %v1529
        %v1738 = vpack.c.b16 %v1538, %v1534
        %v1739 = vpack.c.b16 %v1539, %v1535
        %v1740 = vpack.c.b16 %v1540, %v1536
        %v1741 = vpack.c.b16 %v1541, %v1537
        %v1742 = vpack.c.b16 %v1546, %v1542
        %v1743 = vpack.c.b16 %v1547, %v1543
        %v1744 = vpack.c.b16 %v1548, %v1544
        %v1745 = vpack.c.b16 %v1549, %v1545
        %v1746 = vpack.c.b16 %v1554, %v1550
        %v1747 = vpack.c.b16 %v1555, %v1551
        %v1748 = vpack.c.b16 %v1556, %v1552
        %v1749 = vpack.c.b16 %v1557, %v1553
        %v1750 = vpack.c.b16 %v1562, %v1558
        %v1751 = vpack.c.b16 %v1563, %v1559
        %v1752 = vpack.c.b16 %v1564, %v1560
        %v1753 = vpack.c.b16 %v1565, %v1561
        %v1754 = vpack.c.b16 %v1570, %v1566
        %v1755 = vpack.c.b16 %v1571, %v1567
        %v1756 = vpack.c.b16 %v1572, %v1568
        %v1757 = vpack.c.b16 %v1573, %v1569
        %v1758 = vpack.c.b16 %v1578, %v1574
        %v1759 = vpack.c.b16 %v1579, %v1575
        %v1760 = vpack.c.b16 %v1580, %v1576
        %v1761 = vpack.c.b16 %v1581, %v1577
        %v1762 = vpack.c.b16 %v1586, %v1582
        %v1763 = vpack.c.b16 %v1587, %v1583
        %v1764 = vpack.c.b16 %v1588, %v1584
        %v1765 = vpack.c.b16 %v1589, %v1585
        %v1766 = vpack.c.b16 %v1594, %v1590
        %v1767 = vpack.c.b16 %v1595, %v1591
        %v1768 = vpack.c.b16 %v1596, %v1592
        %v1769 = vpack.c.b16 %v1597, %v1593
        %v1770 = vpack.c.b16 %v1602, %v1598
        %v1771 = vpack.c.b16 %v1603, %v1599
        %v1772 = vpack.c.b16 %v1604, %v1600
        %v1773 = vpack.c.b16 %v1605, %v1601
        %v1774 = vpack.c.b16 %v1610, %v1606
        %v1775 = vpack.c.b16 %v1611, %v1607
        %v1776 = vpack.c.b16 %v1612, %v1608
        %v1777 = vpack.c.b16 %v1613, %v1609
        %v1778 = vpack.c.b16 %v1618, %v1614
        %v1779 = vpack.c.b16 %v1619, %v1615
        %v1780 = vpack.c.b16 %v1620, %v1616
        %v1781 = vpack.c.b16 %v1621, %v1617
        %v1782 = vpack.c.b16 %v1626, %v1622
        %v1783 = vpack.c.b16 %v1627, %v1623
        %v1784 = vpack.c.b16 %v1628, %v1624
        %v1785 = vpack.c.b16 %v1629, %v1625
        %v1786 = vpack.c.b16 %v1634, %v1630
        %v1787 = vpack.c.b16 %v1635, %v1631
        %v1788 = vpack.c.b16 %v1636, %v1632
        %v1789 = vpack.c.b16 %v1637, %v1633
        %v1790 = vpack.c.b16 %v1642, %v1638
        %v1791 = vpack.c.b16 %v1643, %v1639
        %v1792 = vpack.c.b16 %v1644, %v1640
        %v1793 = vpack.c.b16 %v1645, %v1641
        %v1794 = vpack.c.b16 %v1650, %v1646
        %v1795 = vpack.c.b16 %v1651, %v1647
        %v1796 = vpack.c.b16 %v1652, %v1648
        %v1797 = vpack.c.b16 %v1653, %v1649
        %v1798 = vpack.c.b16 %v1658, %v1654
        %v1799 = vpack.c.b16 %v1659, %v1655
        %v1800 = vpack.c.b16 %v1660, %v1656
        %v1801 = vpack.c.b16 %v1661, %v1657
        %v1802 = vpack.c.b16 %v1666, %v1662
        %v1803 = vpack.c.b16 %v1667, %v1663
        %v1804 = vpack.c.b16 %v1668, %v1664
        %v1805 = vpack.c.b16 %v1669, %v1665
        %v1806 = vpack.c.b16 %v1674, %v1670
        %v1807 = vpack.c.b16 %v1675, %v1671
        %v1808 = vpack.c.b16 %v1676, %v1672
        %v1809 = vpack.c.b16 %v1677, %v1673
        %v1810 = vpack.c.b16 %v1682, %v1678
        %v1811 = vpack.c.b16 %v1683, %v1679
        %v1812 = vpack.c.b16 %v1684, %v1680
        %v1813 = vpack.c.b16 %v1685, %v1681
        %1942 = vmatpush.bf16.msra.mxu0 %v1714
        %1943 = vmatpush.bf16.msra.mxu0 %v1710
        %1944 = vmatpush.bf16.msra.mxu0 %v1706
        %1945 = vmatpush.bf16.msra.mxu0 %v1702
        %1946 = vmatpush.bf16.msra.mxu0 %v1698
        %1947 = vmatpush.bf16.msra.mxu0 %v1694
        %1948 = vmatpush.bf16.msra.mxu0 %v1690
        %1949 = vmatpush.bf16.msra.mxu0 %v1686
        %1950 = vmatmul.bf16.gmra.mxu0 %v1100
        %v1951 = vpop.f32.mrf.mxu0
        %v1952 = vadd.f32 %v1294, %v1951
        %v1953 = vpop.f32.mrf.mxu0
        %v1954 = vadd.f32 %v1294, %v1953
        %1955 = vmatmul.bf16.gmra.mxu0 %v1104
        %v1956 = vpop.f32.mrf.mxu0
        %v1957 = vadd.f32 %v1294, %v1956
        %v1958 = vpop.f32.mrf.mxu0
        %v1959 = vadd.f32 %v1294, %v1958
        %1960 = vmatmul.bf16.gmra.mxu0 %v1108
        %v1961 = vpop.f32.mrf.mxu0
        %v1962 = vadd.f32 %v1294, %v1961
        %v1963 = vpop.f32.mrf.mxu0
        %v1964 = vadd.f32 %v1294, %v1963
        %1965 = vmatmul.bf16.gmra.mxu0 %v1112
        %v1966 = vpop.f32.mrf.mxu0
        %v1967 = vadd.f32 %v1294, %v1966
        %v1968 = vpop.f32.mrf.mxu0
        %v1969 = vadd.f32 %v1294, %v1968
        %1970 = vmatmul.bf16.gmra.mxu0 %v1116
        %v1971 = vpop.f32.mrf.mxu0
        %v1972 = vadd.f32 %v1294, %v1971
        %v1973 = vpop.f32.mrf.mxu0
        %v1974 = vadd.f32 %v1294, %v1973
        %1975 = vmatmul.bf16.gmra.mxu0 %v1120
        %v1976 = vpop.f32.mrf.mxu0
        %v1977 = vadd.f32 %v1294, %v1976
        %v1978 = vpop.f32.mrf.mxu0
        %v1979 = vadd.f32 %v1294, %v1978
        %1980 = vmatmul.bf16.gmra.mxu0 %v1124
        %v1981 = vpop.f32.mrf.mxu0
        %v1982 = vadd.f32 %v1294, %v1981
        %v1983 = vpop.f32.mrf.mxu0
        %v1984 = vadd.f32 %v1294, %v1983
        %1985 = vmatmul.bf16.gmra.mxu0 %v1128
        %v1986 = vpop.f32.mrf.mxu0
        %v1987 = vadd.f32 %v1294, %v1986
        %v1988 = vpop.f32.mrf.mxu0
        %v1989 = vadd.f32 %v1294, %v1988
        %1990 = vmatmul.bf16.gmra.mxu0 %v1132
        %v1991 = vpop.f32.mrf.mxu0
        %v1992 = vadd.f32 %v1294, %v1991
        %v1993 = vpop.f32.mrf.mxu0
        %v1994 = vadd.f32 %v1294, %v1993
        %1995 = vmatmul.bf16.gmra.mxu0 %v1136
        %v1996 = vpop.f32.mrf.mxu0
        %v1997 = vadd.f32 %v1294, %v1996
        %v1998 = vpop.f32.mrf.mxu0
        %v1999 = vadd.f32 %v1294, %v1998
        %2000 = vmatmul.bf16.gmra.mxu0 %v1140
        %v2001 = vpop.f32.mrf.mxu0
        %v2002 = vadd.f32 %v1294, %v2001
        %v2003 = vpop.f32.mrf.mxu0
        %v2004 = vadd.f32 %v1294, %v2003
        %2005 = vmatmul.bf16.gmra.mxu0 %v1144
        %v2006 = vpop.f32.mrf.mxu0
        %v2007 = vadd.f32 %v1294, %v2006
        %v2008 = vpop.f32.mrf.mxu0
        %v2009 = vadd.f32 %v1294, %v2008
        %2010 = vmatmul.bf16.gmra.mxu0 %v1148
        %v2011 = vpop.f32.mrf.mxu0
        %v2012 = vadd.f32 %v1294, %v2011
        %v2013 = vpop.f32.mrf.mxu0
        %v2014 = vadd.f32 %v1294, %v2013
        %2015 = vmatmul.bf16.gmra.mxu0 %v1152
        %v2016 = vpop.f32.mrf.mxu0
        %v2017 = vadd.f32 %v1294, %v2016
        %v2018 = vpop.f32.mrf.mxu0
        %v2019 = vadd.f32 %v1294, %v2018
        %2020 = vmatmul.bf16.gmra.mxu0 %v1156
        %v2021 = vpop.f32.mrf.mxu0
        %v2022 = vadd.f32 %v1294, %v2021
        %v2023 = vpop.f32.mrf.mxu0
        %v2024 = vadd.f32 %v1294, %v2023
        %2025 = vmatmul.bf16.gmra.mxu0 %v1160
        %v2026 = vpop.f32.mrf.mxu0
        %v2027 = vadd.f32 %v1294, %v2026
        %v2028 = vpop.f32.mrf.mxu0
        %v2029 = vadd.f32 %v1294, %v2028
        %2030 = vdwg.mxu0
        %2031 = vmatpush.bf16.msra.mxu0 %v1746
        %2032 = vmatpush.bf16.msra.mxu0 %v1742
        %2033 = vmatpush.bf16.msra.mxu0 %v1738
        %2034 = vmatpush.bf16.msra.mxu0 %v1734
        %2035 = vmatpush.bf16.msra.mxu0 %v1730
        %2036 = vmatpush.bf16.msra.mxu0 %v1726
        %2037 = vmatpush.bf16.msra.mxu0 %v1722
        %2038 = vmatpush.bf16.msra.mxu0 %v1718
        %2039 = vmatmul.bf16.gmra.mxu0 %v1101
        %v2040 = vpop.f32.mrf.mxu0
        %v2041 = vadd.f32 %v1952, %v2040
        %v2042 = vpop.f32.mrf.mxu0
        %v2043 = vadd.f32 %v1954, %v2042
        %2044 = vmatmul.bf16.gmra.mxu0 %v1105
        %v2045 = vpop.f32.mrf.mxu0
        %v2046 = vadd.f32 %v1957, %v2045
        %v2047 = vpop.f32.mrf.mxu0
        %v2048 = vadd.f32 %v1959, %v2047
        %2049 = vmatmul.bf16.gmra.mxu0 %v1109
        %v2050 = vpop.f32.mrf.mxu0
        %v2051 = vadd.f32 %v1962, %v2050
        %v2052 = vpop.f32.mrf.mxu0
        %v2053 = vadd.f32 %v1964, %v2052
        %2054 = vmatmul.bf16.gmra.mxu0 %v1113
        %v2055 = vpop.f32.mrf.mxu0
        %v2056 = vadd.f32 %v1967, %v2055
        %v2057 = vpop.f32.mrf.mxu0
        %v2058 = vadd.f32 %v1969, %v2057
        %2059 = vmatmul.bf16.gmra.mxu0 %v1117
        %v2060 = vpop.f32.mrf.mxu0
        %v2061 = vadd.f32 %v1972, %v2060
        %v2062 = vpop.f32.mrf.mxu0
        %v2063 = vadd.f32 %v1974, %v2062
        %2064 = vmatmul.bf16.gmra.mxu0 %v1121
        %v2065 = vpop.f32.mrf.mxu0
        %v2066 = vadd.f32 %v1977, %v2065
        %v2067 = vpop.f32.mrf.mxu0
        %v2068 = vadd.f32 %v1979, %v2067
        %2069 = vmatmul.bf16.gmra.mxu0 %v1125
        %v2070 = vpop.f32.mrf.mxu0
        %v2071 = vadd.f32 %v1982, %v2070
        %v2072 = vpop.f32.mrf.mxu0
        %v2073 = vadd.f32 %v1984, %v2072
        %2074 = vmatmul.bf16.gmra.mxu0 %v1129
        %v2075 = vpop.f32.mrf.mxu0
        %v2076 = vadd.f32 %v1987, %v2075
        %v2077 = vpop.f32.mrf.mxu0
        %v2078 = vadd.f32 %v1989, %v2077
        %2079 = vmatmul.bf16.gmra.mxu0 %v1133
        %v2080 = vpop.f32.mrf.mxu0
        %v2081 = vadd.f32 %v1992, %v2080
        %v2082 = vpop.f32.mrf.mxu0
        %v2083 = vadd.f32 %v1994, %v2082
        %2084 = vmatmul.bf16.gmra.mxu0 %v1137
        %v2085 = vpop.f32.mrf.mxu0
        %v2086 = vadd.f32 %v1997, %v2085
        %v2087 = vpop.f32.mrf.mxu0
        %v2088 = vadd.f32 %v1999, %v2087
        %2089 = vmatmul.bf16.gmra.mxu0 %v1141
        %v2090 = vpop.f32.mrf.mxu0
        %v2091 = vadd.f32 %v2002, %v2090
        %v2092 = vpop.f32.mrf.mxu0
        %v2093 = vadd.f32 %v2004, %v2092
        %2094 = vmatmul.bf16.gmra.mxu0 %v1145
        %v2095 = vpop.f32.mrf.mxu0
        %v2096 = vadd.f32 %v2007, %v2095
        %v2097 = vpop.f32.mrf.mxu0
        %v2098 = vadd.f32 %v2009, %v2097
        %2099 = vmatmul.bf16.gmra.mxu0 %v1149
        %v2100 = vpop.f32.mrf.mxu0
        %v2101 = vadd.f32 %v2012, %v2100
        %v2102 = vpop.f32.mrf.mxu0
        %v2103 = vadd.f32 %v2014, %v2102
        %2104 = vmatmul.bf16.gmra.mxu0 %v1153
        %v2105 = vpop.f32.mrf.mxu0
        %v2106 = vadd.f32 %v2017, %v2105
        %v2107 = vpop.f32.mrf.mxu0
        %v2108 = vadd.f32 %v2019, %v2107
        %2109 = vmatmul.bf16.gmra.mxu0 %v1157
        %v2110 = vpop.f32.mrf.mxu0
        %v2111 = vadd.f32 %v2022, %v2110
        %v2112 = vpop.f32.mrf.mxu0
        %v2113 = vadd.f32 %v2024, %v2112
        %2114 = vmatmul.bf16.gmra.mxu0 %v1161
        %v2115 = vpop.f32.mrf.mxu0
        %v2116 = vadd.f32 %v2027, %v2115
        %v2117 = vpop.f32.mrf.mxu0
        %v2118 = vadd.f32 %v2029, %v2117
        %2119 = vdwg.mxu0
        %2120 = vmatpush.bf16.msra.mxu0 %v1778
        %2121 = vmatpush.bf16.msra.mxu0 %v1774
        %2122 = vmatpush.bf16.msra.mxu0 %v1770
        %2123 = vmatpush.bf16.msra.mxu0 %v1766
        %2124 = vmatpush.bf16.msra.mxu0 %v1762
        %2125 = vmatpush.bf16.msra.mxu0 %v1758
        %2126 = vmatpush.bf16.msra.mxu0 %v1754
        %2127 = vmatpush.bf16.msra.mxu0 %v1750
        %2128 = vmatmul.bf16.gmra.mxu0 %v1102
        %v2129 = vpop.f32.mrf.mxu0
        %v2130 = vadd.f32 %v2041, %v2129
        %v2131 = vpop.f32.mrf.mxu0
        %v2132 = vadd.f32 %v2043, %v2131
        %2133 = vmatmul.bf16.gmra.mxu0 %v1106
        %v2134 = vpop.f32.mrf.mxu0
        %v2135 = vadd.f32 %v2046, %v2134
        %v2136 = vpop.f32.mrf.mxu0
        %v2137 = vadd.f32 %v2048, %v2136
        %2138 = vmatmul.bf16.gmra.mxu0 %v1110
        %v2139 = vpop.f32.mrf.mxu0
        %v2140 = vadd.f32 %v2051, %v2139
        %v2141 = vpop.f32.mrf.mxu0
        %v2142 = vadd.f32 %v2053, %v2141
        %2143 = vmatmul.bf16.gmra.mxu0 %v1114
        %v2144 = vpop.f32.mrf.mxu0
        %v2145 = vadd.f32 %v2056, %v2144
        %v2146 = vpop.f32.mrf.mxu0
        %v2147 = vadd.f32 %v2058, %v2146
        %2148 = vmatmul.bf16.gmra.mxu0 %v1118
        %v2149 = vpop.f32.mrf.mxu0
        %v2150 = vadd.f32 %v2061, %v2149
        %v2151 = vpop.f32.mrf.mxu0
        %v2152 = vadd.f32 %v2063, %v2151
        %2153 = vmatmul.bf16.gmra.mxu0 %v1122
        %v2154 = vpop.f32.mrf.mxu0
        %v2155 = vadd.f32 %v2066, %v2154
        %v2156 = vpop.f32.mrf.mxu0
        %v2157 = vadd.f32 %v2068, %v2156
        %2158 = vmatmul.bf16.gmra.mxu0 %v1126
        %v2159 = vpop.f32.mrf.mxu0
        %v2160 = vadd.f32 %v2071, %v2159
        %v2161 = vpop.f32.mrf.mxu0
        %v2162 = vadd.f32 %v2073, %v2161
        %2163 = vmatmul.bf16.gmra.mxu0 %v1130
        %v2164 = vpop.f32.mrf.mxu0
        %v2165 = vadd.f32 %v2076, %v2164
        %v2166 = vpop.f32.mrf.mxu0
        %v2167 = vadd.f32 %v2078, %v2166
        %2168 = vmatmul.bf16.gmra.mxu0 %v1134
        %v2169 = vpop.f32.mrf.mxu0
        %v2170 = vadd.f32 %v2081, %v2169
        %v2171 = vpop.f32.mrf.mxu0
        %v2172 = vadd.f32 %v2083, %v2171
        %2173 = vmatmul.bf16.gmra.mxu0 %v1138
        %v2174 = vpop.f32.mrf.mxu0
        %v2175 = vadd.f32 %v2086, %v2174
        %v2176 = vpop.f32.mrf.mxu0
        %v2177 = vadd.f32 %v2088, %v2176
        %2178 = vmatmul.bf16.gmra.mxu0 %v1142
        %v2179 = vpop.f32.mrf.mxu0
        %v2180 = vadd.f32 %v2091, %v2179
        %v2181 = vpop.f32.mrf.mxu0
        %v2182 = vadd.f32 %v2093, %v2181
        %2183 = vmatmul.bf16.gmra.mxu0 %v1146
        %v2184 = vpop.f32.mrf.mxu0
        %v2185 = vadd.f32 %v2096, %v2184
        %v2186 = vpop.f32.mrf.mxu0
        %v2187 = vadd.f32 %v2098, %v2186
        %2188 = vmatmul.bf16.gmra.mxu0 %v1150
        %v2189 = vpop.f32.mrf.mxu0
        %v2190 = vadd.f32 %v2101, %v2189
        %v2191 = vpop.f32.mrf.mxu0
        %v2192 = vadd.f32 %v2103, %v2191
        %2193 = vmatmul.bf16.gmra.mxu0 %v1154
        %v2194 = vpop.f32.mrf.mxu0
        %v2195 = vadd.f32 %v2106, %v2194
        %v2196 = vpop.f32.mrf.mxu0
        %v2197 = vadd.f32 %v2108, %v2196
        %2198 = vmatmul.bf16.gmra.mxu0 %v1158
        %v2199 = vpop.f32.mrf.mxu0
        %v2200 = vadd.f32 %v2111, %v2199
        %v2201 = vpop.f32.mrf.mxu0
        %v2202 = vadd.f32 %v2113, %v2201
        %2203 = vmatmul.bf16.gmra.mxu0 %v1162
        %v2204 = vpop.f32.mrf.mxu0
        %v2205 = vadd.f32 %v2116, %v2204
        %v2206 = vpop.f32.mrf.mxu0
        %v2207 = vadd.f32 %v2118, %v2206
        %2208 = vdwg.mxu0
        %2209 = vmatpush.bf16.msra.mxu0 %v1810
        %2210 = vmatpush.bf16.msra.mxu0 %v1806
        %2211 = vmatpush.bf16.msra.mxu0 %v1802
        %2212 = vmatpush.bf16.msra.mxu0 %v1798
        %2213 = vmatpush.bf16.msra.mxu0 %v1794
        %2214 = vmatpush.bf16.msra.mxu0 %v1790
        %2215 = vmatpush.bf16.msra.mxu0 %v1786
        %2216 = vmatpush.bf16.msra.mxu0 %v1782
        %2217 = vmatmul.bf16.gmra.mxu0 %v1103
        %v2218 = vpop.f32.mrf.mxu0
        %v2219 = vadd.f32 %v2130, %v2218
        %v2220 = vpop.f32.mrf.mxu0
        %v2221 = vadd.f32 %v2132, %v2220
        %2222 = vmatmul.bf16.gmra.mxu0 %v1107
        %v2223 = vpop.f32.mrf.mxu0
        %v2224 = vadd.f32 %v2135, %v2223
        %v2225 = vpop.f32.mrf.mxu0
        %v2226 = vadd.f32 %v2137, %v2225
        %2227 = vmatmul.bf16.gmra.mxu0 %v1111
        %v2228 = vpop.f32.mrf.mxu0
        %v2229 = vadd.f32 %v2140, %v2228
        %v2230 = vpop.f32.mrf.mxu0
        %v2231 = vadd.f32 %v2142, %v2230
        %2232 = vmatmul.bf16.gmra.mxu0 %v1115
        %v2233 = vpop.f32.mrf.mxu0
        %v2234 = vadd.f32 %v2145, %v2233
        %v2235 = vpop.f32.mrf.mxu0
        %v2236 = vadd.f32 %v2147, %v2235
        %2237 = vmatmul.bf16.gmra.mxu0 %v1119
        %v2238 = vpop.f32.mrf.mxu0
        %v2239 = vadd.f32 %v2150, %v2238
        %v2240 = vpop.f32.mrf.mxu0
        %v2241 = vadd.f32 %v2152, %v2240
        %2242 = vmatmul.bf16.gmra.mxu0 %v1123
        %v2243 = vpop.f32.mrf.mxu0
        %v2244 = vadd.f32 %v2155, %v2243
        %v2245 = vpop.f32.mrf.mxu0
        %v2246 = vadd.f32 %v2157, %v2245
        %2247 = vmatmul.bf16.gmra.mxu0 %v1127
        %v2248 = vpop.f32.mrf.mxu0
        %v2249 = vadd.f32 %v2160, %v2248
        %v2250 = vpop.f32.mrf.mxu0
        %v2251 = vadd.f32 %v2162, %v2250
        %2252 = vmatmul.bf16.gmra.mxu0 %v1131
        %v2253 = vpop.f32.mrf.mxu0
        %v2254 = vadd.f32 %v2165, %v2253
        %v2255 = vpop.f32.mrf.mxu0
        %v2256 = vadd.f32 %v2167, %v2255
        %2257 = vmatmul.bf16.gmra.mxu0 %v1135
        %v2258 = vpop.f32.mrf.mxu0
        %v2259 = vadd.f32 %v2170, %v2258
        %v2260 = vpop.f32.mrf.mxu0
        %v2261 = vadd.f32 %v2172, %v2260
        %2262 = vmatmul.bf16.gmra.mxu0 %v1139
        %v2263 = vpop.f32.mrf.mxu0
        %v2264 = vadd.f32 %v2175, %v2263
        %v2265 = vpop.f32.mrf.mxu0
        %v2266 = vadd.f32 %v2177, %v2265
        %2267 = vmatmul.bf16.gmra.mxu0 %v1143
        %v2268 = vpop.f32.mrf.mxu0
        %v2269 = vadd.f32 %v2180, %v2268
        %v2270 = vpop.f32.mrf.mxu0
        %v2271 = vadd.f32 %v2182, %v2270
        %2272 = vmatmul.bf16.gmra.mxu0 %v1147
        %v2273 = vpop.f32.mrf.mxu0
        %v2274 = vadd.f32 %v2185, %v2273
        %v2275 = vpop.f32.mrf.mxu0
        %v2276 = vadd.f32 %v2187, %v2275
        %2277 = vmatmul.bf16.gmra.mxu0 %v1151
        %v2278 = vpop.f32.mrf.mxu0
        %v2279 = vadd.f32 %v2190, %v2278
        %v2280 = vpop.f32.mrf.mxu0
        %v2281 = vadd.f32 %v2192, %v2280
        %2282 = vmatmul.bf16.gmra.mxu0 %v1155
        %v2283 = vpop.f32.mrf.mxu0
        %v2284 = vadd.f32 %v2195, %v2283
        %v2285 = vpop.f32.mrf.mxu0
        %v2286 = vadd.f32 %v2197, %v2285
        %2287 = vmatmul.bf16.gmra.mxu0 %v1159
        %v2288 = vpop.f32.mrf.mxu0
        %v2289 = vadd.f32 %v2200, %v2288
        %v2290 = vpop.f32.mrf.mxu0
        %v2291 = vadd.f32 %v2202, %v2290
        %2292 = vmatmul.bf16.gmra.mxu0 %v1163
        %v2293 = vpop.f32.mrf.mxu0
        %v2294 = vadd.f32 %v2205, %v2293
        %v2295 = vpop.f32.mrf.mxu0
        %v2296 = vadd.f32 %v2207, %v2295
        %2297 = vdwg.mxu0
        %2298 = vmatpush.bf16.msra.mxu0 %v1715
        %2299 = vmatpush.bf16.msra.mxu0 %v1711
        %2300 = vmatpush.bf16.msra.mxu0 %v1707
        %2301 = vmatpush.bf16.msra.mxu0 %v1703
        %2302 = vmatpush.bf16.msra.mxu0 %v1699
        %2303 = vmatpush.bf16.msra.mxu0 %v1695
        %2304 = vmatpush.bf16.msra.mxu0 %v1691
        %2305 = vmatpush.bf16.msra.mxu0 %v1687
        %2306 = vmatmul.bf16.gmra.mxu0 %v1100
        %v2307 = vpop.f32.mrf.mxu0
        %v2308 = vadd.f32 %v1295, %v2307
        %v2309 = vpop.f32.mrf.mxu0
        %v2310 = vadd.f32 %v1295, %v2309
        %2311 = vmatmul.bf16.gmra.mxu0 %v1104
        %v2312 = vpop.f32.mrf.mxu0
        %v2313 = vadd.f32 %v1295, %v2312
        %v2314 = vpop.f32.mrf.mxu0
        %v2315 = vadd.f32 %v1295, %v2314
        %2316 = vmatmul.bf16.gmra.mxu0 %v1108
        %v2317 = vpop.f32.mrf.mxu0
        %v2318 = vadd.f32 %v1295, %v2317
        %v2319 = vpop.f32.mrf.mxu0
        %v2320 = vadd.f32 %v1295, %v2319
        %2321 = vmatmul.bf16.gmra.mxu0 %v1112
        %v2322 = vpop.f32.mrf.mxu0
        %v2323 = vadd.f32 %v1295, %v2322
        %v2324 = vpop.f32.mrf.mxu0
        %v2325 = vadd.f32 %v1295, %v2324
        %2326 = vmatmul.bf16.gmra.mxu0 %v1116
        %v2327 = vpop.f32.mrf.mxu0
        %v2328 = vadd.f32 %v1295, %v2327
        %v2329 = vpop.f32.mrf.mxu0
        %v2330 = vadd.f32 %v1295, %v2329
        %2331 = vmatmul.bf16.gmra.mxu0 %v1120
        %v2332 = vpop.f32.mrf.mxu0
        %v2333 = vadd.f32 %v1295, %v2332
        %v2334 = vpop.f32.mrf.mxu0
        %v2335 = vadd.f32 %v1295, %v2334
        %2336 = vmatmul.bf16.gmra.mxu0 %v1124
        %v2337 = vpop.f32.mrf.mxu0
        %v2338 = vadd.f32 %v1295, %v2337
        %v2339 = vpop.f32.mrf.mxu0
        %v2340 = vadd.f32 %v1295, %v2339
        %2341 = vmatmul.bf16.gmra.mxu0 %v1128
        %v2342 = vpop.f32.mrf.mxu0
        %v2343 = vadd.f32 %v1295, %v2342
        %v2344 = vpop.f32.mrf.mxu0
        %v2345 = vadd.f32 %v1295, %v2344
        %2346 = vmatmul.bf16.gmra.mxu0 %v1132
        %v2347 = vpop.f32.mrf.mxu0
        %v2348 = vadd.f32 %v1295, %v2347
        %v2349 = vpop.f32.mrf.mxu0
        %v2350 = vadd.f32 %v1295, %v2349
        %2351 = vmatmul.bf16.gmra.mxu0 %v1136
        %v2352 = vpop.f32.mrf.mxu0
        %v2353 = vadd.f32 %v1295, %v2352
        %v2354 = vpop.f32.mrf.mxu0
        %v2355 = vadd.f32 %v1295, %v2354
        %2356 = vmatmul.bf16.gmra.mxu0 %v1140
        %v2357 = vpop.f32.mrf.mxu0
        %v2358 = vadd.f32 %v1295, %v2357
        %v2359 = vpop.f32.mrf.mxu0
        %v2360 = vadd.f32 %v1295, %v2359
        %2361 = vmatmul.bf16.gmra.mxu0 %v1144
        %v2362 = vpop.f32.mrf.mxu0
        %v2363 = vadd.f32 %v1295, %v2362
        %v2364 = vpop.f32.mrf.mxu0
        %v2365 = vadd.f32 %v1295, %v2364
        %2366 = vmatmul.bf16.gmra.mxu0 %v1148
        %v2367 = vpop.f32.mrf.mxu0
        %v2368 = vadd.f32 %v1295, %v2367
        %v2369 = vpop.f32.mrf.mxu0
        %v2370 = vadd.f32 %v1295, %v2369
        %2371 = vmatmul.bf16.gmra.mxu0 %v1152
        %v2372 = vpop.f32.mrf.mxu0
        %v2373 = vadd.f32 %v1295, %v2372
        %v2374 = vpop.f32.mrf.mxu0
        %v2375 = vadd.f32 %v1295, %v2374
        %2376 = vmatmul.bf16.gmra.mxu0 %v1156
        %v2377 = vpop.f32.mrf.mxu0
        %v2378 = vadd.f32 %v1295, %v2377
        %v2379 = vpop.f32.mrf.mxu0
        %v2380 = vadd.f32 %v1295, %v2379
        %2381 = vmatmul.bf16.gmra.mxu0 %v1160
        %v2382 = vpop.f32.mrf.mxu0
        %v2383 = vadd.f32 %v1295, %v2382
        %v2384 = vpop.f32.mrf.mxu0
        %v2385 = vadd.f32 %v1295, %v2384
        %2386 = vdwg.mxu0
        %2387 = vmatpush.bf16.msra.mxu0 %v1747
        %2388 = vmatpush.bf16.msra.mxu0 %v1743
        %2389 = vmatpush.bf16.msra.mxu0 %v1739
        %2390 = vmatpush.bf16.msra.mxu0 %v1735
        %2391 = vmatpush.bf16.msra.mxu0 %v1731
        %2392 = vmatpush.bf16.msra.mxu0 %v1727
        %2393 = vmatpush.bf16.msra.mxu0 %v1723
        %2394 = vmatpush.bf16.msra.mxu0 %v1719
        %2395 = vmatmul.bf16.gmra.mxu0 %v1101
        %v2396 = vpop.f32.mrf.mxu0
        %v2397 = vadd.f32 %v2308, %v2396
        %v2398 = vpop.f32.mrf.mxu0
        %v2399 = vadd.f32 %v2310, %v2398
        %2400 = vmatmul.bf16.gmra.mxu0 %v1105
        %v2401 = vpop.f32.mrf.mxu0
        %v2402 = vadd.f32 %v2313, %v2401
        %v2403 = vpop.f32.mrf.mxu0
        %v2404 = vadd.f32 %v2315, %v2403
        %2405 = vmatmul.bf16.gmra.mxu0 %v1109
        %v2406 = vpop.f32.mrf.mxu0
        %v2407 = vadd.f32 %v2318, %v2406
        %v2408 = vpop.f32.mrf.mxu0
        %v2409 = vadd.f32 %v2320, %v2408
        %2410 = vmatmul.bf16.gmra.mxu0 %v1113
        %v2411 = vpop.f32.mrf.mxu0
        %v2412 = vadd.f32 %v2323, %v2411
        %v2413 = vpop.f32.mrf.mxu0
        %v2414 = vadd.f32 %v2325, %v2413
        %2415 = vmatmul.bf16.gmra.mxu0 %v1117
        %v2416 = vpop.f32.mrf.mxu0
        %v2417 = vadd.f32 %v2328, %v2416
        %v2418 = vpop.f32.mrf.mxu0
        %v2419 = vadd.f32 %v2330, %v2418
        %2420 = vmatmul.bf16.gmra.mxu0 %v1121
        %v2421 = vpop.f32.mrf.mxu0
        %v2422 = vadd.f32 %v2333, %v2421
        %v2423 = vpop.f32.mrf.mxu0
        %v2424 = vadd.f32 %v2335, %v2423
        %2425 = vmatmul.bf16.gmra.mxu0 %v1125
        %v2426 = vpop.f32.mrf.mxu0
        %v2427 = vadd.f32 %v2338, %v2426
        %v2428 = vpop.f32.mrf.mxu0
        %v2429 = vadd.f32 %v2340, %v2428
        %2430 = vmatmul.bf16.gmra.mxu0 %v1129
        %v2431 = vpop.f32.mrf.mxu0
        %v2432 = vadd.f32 %v2343, %v2431
        %v2433 = vpop.f32.mrf.mxu0
        %v2434 = vadd.f32 %v2345, %v2433
        %2435 = vmatmul.bf16.gmra.mxu0 %v1133
        %v2436 = vpop.f32.mrf.mxu0
        %v2437 = vadd.f32 %v2348, %v2436
        %v2438 = vpop.f32.mrf.mxu0
        %v2439 = vadd.f32 %v2350, %v2438
        %2440 = vmatmul.bf16.gmra.mxu0 %v1137
        %v2441 = vpop.f32.mrf.mxu0
        %v2442 = vadd.f32 %v2353, %v2441
        %v2443 = vpop.f32.mrf.mxu0
        %v2444 = vadd.f32 %v2355, %v2443
        %2445 = vmatmul.bf16.gmra.mxu0 %v1141
        %v2446 = vpop.f32.mrf.mxu0
        %v2447 = vadd.f32 %v2358, %v2446
        %v2448 = vpop.f32.mrf.mxu0
        %v2449 = vadd.f32 %v2360, %v2448
        %2450 = vmatmul.bf16.gmra.mxu0 %v1145
        %v2451 = vpop.f32.mrf.mxu0
        %v2452 = vadd.f32 %v2363, %v2451
        %v2453 = vpop.f32.mrf.mxu0
        %v2454 = vadd.f32 %v2365, %v2453
        %2455 = vmatmul.bf16.gmra.mxu0 %v1149
        %v2456 = vpop.f32.mrf.mxu0
        %v2457 = vadd.f32 %v2368, %v2456
        %v2458 = vpop.f32.mrf.mxu0
        %v2459 = vadd.f32 %v2370, %v2458
        %2460 = vmatmul.bf16.gmra.mxu0 %v1153
        %v2461 = vpop.f32.mrf.mxu0
        %v2462 = vadd.f32 %v2373, %v2461
        %v2463 = vpop.f32.mrf.mxu0
        %v2464 = vadd.f32 %v2375, %v2463
        %2465 = vmatmul.bf16.gmra.mxu0 %v1157
        %v2466 = vpop.f32.mrf.mxu0
        %v2467 = vadd.f32 %v2378, %v2466
        %v2468 = vpop.f32.mrf.mxu0
        %v2469 = vadd.f32 %v2380, %v2468
        %2470 = vmatmul.bf16.gmra.mxu0 %v1161
        %v2471 = vpop.f32.mrf.mxu0
        %v2472 = vadd.f32 %v2383, %v2471
        %v2473 = vpop.f32.mrf.mxu0
        %v2474 = vadd.f32 %v2385, %v2473
        %2475 = vdwg.mxu0
        %2476 = vmatpush.bf16.msra.mxu0 %v1779
        %2477 = vmatpush.bf16.msra.mxu0 %v1775
        %2478 = vmatpush.bf16.msra.mxu0 %v1771
        %2479 = vmatpush.bf16.msra.mxu0 %v1767
        %2480 = vmatpush.bf16.msra.mxu0 %v1763
        %2481 = vmatpush.bf16.msra.mxu0 %v1759
        %2482 = vmatpush.bf16.msra.mxu0 %v1755
        %2483 = vmatpush.bf16.msra.mxu0 %v1751
        %2484 = vmatmul.bf16.gmra.mxu0 %v1102
        %v2485 = vpop.f32.mrf.mxu0
        %v2486 = vadd.f32 %v2397, %v2485
        %v2487 = vpop.f32.mrf.mxu0
        %v2488 = vadd.f32 %v2399, %v2487
        %2489 = vmatmul.bf16.gmra.mxu0 %v1106
        %v2490 = vpop.f32.mrf.mxu0
        %v2491 = vadd.f32 %v2402, %v2490
        %v2492 = vpop.f32.mrf.mxu0
        %v2493 = vadd.f32 %v2404, %v2492
        %2494 = vmatmul.bf16.gmra.mxu0 %v1110
        %v2495 = vpop.f32.mrf.mxu0
        %v2496 = vadd.f32 %v2407, %v2495
        %v2497 = vpop.f32.mrf.mxu0
        %v2498 = vadd.f32 %v2409, %v2497
        %2499 = vmatmul.bf16.gmra.mxu0 %v1114
        %v2500 = vpop.f32.mrf.mxu0
        %v2501 = vadd.f32 %v2412, %v2500
        %v2502 = vpop.f32.mrf.mxu0
        %v2503 = vadd.f32 %v2414, %v2502
        %2504 = vmatmul.bf16.gmra.mxu0 %v1118
        %v2505 = vpop.f32.mrf.mxu0
        %v2506 = vadd.f32 %v2417, %v2505
        %v2507 = vpop.f32.mrf.mxu0
        %v2508 = vadd.f32 %v2419, %v2507
        %2509 = vmatmul.bf16.gmra.mxu0 %v1122
        %v2510 = vpop.f32.mrf.mxu0
        %v2511 = vadd.f32 %v2422, %v2510
        %v2512 = vpop.f32.mrf.mxu0
        %v2513 = vadd.f32 %v2424, %v2512
        %2514 = vmatmul.bf16.gmra.mxu0 %v1126
        %v2515 = vpop.f32.mrf.mxu0
        %v2516 = vadd.f32 %v2427, %v2515
        %v2517 = vpop.f32.mrf.mxu0
        %v2518 = vadd.f32 %v2429, %v2517
        %2519 = vmatmul.bf16.gmra.mxu0 %v1130
        %v2520 = vpop.f32.mrf.mxu0
        %v2521 = vadd.f32 %v2432, %v2520
        %v2522 = vpop.f32.mrf.mxu0
        %v2523 = vadd.f32 %v2434, %v2522
        %2524 = vmatmul.bf16.gmra.mxu0 %v1134
        %v2525 = vpop.f32.mrf.mxu0
        %v2526 = vadd.f32 %v2437, %v2525
        %v2527 = vpop.f32.mrf.mxu0
        %v2528 = vadd.f32 %v2439, %v2527
        %2529 = vmatmul.bf16.gmra.mxu0 %v1138
        %v2530 = vpop.f32.mrf.mxu0
        %v2531 = vadd.f32 %v2442, %v2530
        %v2532 = vpop.f32.mrf.mxu0
        %v2533 = vadd.f32 %v2444, %v2532
        %2534 = vmatmul.bf16.gmra.mxu0 %v1142
        %v2535 = vpop.f32.mrf.mxu0
        %v2536 = vadd.f32 %v2447, %v2535
        %v2537 = vpop.f32.mrf.mxu0
        %v2538 = vadd.f32 %v2449, %v2537
        %2539 = vmatmul.bf16.gmra.mxu0 %v1146
        %v2540 = vpop.f32.mrf.mxu0
        %v2541 = vadd.f32 %v2452, %v2540
        %v2542 = vpop.f32.mrf.mxu0
        %v2543 = vadd.f32 %v2454, %v2542
        %2544 = vmatmul.bf16.gmra.mxu0 %v1150
        %v2545 = vpop.f32.mrf.mxu0
        %v2546 = vadd.f32 %v2457, %v2545
        %v2547 = vpop.f32.mrf.mxu0
        %v2548 = vadd.f32 %v2459, %v2547
        %2549 = vmatmul.bf16.gmra.mxu0 %v1154
        %v2550 = vpop.f32.mrf.mxu0
        %v2551 = vadd.f32 %v2462, %v2550
        %v2552 = vpop.f32.mrf.mxu0
        %v2553 = vadd.f32 %v2464, %v2552
        %2554 = vmatmul.bf16.gmra.mxu0 %v1158
        %v2555 = vpop.f32.mrf.mxu0
        %v2556 = vadd.f32 %v2467, %v2555
        %v2557 = vpop.f32.mrf.mxu0
        %v2558 = vadd.f32 %v2469, %v2557
        %2559 = vmatmul.bf16.gmra.mxu0 %v1162
        %v2560 = vpop.f32.mrf.mxu0
        %v2561 = vadd.f32 %v2472, %v2560
        %v2562 = vpop.f32.mrf.mxu0
        %v2563 = vadd.f32 %v2474, %v2562
        %2564 = vdwg.mxu0
        %2565 = vmatpush.bf16.msra.mxu0 %v1811
        %2566 = vmatpush.bf16.msra.mxu0 %v1807
        %2567 = vmatpush.bf16.msra.mxu0 %v1803
        %2568 = vmatpush.bf16.msra.mxu0 %v1799
        %2569 = vmatpush.bf16.msra.mxu0 %v1795
        %2570 = vmatpush.bf16.msra.mxu0 %v1791
        %2571 = vmatpush.bf16.msra.mxu0 %v1787
        %2572 = vmatpush.bf16.msra.mxu0 %v1783
        %2573 = vmatmul.bf16.gmra.mxu0 %v1103
        %v2574 = vpop.f32.mrf.mxu0
        %v2575 = vadd.f32 %v2486, %v2574
        %v2576 = vpop.f32.mrf.mxu0
        %v2577 = vadd.f32 %v2488, %v2576
        %2578 = vmatmul.bf16.gmra.mxu0 %v1107
        %v2579 = vpop.f32.mrf.mxu0
        %v2580 = vadd.f32 %v2491, %v2579
        %v2581 = vpop.f32.mrf.mxu0
        %v2582 = vadd.f32 %v2493, %v2581
        %2583 = vmatmul.bf16.gmra.mxu0 %v1111
        %v2584 = vpop.f32.mrf.mxu0
        %v2585 = vadd.f32 %v2496, %v2584
        %v2586 = vpop.f32.mrf.mxu0
        %v2587 = vadd.f32 %v2498, %v2586
        %2588 = vmatmul.bf16.gmra.mxu0 %v1115
        %v2589 = vpop.f32.mrf.mxu0
        %v2590 = vadd.f32 %v2501, %v2589
        %v2591 = vpop.f32.mrf.mxu0
        %v2592 = vadd.f32 %v2503, %v2591
        %2593 = vmatmul.bf16.gmra.mxu0 %v1119
        %v2594 = vpop.f32.mrf.mxu0
        %v2595 = vadd.f32 %v2506, %v2594
        %v2596 = vpop.f32.mrf.mxu0
        %v2597 = vadd.f32 %v2508, %v2596
        %2598 = vmatmul.bf16.gmra.mxu0 %v1123
        %v2599 = vpop.f32.mrf.mxu0
        %v2600 = vadd.f32 %v2511, %v2599
        %v2601 = vpop.f32.mrf.mxu0
        %v2602 = vadd.f32 %v2513, %v2601
        %2603 = vmatmul.bf16.gmra.mxu0 %v1127
        %v2604 = vpop.f32.mrf.mxu0
        %v2605 = vadd.f32 %v2516, %v2604
        %v2606 = vpop.f32.mrf.mxu0
        %v2607 = vadd.f32 %v2518, %v2606
        %2608 = vmatmul.bf16.gmra.mxu0 %v1131
        %v2609 = vpop.f32.mrf.mxu0
        %v2610 = vadd.f32 %v2521, %v2609
        %v2611 = vpop.f32.mrf.mxu0
        %v2612 = vadd.f32 %v2523, %v2611
        %2613 = vmatmul.bf16.gmra.mxu0 %v1135
        %v2614 = vpop.f32.mrf.mxu0
        %v2615 = vadd.f32 %v2526, %v2614
        %v2616 = vpop.f32.mrf.mxu0
        %v2617 = vadd.f32 %v2528, %v2616
        %2618 = vmatmul.bf16.gmra.mxu0 %v1139
        %v2619 = vpop.f32.mrf.mxu0
        %v2620 = vadd.f32 %v2531, %v2619
        %v2621 = vpop.f32.mrf.mxu0
        %v2622 = vadd.f32 %v2533, %v2621
        %2623 = vmatmul.bf16.gmra.mxu0 %v1143
        %v2624 = vpop.f32.mrf.mxu0
        %v2625 = vadd.f32 %v2536, %v2624
        %v2626 = vpop.f32.mrf.mxu0
        %v2627 = vadd.f32 %v2538, %v2626
        %2628 = vmatmul.bf16.gmra.mxu0 %v1147
        %v2629 = vpop.f32.mrf.mxu0
        %v2630 = vadd.f32 %v2541, %v2629
        %v2631 = vpop.f32.mrf.mxu0
        %v2632 = vadd.f32 %v2543, %v2631
        %2633 = vmatmul.bf16.gmra.mxu0 %v1151
        %v2634 = vpop.f32.mrf.mxu0
        %v2635 = vadd.f32 %v2546, %v2634
        %v2636 = vpop.f32.mrf.mxu0
        %v2637 = vadd.f32 %v2548, %v2636
        %2638 = vmatmul.bf16.gmra.mxu0 %v1155
        %v2639 = vpop.f32.mrf.mxu0
        %v2640 = vadd.f32 %v2551, %v2639
        %v2641 = vpop.f32.mrf.mxu0
        %v2642 = vadd.f32 %v2553, %v2641
        %2643 = vmatmul.bf16.gmra.mxu0 %v1159
        %v2644 = vpop.f32.mrf.mxu0
        %v2645 = vadd.f32 %v2556, %v2644
        %v2646 = vpop.f32.mrf.mxu0
        %v2647 = vadd.f32 %v2558, %v2646
        %2648 = vmatmul.bf16.gmra.mxu0 %v1163
        %v2649 = vpop.f32.mrf.mxu0
        %v2650 = vadd.f32 %v2561, %v2649
        %v2651 = vpop.f32.mrf.mxu0
        %v2652 = vadd.f32 %v2563, %v2651
        %2653 = vdwg.mxu0
        %2654 = vmatpush.bf16.msra.mxu0 %v1716
        %2655 = vmatpush.bf16.msra.mxu0 %v1712
        %2656 = vmatpush.bf16.msra.mxu0 %v1708
        %2657 = vmatpush.bf16.msra.mxu0 %v1704
        %2658 = vmatpush.bf16.msra.mxu0 %v1700
        %2659 = vmatpush.bf16.msra.mxu0 %v1696
        %2660 = vmatpush.bf16.msra.mxu0 %v1692
        %2661 = vmatpush.bf16.msra.mxu0 %v1688
        %2662 = vmatmul.bf16.gmra.mxu0 %v1100
        %v2663 = vpop.f32.mrf.mxu0
        %v2664 = vadd.f32 %v1296, %v2663
        %v2665 = vpop.f32.mrf.mxu0
        %v2666 = vadd.f32 %v1296, %v2665
        %2667 = vmatmul.bf16.gmra.mxu0 %v1104
        %v2668 = vpop.f32.mrf.mxu0
        %v2669 = vadd.f32 %v1296, %v2668
        %v2670 = vpop.f32.mrf.mxu0
        %v2671 = vadd.f32 %v1296, %v2670
        %2672 = vmatmul.bf16.gmra.mxu0 %v1108
        %v2673 = vpop.f32.mrf.mxu0
        %v2674 = vadd.f32 %v1296, %v2673
        %v2675 = vpop.f32.mrf.mxu0
        %v2676 = vadd.f32 %v1296, %v2675
        %2677 = vmatmul.bf16.gmra.mxu0 %v1112
        %v2678 = vpop.f32.mrf.mxu0
        %v2679 = vadd.f32 %v1296, %v2678
        %v2680 = vpop.f32.mrf.mxu0
        %v2681 = vadd.f32 %v1296, %v2680
        %2682 = vmatmul.bf16.gmra.mxu0 %v1116
        %v2683 = vpop.f32.mrf.mxu0
        %v2684 = vadd.f32 %v1296, %v2683
        %v2685 = vpop.f32.mrf.mxu0
        %v2686 = vadd.f32 %v1296, %v2685
        %2687 = vmatmul.bf16.gmra.mxu0 %v1120
        %v2688 = vpop.f32.mrf.mxu0
        %v2689 = vadd.f32 %v1296, %v2688
        %v2690 = vpop.f32.mrf.mxu0
        %v2691 = vadd.f32 %v1296, %v2690
        %2692 = vmatmul.bf16.gmra.mxu0 %v1124
        %v2693 = vpop.f32.mrf.mxu0
        %v2694 = vadd.f32 %v1296, %v2693
        %v2695 = vpop.f32.mrf.mxu0
        %v2696 = vadd.f32 %v1296, %v2695
        %2697 = vmatmul.bf16.gmra.mxu0 %v1128
        %v2698 = vpop.f32.mrf.mxu0
        %v2699 = vadd.f32 %v1296, %v2698
        %v2700 = vpop.f32.mrf.mxu0
        %v2701 = vadd.f32 %v1296, %v2700
        %2702 = vmatmul.bf16.gmra.mxu0 %v1132
        %v2703 = vpop.f32.mrf.mxu0
        %v2704 = vadd.f32 %v1296, %v2703
        %v2705 = vpop.f32.mrf.mxu0
        %v2706 = vadd.f32 %v1296, %v2705
        %2707 = vmatmul.bf16.gmra.mxu0 %v1136
        %v2708 = vpop.f32.mrf.mxu0
        %v2709 = vadd.f32 %v1296, %v2708
        %v2710 = vpop.f32.mrf.mxu0
        %v2711 = vadd.f32 %v1296, %v2710
        %2712 = vmatmul.bf16.gmra.mxu0 %v1140
        %v2713 = vpop.f32.mrf.mxu0
        %v2714 = vadd.f32 %v1296, %v2713
        %v2715 = vpop.f32.mrf.mxu0
        %v2716 = vadd.f32 %v1296, %v2715
        %2717 = vmatmul.bf16.gmra.mxu0 %v1144
        %v2718 = vpop.f32.mrf.mxu0
        %v2719 = vadd.f32 %v1296, %v2718
        %v2720 = vpop.f32.mrf.mxu0
        %v2721 = vadd.f32 %v1296, %v2720
        %2722 = vmatmul.bf16.gmra.mxu0 %v1148
        %v2723 = vpop.f32.mrf.mxu0
        %v2724 = vadd.f32 %v1296, %v2723
        %v2725 = vpop.f32.mrf.mxu0
        %v2726 = vadd.f32 %v1296, %v2725
        %2727 = vmatmul.bf16.gmra.mxu0 %v1152
        %v2728 = vpop.f32.mrf.mxu0
        %v2729 = vadd.f32 %v1296, %v2728
        %v2730 = vpop.f32.mrf.mxu0
        %v2731 = vadd.f32 %v1296, %v2730
        %2732 = vmatmul.bf16.gmra.mxu0 %v1156
        %v2733 = vpop.f32.mrf.mxu0
        %v2734 = vadd.f32 %v1296, %v2733
        %v2735 = vpop.f32.mrf.mxu0
        %v2736 = vadd.f32 %v1296, %v2735
        %2737 = vmatmul.bf16.gmra.mxu0 %v1160
        %v2738 = vpop.f32.mrf.mxu0
        %v2739 = vadd.f32 %v1296, %v2738
        %v2740 = vpop.f32.mrf.mxu0
        %v2741 = vadd.f32 %v1296, %v2740
        %2742 = vdwg.mxu0
        %2743 = vmatpush.bf16.msra.mxu0 %v1748
        %2744 = vmatpush.bf16.msra.mxu0 %v1744
        %2745 = vmatpush.bf16.msra.mxu0 %v1740
        %2746 = vmatpush.bf16.msra.mxu0 %v1736
        %2747 = vmatpush.bf16.msra.mxu0 %v1732
        %2748 = vmatpush.bf16.msra.mxu0 %v1728
        %2749 = vmatpush.bf16.msra.mxu0 %v1724
        %2750 = vmatpush.bf16.msra.mxu0 %v1720
        %2751 = vmatmul.bf16.gmra.mxu0 %v1101
        %v2752 = vpop.f32.mrf.mxu0
        %v2753 = vadd.f32 %v2664, %v2752
        %v2754 = vpop.f32.mrf.mxu0
        %v2755 = vadd.f32 %v2666, %v2754
        %2756 = vmatmul.bf16.gmra.mxu0 %v1105
        %v2757 = vpop.f32.mrf.mxu0
        %v2758 = vadd.f32 %v2669, %v2757
        %v2759 = vpop.f32.mrf.mxu0
        %v2760 = vadd.f32 %v2671, %v2759
        %2761 = vmatmul.bf16.gmra.mxu0 %v1109
        %v2762 = vpop.f32.mrf.mxu0
        %v2763 = vadd.f32 %v2674, %v2762
        %v2764 = vpop.f32.mrf.mxu0
        %v2765 = vadd.f32 %v2676, %v2764
        %2766 = vmatmul.bf16.gmra.mxu0 %v1113
        %v2767 = vpop.f32.mrf.mxu0
        %v2768 = vadd.f32 %v2679, %v2767
        %v2769 = vpop.f32.mrf.mxu0
        %v2770 = vadd.f32 %v2681, %v2769
        %2771 = vmatmul.bf16.gmra.mxu0 %v1117
        %v2772 = vpop.f32.mrf.mxu0
        %v2773 = vadd.f32 %v2684, %v2772
        %v2774 = vpop.f32.mrf.mxu0
        %v2775 = vadd.f32 %v2686, %v2774
        %2776 = vmatmul.bf16.gmra.mxu0 %v1121
        %v2777 = vpop.f32.mrf.mxu0
        %v2778 = vadd.f32 %v2689, %v2777
        %v2779 = vpop.f32.mrf.mxu0
        %v2780 = vadd.f32 %v2691, %v2779
        %2781 = vmatmul.bf16.gmra.mxu0 %v1125
        %v2782 = vpop.f32.mrf.mxu0
        %v2783 = vadd.f32 %v2694, %v2782
        %v2784 = vpop.f32.mrf.mxu0
        %v2785 = vadd.f32 %v2696, %v2784
        %2786 = vmatmul.bf16.gmra.mxu0 %v1129
        %v2787 = vpop.f32.mrf.mxu0
        %v2788 = vadd.f32 %v2699, %v2787
        %v2789 = vpop.f32.mrf.mxu0
        %v2790 = vadd.f32 %v2701, %v2789
        %2791 = vmatmul.bf16.gmra.mxu0 %v1133
        %v2792 = vpop.f32.mrf.mxu0
        %v2793 = vadd.f32 %v2704, %v2792
        %v2794 = vpop.f32.mrf.mxu0
        %v2795 = vadd.f32 %v2706, %v2794
        %2796 = vmatmul.bf16.gmra.mxu0 %v1137
        %v2797 = vpop.f32.mrf.mxu0
        %v2798 = vadd.f32 %v2709, %v2797
        %v2799 = vpop.f32.mrf.mxu0
        %v2800 = vadd.f32 %v2711, %v2799
        %2801 = vmatmul.bf16.gmra.mxu0 %v1141
        %v2802 = vpop.f32.mrf.mxu0
        %v2803 = vadd.f32 %v2714, %v2802
        %v2804 = vpop.f32.mrf.mxu0
        %v2805 = vadd.f32 %v2716, %v2804
        %2806 = vmatmul.bf16.gmra.mxu0 %v1145
        %v2807 = vpop.f32.mrf.mxu0
        %v2808 = vadd.f32 %v2719, %v2807
        %v2809 = vpop.f32.mrf.mxu0
        %v2810 = vadd.f32 %v2721, %v2809
        %2811 = vmatmul.bf16.gmra.mxu0 %v1149
        %v2812 = vpop.f32.mrf.mxu0
        %v2813 = vadd.f32 %v2724, %v2812
        %v2814 = vpop.f32.mrf.mxu0
        %v2815 = vadd.f32 %v2726, %v2814
        %2816 = vmatmul.bf16.gmra.mxu0 %v1153
        %v2817 = vpop.f32.mrf.mxu0
        %v2818 = vadd.f32 %v2729, %v2817
        %v2819 = vpop.f32.mrf.mxu0
        %v2820 = vadd.f32 %v2731, %v2819
        %2821 = vmatmul.bf16.gmra.mxu0 %v1157
        %v2822 = vpop.f32.mrf.mxu0
        %v2823 = vadd.f32 %v2734, %v2822
        %v2824 = vpop.f32.mrf.mxu0
        %v2825 = vadd.f32 %v2736, %v2824
        %2826 = vmatmul.bf16.gmra.mxu0 %v1161
        %v2827 = vpop.f32.mrf.mxu0
        %v2828 = vadd.f32 %v2739, %v2827
        %v2829 = vpop.f32.mrf.mxu0
        %v2830 = vadd.f32 %v2741, %v2829
        %2831 = vdwg.mxu0
        %2832 = vmatpush.bf16.msra.mxu0 %v1780
        %2833 = vmatpush.bf16.msra.mxu0 %v1776
        %2834 = vmatpush.bf16.msra.mxu0 %v1772
        %2835 = vmatpush.bf16.msra.mxu0 %v1768
        %2836 = vmatpush.bf16.msra.mxu0 %v1764
        %2837 = vmatpush.bf16.msra.mxu0 %v1760
        %2838 = vmatpush.bf16.msra.mxu0 %v1756
        %2839 = vmatpush.bf16.msra.mxu0 %v1752
        %2840 = vmatmul.bf16.gmra.mxu0 %v1102
        %v2841 = vpop.f32.mrf.mxu0
        %v2842 = vadd.f32 %v2753, %v2841
        %v2843 = vpop.f32.mrf.mxu0
        %v2844 = vadd.f32 %v2755, %v2843
        %2845 = vmatmul.bf16.gmra.mxu0 %v1106
        %v2846 = vpop.f32.mrf.mxu0
        %v2847 = vadd.f32 %v2758, %v2846
        %v2848 = vpop.f32.mrf.mxu0
        %v2849 = vadd.f32 %v2760, %v2848
        %2850 = vmatmul.bf16.gmra.mxu0 %v1110
        %v2851 = vpop.f32.mrf.mxu0
        %v2852 = vadd.f32 %v2763, %v2851
        %v2853 = vpop.f32.mrf.mxu0
        %v2854 = vadd.f32 %v2765, %v2853
        %2855 = vmatmul.bf16.gmra.mxu0 %v1114
        %v2856 = vpop.f32.mrf.mxu0
        %v2857 = vadd.f32 %v2768, %v2856
        %v2858 = vpop.f32.mrf.mxu0
        %v2859 = vadd.f32 %v2770, %v2858
        %2860 = vmatmul.bf16.gmra.mxu0 %v1118
        %v2861 = vpop.f32.mrf.mxu0
        %v2862 = vadd.f32 %v2773, %v2861
        %v2863 = vpop.f32.mrf.mxu0
        %v2864 = vadd.f32 %v2775, %v2863
        %2865 = vmatmul.bf16.gmra.mxu0 %v1122
        %v2866 = vpop.f32.mrf.mxu0
        %v2867 = vadd.f32 %v2778, %v2866
        %v2868 = vpop.f32.mrf.mxu0
        %v2869 = vadd.f32 %v2780, %v2868
        %2870 = vmatmul.bf16.gmra.mxu0 %v1126
        %v2871 = vpop.f32.mrf.mxu0
        %v2872 = vadd.f32 %v2783, %v2871
        %v2873 = vpop.f32.mrf.mxu0
        %v2874 = vadd.f32 %v2785, %v2873
        %2875 = vmatmul.bf16.gmra.mxu0 %v1130
        %v2876 = vpop.f32.mrf.mxu0
        %v2877 = vadd.f32 %v2788, %v2876
        %v2878 = vpop.f32.mrf.mxu0
        %v2879 = vadd.f32 %v2790, %v2878
        %2880 = vmatmul.bf16.gmra.mxu0 %v1134
        %v2881 = vpop.f32.mrf.mxu0
        %v2882 = vadd.f32 %v2793, %v2881
        %v2883 = vpop.f32.mrf.mxu0
        %v2884 = vadd.f32 %v2795, %v2883
        %2885 = vmatmul.bf16.gmra.mxu0 %v1138
        %v2886 = vpop.f32.mrf.mxu0
        %v2887 = vadd.f32 %v2798, %v2886
        %v2888 = vpop.f32.mrf.mxu0
        %v2889 = vadd.f32 %v2800, %v2888
        %2890 = vmatmul.bf16.gmra.mxu0 %v1142
        %v2891 = vpop.f32.mrf.mxu0
        %v2892 = vadd.f32 %v2803, %v2891
        %v2893 = vpop.f32.mrf.mxu0
        %v2894 = vadd.f32 %v2805, %v2893
        %2895 = vmatmul.bf16.gmra.mxu0 %v1146
        %v2896 = vpop.f32.mrf.mxu0
        %v2897 = vadd.f32 %v2808, %v2896
        %v2898 = vpop.f32.mrf.mxu0
        %v2899 = vadd.f32 %v2810, %v2898
        %2900 = vmatmul.bf16.gmra.mxu0 %v1150
        %v2901 = vpop.f32.mrf.mxu0
        %v2902 = vadd.f32 %v2813, %v2901
        %v2903 = vpop.f32.mrf.mxu0
        %v2904 = vadd.f32 %v2815, %v2903
        %2905 = vmatmul.bf16.gmra.mxu0 %v1154
        %v2906 = vpop.f32.mrf.mxu0
        %v2907 = vadd.f32 %v2818, %v2906
        %v2908 = vpop.f32.mrf.mxu0
        %v2909 = vadd.f32 %v2820, %v2908
        %2910 = vmatmul.bf16.gmra.mxu0 %v1158
        %v2911 = vpop.f32.mrf.mxu0
        %v2912 = vadd.f32 %v2823, %v2911
        %v2913 = vpop.f32.mrf.mxu0
        %v2914 = vadd.f32 %v2825, %v2913
        %2915 = vmatmul.bf16.gmra.mxu0 %v1162
        %v2916 = vpop.f32.mrf.mxu0
        %v2917 = vadd.f32 %v2828, %v2916
        %v2918 = vpop.f32.mrf.mxu0
        %v2919 = vadd.f32 %v2830, %v2918
        %2920 = vdwg.mxu0
        %2921 = vmatpush.bf16.msra.mxu0 %v1812
        %2922 = vmatpush.bf16.msra.mxu0 %v1808
        %2923 = vmatpush.bf16.msra.mxu0 %v1804
        %2924 = vmatpush.bf16.msra.mxu0 %v1800
        %2925 = vmatpush.bf16.msra.mxu0 %v1796
        %2926 = vmatpush.bf16.msra.mxu0 %v1792
        %2927 = vmatpush.bf16.msra.mxu0 %v1788
        %2928 = vmatpush.bf16.msra.mxu0 %v1784
        %2929 = vmatmul.bf16.gmra.mxu0 %v1103
        %v2930 = vpop.f32.mrf.mxu0
        %v2931 = vadd.f32 %v2842, %v2930
        %v2932 = vpop.f32.mrf.mxu0
        %v2933 = vadd.f32 %v2844, %v2932
        %2934 = vmatmul.bf16.gmra.mxu0 %v1107
        %v2935 = vpop.f32.mrf.mxu0
        %v2936 = vadd.f32 %v2847, %v2935
        %v2937 = vpop.f32.mrf.mxu0
        %v2938 = vadd.f32 %v2849, %v2937
        %2939 = vmatmul.bf16.gmra.mxu0 %v1111
        %v2940 = vpop.f32.mrf.mxu0
        %v2941 = vadd.f32 %v2852, %v2940
        %v2942 = vpop.f32.mrf.mxu0
        %v2943 = vadd.f32 %v2854, %v2942
        %2944 = vmatmul.bf16.gmra.mxu0 %v1115
        %v2945 = vpop.f32.mrf.mxu0
        %v2946 = vadd.f32 %v2857, %v2945
        %v2947 = vpop.f32.mrf.mxu0
        %v2948 = vadd.f32 %v2859, %v2947
        %2949 = vmatmul.bf16.gmra.mxu0 %v1119
        %v2950 = vpop.f32.mrf.mxu0
        %v2951 = vadd.f32 %v2862, %v2950
        %v2952 = vpop.f32.mrf.mxu0
        %v2953 = vadd.f32 %v2864, %v2952
        %2954 = vmatmul.bf16.gmra.mxu0 %v1123
        %v2955 = vpop.f32.mrf.mxu0
        %v2956 = vadd.f32 %v2867, %v2955
        %v2957 = vpop.f32.mrf.mxu0
        %v2958 = vadd.f32 %v2869, %v2957
        %2959 = vmatmul.bf16.gmra.mxu0 %v1127
        %v2960 = vpop.f32.mrf.mxu0
        %v2961 = vadd.f32 %v2872, %v2960
        %v2962 = vpop.f32.mrf.mxu0
        %v2963 = vadd.f32 %v2874, %v2962
        %2964 = vmatmul.bf16.gmra.mxu0 %v1131
        %v2965 = vpop.f32.mrf.mxu0
        %v2966 = vadd.f32 %v2877, %v2965
        %v2967 = vpop.f32.mrf.mxu0
        %v2968 = vadd.f32 %v2879, %v2967
        %2969 = vmatmul.bf16.gmra.mxu0 %v1135
        %v2970 = vpop.f32.mrf.mxu0
        %v2971 = vadd.f32 %v2882, %v2970
        %v2972 = vpop.f32.mrf.mxu0
        %v2973 = vadd.f32 %v2884, %v2972
        %2974 = vmatmul.bf16.gmra.mxu0 %v1139
        %v2975 = vpop.f32.mrf.mxu0
        %v2976 = vadd.f32 %v2887, %v2975
        %v2977 = vpop.f32.mrf.mxu0
        %v2978 = vadd.f32 %v2889, %v2977
        %2979 = vmatmul.bf16.gmra.mxu0 %v1143
        %v2980 = vpop.f32.mrf.mxu0
        %v2981 = vadd.f32 %v2892, %v2980
        %v2982 = vpop.f32.mrf.mxu0
        %v2983 = vadd.f32 %v2894, %v2982
        %2984 = vmatmul.bf16.gmra.mxu0 %v1147
        %v2985 = vpop.f32.mrf.mxu0
        %v2986 = vadd.f32 %v2897, %v2985
        %v2987 = vpop.f32.mrf.mxu0
        %v2988 = vadd.f32 %v2899, %v2987
        %2989 = vmatmul.bf16.gmra.mxu0 %v1151
        %v2990 = vpop.f32.mrf.mxu0
        %v2991 = vadd.f32 %v2902, %v2990
        %v2992 = vpop.f32.mrf.mxu0
        %v2993 = vadd.f32 %v2904, %v2992
        %2994 = vmatmul.bf16.gmra.mxu0 %v1155
        %v2995 = vpop.f32.mrf.mxu0
        %v2996 = vadd.f32 %v2907, %v2995
        %v2997 = vpop.f32.mrf.mxu0
        %v2998 = vadd.f32 %v2909, %v2997
        %2999 = vmatmul.bf16.gmra.mxu0 %v1159
        %v3000 = vpop.f32.mrf.mxu0
        %v3001 = vadd.f32 %v2912, %v3000
        %v3002 = vpop.f32.mrf.mxu0
        %v3003 = vadd.f32 %v2914, %v3002
        %3004 = vmatmul.bf16.gmra.mxu0 %v1163
        %v3005 = vpop.f32.mrf.mxu0
        %v3006 = vadd.f32 %v2917, %v3005
        %v3007 = vpop.f32.mrf.mxu0
        %v3008 = vadd.f32 %v2919, %v3007
        %3009 = vdwg.mxu0
        %3010 = vmatpush.bf16.msra.mxu0 %v1717
        %3011 = vmatpush.bf16.msra.mxu0 %v1713
        %3012 = vmatpush.bf16.msra.mxu0 %v1709
        %3013 = vmatpush.bf16.msra.mxu0 %v1705
        %3014 = vmatpush.bf16.msra.mxu0 %v1701
        %3015 = vmatpush.bf16.msra.mxu0 %v1697
        %3016 = vmatpush.bf16.msra.mxu0 %v1693
        %3017 = vmatpush.bf16.msra.mxu0 %v1689
        %3018 = vmatmul.bf16.gmra.mxu0 %v1100
        %v3019 = vpop.f32.mrf.mxu0
        %v3020 = vadd.f32 %v1297, %v3019
        %v3021 = vpop.f32.mrf.mxu0
        %v3022 = vadd.f32 %v1297, %v3021
        %3023 = vmatmul.bf16.gmra.mxu0 %v1104
        %v3024 = vpop.f32.mrf.mxu0
        %v3025 = vadd.f32 %v1297, %v3024
        %v3026 = vpop.f32.mrf.mxu0
        %v3027 = vadd.f32 %v1297, %v3026
        %3028 = vmatmul.bf16.gmra.mxu0 %v1108
        %v3029 = vpop.f32.mrf.mxu0
        %v3030 = vadd.f32 %v1297, %v3029
        %v3031 = vpop.f32.mrf.mxu0
        %v3032 = vadd.f32 %v1297, %v3031
        %3033 = vmatmul.bf16.gmra.mxu0 %v1112
        %v3034 = vpop.f32.mrf.mxu0
        %v3035 = vadd.f32 %v1297, %v3034
        %v3036 = vpop.f32.mrf.mxu0
        %v3037 = vadd.f32 %v1297, %v3036
        %3038 = vmatmul.bf16.gmra.mxu0 %v1116
        %v3039 = vpop.f32.mrf.mxu0
        %v3040 = vadd.f32 %v1297, %v3039
        %v3041 = vpop.f32.mrf.mxu0
        %v3042 = vadd.f32 %v1297, %v3041
        %3043 = vmatmul.bf16.gmra.mxu0 %v1120
        %v3044 = vpop.f32.mrf.mxu0
        %v3045 = vadd.f32 %v1297, %v3044
        %v3046 = vpop.f32.mrf.mxu0
        %v3047 = vadd.f32 %v1297, %v3046
        %3048 = vmatmul.bf16.gmra.mxu0 %v1124
        %v3049 = vpop.f32.mrf.mxu0
        %v3050 = vadd.f32 %v1297, %v3049
        %v3051 = vpop.f32.mrf.mxu0
        %v3052 = vadd.f32 %v1297, %v3051
        %3053 = vmatmul.bf16.gmra.mxu0 %v1128
        %v3054 = vpop.f32.mrf.mxu0
        %v3055 = vadd.f32 %v1297, %v3054
        %v3056 = vpop.f32.mrf.mxu0
        %v3057 = vadd.f32 %v1297, %v3056
        %3058 = vmatmul.bf16.gmra.mxu0 %v1132
        %v3059 = vpop.f32.mrf.mxu0
        %v3060 = vadd.f32 %v1297, %v3059
        %v3061 = vpop.f32.mrf.mxu0
        %v3062 = vadd.f32 %v1297, %v3061
        %3063 = vmatmul.bf16.gmra.mxu0 %v1136
        %v3064 = vpop.f32.mrf.mxu0
        %v3065 = vadd.f32 %v1297, %v3064
        %v3066 = vpop.f32.mrf.mxu0
        %v3067 = vadd.f32 %v1297, %v3066
        %3068 = vmatmul.bf16.gmra.mxu0 %v1140
        %v3069 = vpop.f32.mrf.mxu0
        %v3070 = vadd.f32 %v1297, %v3069
        %v3071 = vpop.f32.mrf.mxu0
        %v3072 = vadd.f32 %v1297, %v3071
        %3073 = vmatmul.bf16.gmra.mxu0 %v1144
        %v3074 = vpop.f32.mrf.mxu0
        %v3075 = vadd.f32 %v1297, %v3074
        %v3076 = vpop.f32.mrf.mxu0
        %v3077 = vadd.f32 %v1297, %v3076
        %3078 = vmatmul.bf16.gmra.mxu0 %v1148
        %v3079 = vpop.f32.mrf.mxu0
        %v3080 = vadd.f32 %v1297, %v3079
        %v3081 = vpop.f32.mrf.mxu0
        %v3082 = vadd.f32 %v1297, %v3081
        %3083 = vmatmul.bf16.gmra.mxu0 %v1152
        %v3084 = vpop.f32.mrf.mxu0
        %v3085 = vadd.f32 %v1297, %v3084
        %v3086 = vpop.f32.mrf.mxu0
        %v3087 = vadd.f32 %v1297, %v3086
        %3088 = vmatmul.bf16.gmra.mxu0 %v1156
        %v3089 = vpop.f32.mrf.mxu0
        %v3090 = vadd.f32 %v1297, %v3089
        %v3091 = vpop.f32.mrf.mxu0
        %v3092 = vadd.f32 %v1297, %v3091
        %3093 = vmatmul.bf16.gmra.mxu0 %v1160
        %v3094 = vpop.f32.mrf.mxu0
        %v3095 = vadd.f32 %v1297, %v3094
        %v3096 = vpop.f32.mrf.mxu0
        %v3097 = vadd.f32 %v1297, %v3096
        %3098 = vdwg.mxu0
        %3099 = vmatpush.bf16.msra.mxu0 %v1749
        %3100 = vmatpush.bf16.msra.mxu0 %v1745
        %3101 = vmatpush.bf16.msra.mxu0 %v1741
        %3102 = vmatpush.bf16.msra.mxu0 %v1737
        %3103 = vmatpush.bf16.msra.mxu0 %v1733
        %3104 = vmatpush.bf16.msra.mxu0 %v1729
        %3105 = vmatpush.bf16.msra.mxu0 %v1725
        %3106 = vmatpush.bf16.msra.mxu0 %v1721
        %3107 = vmatmul.bf16.gmra.mxu0 %v1101
        %v3108 = vpop.f32.mrf.mxu0
        %v3109 = vadd.f32 %v3020, %v3108
        %v3110 = vpop.f32.mrf.mxu0
        %v3111 = vadd.f32 %v3022, %v3110
        %3112 = vmatmul.bf16.gmra.mxu0 %v1105
        %v3113 = vpop.f32.mrf.mxu0
        %v3114 = vadd.f32 %v3025, %v3113
        %v3115 = vpop.f32.mrf.mxu0
        %v3116 = vadd.f32 %v3027, %v3115
        %3117 = vmatmul.bf16.gmra.mxu0 %v1109
        %v3118 = vpop.f32.mrf.mxu0
        %v3119 = vadd.f32 %v3030, %v3118
        %v3120 = vpop.f32.mrf.mxu0
        %v3121 = vadd.f32 %v3032, %v3120
        %3122 = vmatmul.bf16.gmra.mxu0 %v1113
        %v3123 = vpop.f32.mrf.mxu0
        %v3124 = vadd.f32 %v3035, %v3123
        %v3125 = vpop.f32.mrf.mxu0
        %v3126 = vadd.f32 %v3037, %v3125
        %3127 = vmatmul.bf16.gmra.mxu0 %v1117
        %v3128 = vpop.f32.mrf.mxu0
        %v3129 = vadd.f32 %v3040, %v3128
        %v3130 = vpop.f32.mrf.mxu0
        %v3131 = vadd.f32 %v3042, %v3130
        %3132 = vmatmul.bf16.gmra.mxu0 %v1121
        %v3133 = vpop.f32.mrf.mxu0
        %v3134 = vadd.f32 %v3045, %v3133
        %v3135 = vpop.f32.mrf.mxu0
        %v3136 = vadd.f32 %v3047, %v3135
        %3137 = vmatmul.bf16.gmra.mxu0 %v1125
        %v3138 = vpop.f32.mrf.mxu0
        %v3139 = vadd.f32 %v3050, %v3138
        %v3140 = vpop.f32.mrf.mxu0
        %v3141 = vadd.f32 %v3052, %v3140
        %3142 = vmatmul.bf16.gmra.mxu0 %v1129
        %v3143 = vpop.f32.mrf.mxu0
        %v3144 = vadd.f32 %v3055, %v3143
        %v3145 = vpop.f32.mrf.mxu0
        %v3146 = vadd.f32 %v3057, %v3145
        %3147 = vmatmul.bf16.gmra.mxu0 %v1133
        %v3148 = vpop.f32.mrf.mxu0
        %v3149 = vadd.f32 %v3060, %v3148
        %v3150 = vpop.f32.mrf.mxu0
        %v3151 = vadd.f32 %v3062, %v3150
        %3152 = vmatmul.bf16.gmra.mxu0 %v1137
        %v3153 = vpop.f32.mrf.mxu0
        %v3154 = vadd.f32 %v3065, %v3153
        %v3155 = vpop.f32.mrf.mxu0
        %v3156 = vadd.f32 %v3067, %v3155
        %3157 = vmatmul.bf16.gmra.mxu0 %v1141
        %v3158 = vpop.f32.mrf.mxu0
        %v3159 = vadd.f32 %v3070, %v3158
        %v3160 = vpop.f32.mrf.mxu0
        %v3161 = vadd.f32 %v3072, %v3160
        %3162 = vmatmul.bf16.gmra.mxu0 %v1145
        %v3163 = vpop.f32.mrf.mxu0
        %v3164 = vadd.f32 %v3075, %v3163
        %v3165 = vpop.f32.mrf.mxu0
        %v3166 = vadd.f32 %v3077, %v3165
        %3167 = vmatmul.bf16.gmra.mxu0 %v1149
        %v3168 = vpop.f32.mrf.mxu0
        %v3169 = vadd.f32 %v3080, %v3168
        %v3170 = vpop.f32.mrf.mxu0
        %v3171 = vadd.f32 %v3082, %v3170
        %3172 = vmatmul.bf16.gmra.mxu0 %v1153
        %v3173 = vpop.f32.mrf.mxu0
        %v3174 = vadd.f32 %v3085, %v3173
        %v3175 = vpop.f32.mrf.mxu0
        %v3176 = vadd.f32 %v3087, %v3175
        %3177 = vmatmul.bf16.gmra.mxu0 %v1157
        %v3178 = vpop.f32.mrf.mxu0
        %v3179 = vadd.f32 %v3090, %v3178
        %v3180 = vpop.f32.mrf.mxu0
        %v3181 = vadd.f32 %v3092, %v3180
        %3182 = vmatmul.bf16.gmra.mxu0 %v1161
        %v3183 = vpop.f32.mrf.mxu0
        %v3184 = vadd.f32 %v3095, %v3183
        %v3185 = vpop.f32.mrf.mxu0
        %v3186 = vadd.f32 %v3097, %v3185
        %3187 = vdwg.mxu0
        %3188 = vmatpush.bf16.msra.mxu0 %v1781
        %3189 = vmatpush.bf16.msra.mxu0 %v1777
        %3190 = vmatpush.bf16.msra.mxu0 %v1773
        %3191 = vmatpush.bf16.msra.mxu0 %v1769
        %3192 = vmatpush.bf16.msra.mxu0 %v1765
        %3193 = vmatpush.bf16.msra.mxu0 %v1761
        %3194 = vmatpush.bf16.msra.mxu0 %v1757
        %3195 = vmatpush.bf16.msra.mxu0 %v1753
        %3196 = vmatmul.bf16.gmra.mxu0 %v1102
        %v3197 = vpop.f32.mrf.mxu0
        %v3198 = vadd.f32 %v3109, %v3197
        %v3199 = vpop.f32.mrf.mxu0
        %v3200 = vadd.f32 %v3111, %v3199
        %3201 = vmatmul.bf16.gmra.mxu0 %v1106
        %v3202 = vpop.f32.mrf.mxu0
        %v3203 = vadd.f32 %v3114, %v3202
        %v3204 = vpop.f32.mrf.mxu0
        %v3205 = vadd.f32 %v3116, %v3204
        %3206 = vmatmul.bf16.gmra.mxu0 %v1110
        %v3207 = vpop.f32.mrf.mxu0
        %v3208 = vadd.f32 %v3119, %v3207
        %v3209 = vpop.f32.mrf.mxu0
        %v3210 = vadd.f32 %v3121, %v3209
        %3211 = vmatmul.bf16.gmra.mxu0 %v1114
        %v3212 = vpop.f32.mrf.mxu0
        %v3213 = vadd.f32 %v3124, %v3212
        %v3214 = vpop.f32.mrf.mxu0
        %v3215 = vadd.f32 %v3126, %v3214
        %3216 = vmatmul.bf16.gmra.mxu0 %v1118
        %v3217 = vpop.f32.mrf.mxu0
        %v3218 = vadd.f32 %v3129, %v3217
        %v3219 = vpop.f32.mrf.mxu0
        %v3220 = vadd.f32 %v3131, %v3219
        %3221 = vmatmul.bf16.gmra.mxu0 %v1122
        %v3222 = vpop.f32.mrf.mxu0
        %v3223 = vadd.f32 %v3134, %v3222
        %v3224 = vpop.f32.mrf.mxu0
        %v3225 = vadd.f32 %v3136, %v3224
        %3226 = vmatmul.bf16.gmra.mxu0 %v1126
        %v3227 = vpop.f32.mrf.mxu0
        %v3228 = vadd.f32 %v3139, %v3227
        %v3229 = vpop.f32.mrf.mxu0
        %v3230 = vadd.f32 %v3141, %v3229
        %3231 = vmatmul.bf16.gmra.mxu0 %v1130
        %v3232 = vpop.f32.mrf.mxu0
        %v3233 = vadd.f32 %v3144, %v3232
        %v3234 = vpop.f32.mrf.mxu0
        %v3235 = vadd.f32 %v3146, %v3234
        %3236 = vmatmul.bf16.gmra.mxu0 %v1134
        %v3237 = vpop.f32.mrf.mxu0
        %v3238 = vadd.f32 %v3149, %v3237
        %v3239 = vpop.f32.mrf.mxu0
        %v3240 = vadd.f32 %v3151, %v3239
        %3241 = vmatmul.bf16.gmra.mxu0 %v1138
        %v3242 = vpop.f32.mrf.mxu0
        %v3243 = vadd.f32 %v3154, %v3242
        %v3244 = vpop.f32.mrf.mxu0
        %v3245 = vadd.f32 %v3156, %v3244
        %3246 = vmatmul.bf16.gmra.mxu0 %v1142
        %v3247 = vpop.f32.mrf.mxu0
        %v3248 = vadd.f32 %v3159, %v3247
        %v3249 = vpop.f32.mrf.mxu0
        %v3250 = vadd.f32 %v3161, %v3249
        %3251 = vmatmul.bf16.gmra.mxu0 %v1146
        %v3252 = vpop.f32.mrf.mxu0
        %v3253 = vadd.f32 %v3164, %v3252
        %v3254 = vpop.f32.mrf.mxu0
        %v3255 = vadd.f32 %v3166, %v3254
        %3256 = vmatmul.bf16.gmra.mxu0 %v1150
        %v3257 = vpop.f32.mrf.mxu0
        %v3258 = vadd.f32 %v3169, %v3257
        %v3259 = vpop.f32.mrf.mxu0
        %v3260 = vadd.f32 %v3171, %v3259
        %3261 = vmatmul.bf16.gmra.mxu0 %v1154
        %v3262 = vpop.f32.mrf.mxu0
        %v3263 = vadd.f32 %v3174, %v3262
        %v3264 = vpop.f32.mrf.mxu0
        %v3265 = vadd.f32 %v3176, %v3264
        %3266 = vmatmul.bf16.gmra.mxu0 %v1158
        %v3267 = vpop.f32.mrf.mxu0
        %v3268 = vadd.f32 %v3179, %v3267
        %v3269 = vpop.f32.mrf.mxu0
        %v3270 = vadd.f32 %v3181, %v3269
        %3271 = vmatmul.bf16.gmra.mxu0 %v1162
        %v3272 = vpop.f32.mrf.mxu0
        %v3273 = vadd.f32 %v3184, %v3272
        %v3274 = vpop.f32.mrf.mxu0
        %v3275 = vadd.f32 %v3186, %v3274
        %3276 = vdwg.mxu0
        %3277 = vmatpush.bf16.msra.mxu0 %v1813
        %3278 = vmatpush.bf16.msra.mxu0 %v1809
        %3279 = vmatpush.bf16.msra.mxu0 %v1805
        %3280 = vmatpush.bf16.msra.mxu0 %v1801
        %3281 = vmatpush.bf16.msra.mxu0 %v1797
        %3282 = vmatpush.bf16.msra.mxu0 %v1793
        %3283 = vmatpush.bf16.msra.mxu0 %v1789
        %3284 = vmatpush.bf16.msra.mxu0 %v1785
        %3285 = vmatmul.bf16.gmra.mxu0 %v1103
        %v3286 = vpop.f32.mrf.mxu0
        %v3287 = vadd.f32 %v3198, %v3286
        %v3288 = vpop.f32.mrf.mxu0
        %v3289 = vadd.f32 %v3200, %v3288
        %3290 = vmatmul.bf16.gmra.mxu0 %v1107
        %v3291 = vpop.f32.mrf.mxu0
        %v3292 = vadd.f32 %v3203, %v3291
        %v3293 = vpop.f32.mrf.mxu0
        %v3294 = vadd.f32 %v3205, %v3293
        %3295 = vmatmul.bf16.gmra.mxu0 %v1111
        %v3296 = vpop.f32.mrf.mxu0
        %v3297 = vadd.f32 %v3208, %v3296
        %v3298 = vpop.f32.mrf.mxu0
        %v3299 = vadd.f32 %v3210, %v3298
        %3300 = vmatmul.bf16.gmra.mxu0 %v1115
        %v3301 = vpop.f32.mrf.mxu0
        %v3302 = vadd.f32 %v3213, %v3301
        %v3303 = vpop.f32.mrf.mxu0
        %v3304 = vadd.f32 %v3215, %v3303
        %3305 = vmatmul.bf16.gmra.mxu0 %v1119
        %v3306 = vpop.f32.mrf.mxu0
        %v3307 = vadd.f32 %v3218, %v3306
        %v3308 = vpop.f32.mrf.mxu0
        %v3309 = vadd.f32 %v3220, %v3308
        %3310 = vmatmul.bf16.gmra.mxu0 %v1123
        %v3311 = vpop.f32.mrf.mxu0
        %v3312 = vadd.f32 %v3223, %v3311
        %v3313 = vpop.f32.mrf.mxu0
        %v3314 = vadd.f32 %v3225, %v3313
        %3315 = vmatmul.bf16.gmra.mxu0 %v1127
        %v3316 = vpop.f32.mrf.mxu0
        %v3317 = vadd.f32 %v3228, %v3316
        %v3318 = vpop.f32.mrf.mxu0
        %v3319 = vadd.f32 %v3230, %v3318
        %3320 = vmatmul.bf16.gmra.mxu0 %v1131
        %v3321 = vpop.f32.mrf.mxu0
        %v3322 = vadd.f32 %v3233, %v3321
        %v3323 = vpop.f32.mrf.mxu0
        %v3324 = vadd.f32 %v3235, %v3323
        %3325 = vmatmul.bf16.gmra.mxu0 %v1135
        %v3326 = vpop.f32.mrf.mxu0
        %v3327 = vadd.f32 %v3238, %v3326
        %v3328 = vpop.f32.mrf.mxu0
        %v3329 = vadd.f32 %v3240, %v3328
        %3330 = vmatmul.bf16.gmra.mxu0 %v1139
        %v3331 = vpop.f32.mrf.mxu0
        %v3332 = vadd.f32 %v3243, %v3331
        %v3333 = vpop.f32.mrf.mxu0
        %v3334 = vadd.f32 %v3245, %v3333
        %3335 = vmatmul.bf16.gmra.mxu0 %v1143
        %v3336 = vpop.f32.mrf.mxu0
        %v3337 = vadd.f32 %v3248, %v3336
        %v3338 = vpop.f32.mrf.mxu0
        %v3339 = vadd.f32 %v3250, %v3338
        %3340 = vmatmul.bf16.gmra.mxu0 %v1147
        %v3341 = vpop.f32.mrf.mxu0
        %v3342 = vadd.f32 %v3253, %v3341
        %v3343 = vpop.f32.mrf.mxu0
        %v3344 = vadd.f32 %v3255, %v3343
        %3345 = vmatmul.bf16.gmra.mxu0 %v1151
        %v3346 = vpop.f32.mrf.mxu0
        %v3347 = vadd.f32 %v3258, %v3346
        %v3348 = vpop.f32.mrf.mxu0
        %v3349 = vadd.f32 %v3260, %v3348
        %3350 = vmatmul.bf16.gmra.mxu0 %v1155
        %v3351 = vpop.f32.mrf.mxu0
        %v3352 = vadd.f32 %v3263, %v3351
        %v3353 = vpop.f32.mrf.mxu0
        %v3354 = vadd.f32 %v3265, %v3353
        %3355 = vmatmul.bf16.gmra.mxu0 %v1159
        %v3356 = vpop.f32.mrf.mxu0
        %v3357 = vadd.f32 %v3268, %v3356
        %v3358 = vpop.f32.mrf.mxu0
        %v3359 = vadd.f32 %v3270, %v3358
        %3360 = vmatmul.bf16.gmra.mxu0 %v1163
        %v3361 = vpop.f32.mrf.mxu0
        %v3362 = vadd.f32 %v3273, %v3361
        %v3363 = vpop.f32.mrf.mxu0
        %v3364 = vadd.f32 %v3275, %v3363
        %3365 = vdwg.mxu0
        %v3366 = vmax.f32 %v2219, 0.0
        %v3367 = vmax.f32 %v2575, 0.0
        %v3368 = vmax.f32 %v2931, 0.0
        %v3369 = vmax.f32 %v3287, 0.0
        %v3370 = vmax.f32 %v2221, 0.0
        %v3371 = vmax.f32 %v2577, 0.0
        %v3372 = vmax.f32 %v2933, 0.0
        %v3373 = vmax.f32 %v3289, 0.0
        %v3374 = vmax.f32 %v2224, 0.0
        %v3375 = vmax.f32 %v2580, 0.0
        %v3376 = vmax.f32 %v2936, 0.0
        %v3377 = vmax.f32 %v3292, 0.0
        %v3378 = vmax.f32 %v2226, 0.0
        %v3379 = vmax.f32 %v2582, 0.0
        %v3380 = vmax.f32 %v2938, 0.0
        %v3381 = vmax.f32 %v3294, 0.0
        %v3382 = vmax.f32 %v2229, 0.0
        %v3383 = vmax.f32 %v2585, 0.0
        %v3384 = vmax.f32 %v2941, 0.0
        %v3385 = vmax.f32 %v3297, 0.0
        %v3386 = vmax.f32 %v2231, 0.0
        %v3387 = vmax.f32 %v2587, 0.0
        %v3388 = vmax.f32 %v2943, 0.0
        %v3389 = vmax.f32 %v3299, 0.0
        %v3390 = vmax.f32 %v2234, 0.0
        %v3391 = vmax.f32 %v2590, 0.0
        %v3392 = vmax.f32 %v2946, 0.0
        %v3393 = vmax.f32 %v3302, 0.0
        %v3394 = vmax.f32 %v2236, 0.0
        %v3395 = vmax.f32 %v2592, 0.0
        %v3396 = vmax.f32 %v2948, 0.0
        %v3397 = vmax.f32 %v3304, 0.0
        %v3398 = vmax.f32 %v2239, 0.0
        %v3399 = vmax.f32 %v2595, 0.0
        %v3400 = vmax.f32 %v2951, 0.0
        %v3401 = vmax.f32 %v3307, 0.0
        %v3402 = vmax.f32 %v2241, 0.0
        %v3403 = vmax.f32 %v2597, 0.0
        %v3404 = vmax.f32 %v2953, 0.0
        %v3405 = vmax.f32 %v3309, 0.0
        %v3406 = vmax.f32 %v2244, 0.0
        %v3407 = vmax.f32 %v2600, 0.0
        %v3408 = vmax.f32 %v2956, 0.0
        %v3409 = vmax.f32 %v3312, 0.0
        %v3410 = vmax.f32 %v2246, 0.0
        %v3411 = vmax.f32 %v2602, 0.0
        %v3412 = vmax.f32 %v2958, 0.0
        %v3413 = vmax.f32 %v3314, 0.0
        %v3414 = vmax.f32 %v2249, 0.0
        %v3415 = vmax.f32 %v2605, 0.0
        %v3416 = vmax.f32 %v2961, 0.0
        %v3417 = vmax.f32 %v3317, 0.0
        %v3418 = vmax.f32 %v2251, 0.0
        %v3419 = vmax.f32 %v2607, 0.0
        %v3420 = vmax.f32 %v2963, 0.0
        %v3421 = vmax.f32 %v3319, 0.0
        %v3422 = vmax.f32 %v2254, 0.0
        %v3423 = vmax.f32 %v2610, 0.0
        %v3424 = vmax.f32 %v2966, 0.0
        %v3425 = vmax.f32 %v3322, 0.0
        %v3426 = vmax.f32 %v2256, 0.0
        %v3427 = vmax.f32 %v2612, 0.0
        %v3428 = vmax.f32 %v2968, 0.0
        %v3429 = vmax.f32 %v3324, 0.0
        %v3430 = vmax.f32 %v2259, 0.0
        %v3431 = vmax.f32 %v2615, 0.0
        %v3432 = vmax.f32 %v2971, 0.0
        %v3433 = vmax.f32 %v3327, 0.0
        %v3434 = vmax.f32 %v2261, 0.0
        %v3435 = vmax.f32 %v2617, 0.0
        %v3436 = vmax.f32 %v2973, 0.0
        %v3437 = vmax.f32 %v3329, 0.0
        %v3438 = vmax.f32 %v2264, 0.0
        %v3439 = vmax.f32 %v2620, 0.0
        %v3440 = vmax.f32 %v2976, 0.0
        %v3441 = vmax.f32 %v3332, 0.0
        %v3442 = vmax.f32 %v2266, 0.0
        %v3443 = vmax.f32 %v2622, 0.0
        %v3444 = vmax.f32 %v2978, 0.0
        %v3445 = vmax.f32 %v3334, 0.0
        %v3446 = vmax.f32 %v2269, 0.0
        %v3447 = vmax.f32 %v2625, 0.0
        %v3448 = vmax.f32 %v2981, 0.0
        %v3449 = vmax.f32 %v3337, 0.0
        %v3450 = vmax.f32 %v2271, 0.0
        %v3451 = vmax.f32 %v2627, 0.0
        %v3452 = vmax.f32 %v2983, 0.0
        %v3453 = vmax.f32 %v3339, 0.0
        %v3454 = vmax.f32 %v2274, 0.0
        %v3455 = vmax.f32 %v2630, 0.0
        %v3456 = vmax.f32 %v2986, 0.0
        %v3457 = vmax.f32 %v3342, 0.0
        %v3458 = vmax.f32 %v2276, 0.0
        %v3459 = vmax.f32 %v2632, 0.0
        %v3460 = vmax.f32 %v2988, 0.0
        %v3461 = vmax.f32 %v3344, 0.0
        %v3462 = vmax.f32 %v2279, 0.0
        %v3463 = vmax.f32 %v2635, 0.0
        %v3464 = vmax.f32 %v2991, 0.0
        %v3465 = vmax.f32 %v3347, 0.0
        %v3466 = vmax.f32 %v2281, 0.0
        %v3467 = vmax.f32 %v2637, 0.0
        %v3468 = vmax.f32 %v2993, 0.0
        %v3469 = vmax.f32 %v3349, 0.0
        %v3470 = vmax.f32 %v2284, 0.0
        %v3471 = vmax.f32 %v2640, 0.0
        %v3472 = vmax.f32 %v2996, 0.0
        %v3473 = vmax.f32 %v3352, 0.0
        %v3474 = vmax.f32 %v2286, 0.0
        %v3475 = vmax.f32 %v2642, 0.0
        %v3476 = vmax.f32 %v2998, 0.0
        %v3477 = vmax.f32 %v3354, 0.0
        %v3478 = vmax.f32 %v2289, 0.0
        %v3479 = vmax.f32 %v2645, 0.0
        %v3480 = vmax.f32 %v3001, 0.0
        %v3481 = vmax.f32 %v3357, 0.0
        %v3482 = vmax.f32 %v2291, 0.0
        %v3483 = vmax.f32 %v2647, 0.0
        %v3484 = vmax.f32 %v3003, 0.0
        %v3485 = vmax.f32 %v3359, 0.0
        %v3486 = vmax.f32 %v2294, 0.0
        %v3487 = vmax.f32 %v2650, 0.0
        %v3488 = vmax.f32 %v3006, 0.0
        %v3489 = vmax.f32 %v3362, 0.0
        %v3490 = vmax.f32 %v2296, 0.0
        %v3491 = vmax.f32 %v2652, 0.0
        %v3492 = vmax.f32 %v3008, 0.0
        %v3493 = vmax.f32 %v3364, 0.0
        %v3494 = vpack.c.bf16 %v3370, %v3366
        %v3495 = vpack.c.bf16 %v3371, %v3367
        %v3496 = vpack.c.bf16 %v3372, %v3368
        %v3497 = vpack.c.bf16 %v3373, %v3369
        %v3498 = vpack.c.bf16 %v3378, %v3374
        %v3499 = vpack.c.bf16 %v3379, %v3375
        %v3500 = vpack.c.bf16 %v3380, %v3376
        %v3501 = vpack.c.bf16 %v3381, %v3377
        %v3502 = vpack.c.bf16 %v3386, %v3382
        %v3503 = vpack.c.bf16 %v3387, %v3383
        %v3504 = vpack.c.bf16 %v3388, %v3384
        %v3505 = vpack.c.bf16 %v3389, %v3385
        %v3506 = vpack.c.bf16 %v3394, %v3390
        %v3507 = vpack.c.bf16 %v3395, %v3391
        %v3508 = vpack.c.bf16 %v3396, %v3392
        %v3509 = vpack.c.bf16 %v3397, %v3393
        %v3510 = vpack.c.bf16 %v3402, %v3398
        %v3511 = vpack.c.bf16 %v3403, %v3399
        %v3512 = vpack.c.bf16 %v3404, %v3400
        %v3513 = vpack.c.bf16 %v3405, %v3401
        %v3514 = vpack.c.bf16 %v3410, %v3406
        %v3515 = vpack.c.bf16 %v3411, %v3407
        %v3516 = vpack.c.bf16 %v3412, %v3408
        %v3517 = vpack.c.bf16 %v3413, %v3409
        %v3518 = vpack.c.bf16 %v3418, %v3414
        %v3519 = vpack.c.bf16 %v3419, %v3415
        %v3520 = vpack.c.bf16 %v3420, %v3416
        %v3521 = vpack.c.bf16 %v3421, %v3417
        %v3522 = vpack.c.bf16 %v3426, %v3422
        %v3523 = vpack.c.bf16 %v3427, %v3423
        %v3524 = vpack.c.bf16 %v3428, %v3424
        %v3525 = vpack.c.bf16 %v3429, %v3425
        %v3526 = vpack.c.bf16 %v3434, %v3430
        %v3527 = vpack.c.bf16 %v3435, %v3431
        %v3528 = vpack.c.bf16 %v3436, %v3432
        %v3529 = vpack.c.bf16 %v3437, %v3433
        %v3530 = vpack.c.bf16 %v3442, %v3438
        %v3531 = vpack.c.bf16 %v3443, %v3439
        %v3532 = vpack.c.bf16 %v3444, %v3440
        %v3533 = vpack.c.bf16 %v3445, %v3441
        %v3534 = vpack.c.bf16 %v3450, %v3446
        %v3535 = vpack.c.bf16 %v3451, %v3447
        %v3536 = vpack.c.bf16 %v3452, %v3448
        %v3537 = vpack.c.bf16 %v3453, %v3449
        %v3538 = vpack.c.bf16 %v3458, %v3454
        %v3539 = vpack.c.bf16 %v3459, %v3455
        %v3540 = vpack.c.bf16 %v3460, %v3456
        %v3541 = vpack.c.bf16 %v3461, %v3457
        %v3542 = vpack.c.bf16 %v3466, %v3462
        %v3543 = vpack.c.bf16 %v3467, %v3463
        %v3544 = vpack.c.bf16 %v3468, %v3464
        %v3545 = vpack.c.bf16 %v3469, %v3465
        %v3546 = vpack.c.bf16 %v3474, %v3470
        %v3547 = vpack.c.bf16 %v3475, %v3471
        %v3548 = vpack.c.bf16 %v3476, %v3472
        %v3549 = vpack.c.bf16 %v3477, %v3473
        %v3550 = vpack.c.bf16 %v3482, %v3478
        %v3551 = vpack.c.bf16 %v3483, %v3479
        %v3552 = vpack.c.bf16 %v3484, %v3480
        %v3553 = vpack.c.bf16 %v3485, %v3481
        %v3554 = vpack.c.bf16 %v3490, %v3486
        %v3555 = vpack.c.bf16 %v3491, %v3487
        %v3556 = vpack.c.bf16 %v3492, %v3488
        %v3557 = vpack.c.bf16 %v3493, %v3489
        %v3558 = vld [vmem:[#allocation11] sm:$0xf]
        %v3559 = vld [vmem:[#allocation11 + $0x4] sm:$0xf]
        %v3560 = vld [vmem:[#allocation11 + $0x8] sm:$0xf]
        %v3561 = vld [vmem:[#allocation11 + $0xc] sm:$0xf]
        %v3562 = vld [vmem:[#allocation11 + $0x10] sm:$0xf]
        %v3563 = vld [vmem:[#allocation11 + $0x14] sm:$0xf]
        %v3564 = vld [vmem:[#allocation11 + $0x18] sm:$0xf]
        %v3565 = vld [vmem:[#allocation11 + $0x1c] sm:$0xf]
        %v3566 = vld [vmem:[#allocation11 + $0x20] sm:$0xf]
        %v3567 = vld [vmem:[#allocation11 + $0x24] sm:$0xf]
        %v3568 = vld [vmem:[#allocation11 + $0x28] sm:$0xf]
        %v3569 = vld [vmem:[#allocation11 + $0x2c] sm:$0xf]
        %v3570 = vld [vmem:[#allocation11 + $0x30] sm:$0xf]
        %v3571 = vld [vmem:[#allocation11 + $0x34] sm:$0xf]
        %v3572 = vld [vmem:[#allocation11 + $0x38] sm:$0xf]
        %v3573 = vld [vmem:[#allocation11 + $0x3c] sm:$0xf]
        %v3574 = vld [vmem:[#allocation11 + $0x40] sm:$0xf]
        %v3575 = vld [vmem:[#allocation11 + $0x44] sm:$0xf]
        %v3576 = vld [vmem:[#allocation11 + $0x48] sm:$0xf]
        %v3577 = vld [vmem:[#allocation11 + $0x4c] sm:$0xf]
        %v3578 = vld [vmem:[#allocation11 + $0x50] sm:$0xf]
        %v3579 = vld [vmem:[#allocation11 + $0x54] sm:$0xf]
        %v3580 = vld [vmem:[#allocation11 + $0x58] sm:$0xf]
        %v3581 = vld [vmem:[#allocation11 + $0x5c] sm:$0xf]
        %v3582 = vld [vmem:[#allocation11 + $0x60] sm:$0xf]
        %v3583 = vld [vmem:[#allocation11 + $0x64] sm:$0xf]
        %v3584 = vld [vmem:[#allocation11 + $0x68] sm:$0xf]
        %v3585 = vld [vmem:[#allocation11 + $0x6c] sm:$0xf]
        %v3586 = vld [vmem:[#allocation11 + $0x70] sm:$0xf]
        %v3587 = vld [vmem:[#allocation11 + $0x74] sm:$0xf]
        %v3588 = vld [vmem:[#allocation11 + $0x78] sm:$0xf]
        %v3589 = vld [vmem:[#allocation11 + $0x7c] sm:$0xf]
        %v3590 = vld [vmem:[#allocation11 + $0x80] sm:$0xf]
        %v3591 = vld [vmem:[#allocation11 + $0x84] sm:$0xf]
        %v3592 = vld [vmem:[#allocation11 + $0x88] sm:$0xf]
        %v3593 = vld [vmem:[#allocation11 + $0x8c] sm:$0xf]
        %v3594 = vld [vmem:[#allocation11 + $0x90] sm:$0xf]
        %v3595 = vld [vmem:[#allocation11 + $0x94] sm:$0xf]
        %v3596 = vld [vmem:[#allocation11 + $0x98] sm:$0xf]
        %v3597 = vld [vmem:[#allocation11 + $0x9c] sm:$0xf]
        %v3598 = vld [vmem:[#allocation11 + $0xa0] sm:$0xf]
        %v3599 = vld [vmem:[#allocation11 + $0xa4] sm:$0xf]
        %v3600 = vld [vmem:[#allocation11 + $0xa8] sm:$0xf]
        %v3601 = vld [vmem:[#allocation11 + $0xac] sm:$0xf]
        %v3602 = vld [vmem:[#allocation11 + $0xb0] sm:$0xf]
        %v3603 = vld [vmem:[#allocation11 + $0xb4] sm:$0xf]
        %v3604 = vld [vmem:[#allocation11 + $0xb8] sm:$0xf]
        %v3605 = vld [vmem:[#allocation11 + $0xbc] sm:$0xf]
        %v3606 = vld [vmem:[#allocation11 + $0xc0] sm:$0xf]
        %v3607 = vld [vmem:[#allocation11 + $0xc4] sm:$0xf]
        %v3608 = vld [vmem:[#allocation11 + $0xc8] sm:$0xf]
        %v3609 = vld [vmem:[#allocation11 + $0xcc] sm:$0xf]
        %v3610 = vld [vmem:[#allocation11 + $0xd0] sm:$0xf]
        %v3611 = vld [vmem:[#allocation11 + $0xd4] sm:$0xf]
        %v3612 = vld [vmem:[#allocation11 + $0xd8] sm:$0xf]
        %v3613 = vld [vmem:[#allocation11 + $0xdc] sm:$0xf]
        %v3614 = vld [vmem:[#allocation11 + $0xe0] sm:$0xf]
        %v3615 = vld [vmem:[#allocation11 + $0xe4] sm:$0xf]
        %v3616 = vld [vmem:[#allocation11 + $0xe8] sm:$0xf]
        %v3617 = vld [vmem:[#allocation11 + $0xec] sm:$0xf]
        %v3618 = vld [vmem:[#allocation11 + $0xf0] sm:$0xf]
        %v3619 = vld [vmem:[#allocation11 + $0xf4] sm:$0xf]
        %v3620 = vld [vmem:[#allocation11 + $0xf8] sm:$0xf]
        %v3621 = vld [vmem:[#allocation11 + $0xfc] sm:$0xf]
        %s3622 = sld [smem:[#allocation2]]
        %v3623 = vstv %s3622
        %v3688 = vunpack.c.l.b16 %v3558
        %v3689 = vunpack.c.l.b16 %v3559
        %v3690 = vunpack.c.l.b16 %v3560
        %v3691 = vunpack.c.l.b16 %v3561
        %v3692 = vunpack.c.l.b16 %v3562
        %v3693 = vunpack.c.l.b16 %v3563
        %v3694 = vunpack.c.l.b16 %v3564
        %v3695 = vunpack.c.l.b16 %v3565
        %v3696 = vunpack.c.l.b16 %v3566
        %v3697 = vunpack.c.l.b16 %v3567
        %v3698 = vunpack.c.l.b16 %v3568
        %v3699 = vunpack.c.l.b16 %v3569
        %v3700 = vunpack.c.l.b16 %v3570
        %v3701 = vunpack.c.l.b16 %v3571
        %v3702 = vunpack.c.l.b16 %v3572
        %v3703 = vunpack.c.l.b16 %v3573
        %v3704 = vunpack.c.l.b16 %v3574
        %v3705 = vunpack.c.l.b16 %v3575
        %v3706 = vunpack.c.l.b16 %v3576
        %v3707 = vunpack.c.l.b16 %v3577
        %v3708 = vunpack.c.l.b16 %v3578
        %v3709 = vunpack.c.l.b16 %v3579
        %v3710 = vunpack.c.l.b16 %v3580
        %v3711 = vunpack.c.l.b16 %v3581
        %v3712 = vunpack.c.l.b16 %v3582
        %v3713 = vunpack.c.l.b16 %v3583
        %v3714 = vunpack.c.l.b16 %v3584
        %v3715 = vunpack.c.l.b16 %v3585
        %v3716 = vunpack.c.l.b16 %v3586
        %v3717 = vunpack.c.l.b16 %v3587
        %v3718 = vunpack.c.l.b16 %v3588
        %v3719 = vunpack.c.l.b16 %v3589
        %v3720 = vunpack.c.l.b16 %v3590
        %v3721 = vunpack.c.l.b16 %v3591
        %v3722 = vunpack.c.l.b16 %v3592
        %v3723 = vunpack.c.l.b16 %v3593
        %v3724 = vunpack.c.l.b16 %v3594
        %v3725 = vunpack.c.l.b16 %v3595
        %v3726 = vunpack.c.l.b16 %v3596
        %v3727 = vunpack.c.l.b16 %v3597
        %v3728 = vunpack.c.l.b16 %v3598
        %v3729 = vunpack.c.l.b16 %v3599
        %v3730 = vunpack.c.l.b16 %v3600
        %v3731 = vunpack.c.l.b16 %v3601
        %v3732 = vunpack.c.l.b16 %v3602
        %v3733 = vunpack.c.l.b16 %v3603
        %v3734 = vunpack.c.l.b16 %v3604
        %v3735 = vunpack.c.l.b16 %v3605
        %v3736 = vunpack.c.l.b16 %v3606
        %v3737 = vunpack.c.l.b16 %v3607
        %v3738 = vunpack.c.l.b16 %v3608
        %v3739 = vunpack.c.l.b16 %v3609
        %v3740 = vunpack.c.l.b16 %v3610
        %v3741 = vunpack.c.l.b16 %v3611
        %v3742 = vunpack.c.l.b16 %v3612
        %v3743 = vunpack.c.l.b16 %v3613
        %v3744 = vunpack.c.l.b16 %v3614
        %v3745 = vunpack.c.l.b16 %v3615
        %v3746 = vunpack.c.l.b16 %v3616
        %v3747 = vunpack.c.l.b16 %v3617
        %v3748 = vunpack.c.l.b16 %v3618
        %v3749 = vunpack.c.l.b16 %v3619
        %v3750 = vunpack.c.l.b16 %v3620
        %v3751 = vunpack.c.l.b16 %v3621
        %v3752 = vpack.c.b16 %v3689, %v3688
        %v3753 = vpack.c.b16 %v3691, %v3690
        %v3754 = vpack.c.b16 %v3693, %v3692
        %v3755 = vpack.c.b16 %v3695, %v3694
        %v3756 = vpack.c.b16 %v3697, %v3696
        %v3757 = vpack.c.b16 %v3699, %v3698
        %v3758 = vpack.c.b16 %v3701, %v3700
        %v3759 = vpack.c.b16 %v3703, %v3702
        %v3760 = vpack.c.b16 %v3705, %v3704
        %v3761 = vpack.c.b16 %v3707, %v3706
        %v3762 = vpack.c.b16 %v3709, %v3708
        %v3763 = vpack.c.b16 %v3711, %v3710
        %v3764 = vpack.c.b16 %v3713, %v3712
        %v3765 = vpack.c.b16 %v3715, %v3714
        %v3766 = vpack.c.b16 %v3717, %v3716
        %v3767 = vpack.c.b16 %v3719, %v3718
        %v3768 = vpack.c.b16 %v3721, %v3720
        %v3769 = vpack.c.b16 %v3723, %v3722
        %v3770 = vpack.c.b16 %v3725, %v3724
        %v3771 = vpack.c.b16 %v3727, %v3726
        %v3772 = vpack.c.b16 %v3729, %v3728
        %v3773 = vpack.c.b16 %v3731, %v3730
        %v3774 = vpack.c.b16 %v3733, %v3732
        %v3775 = vpack.c.b16 %v3735, %v3734
        %v3776 = vpack.c.b16 %v3737, %v3736
        %v3777 = vpack.c.b16 %v3739, %v3738
        %v3778 = vpack.c.b16 %v3741, %v3740
        %v3779 = vpack.c.b16 %v3743, %v3742
        %v3780 = vpack.c.b16 %v3745, %v3744
        %v3781 = vpack.c.b16 %v3747, %v3746
        %v3782 = vpack.c.b16 %v3749, %v3748
        %v3783 = vpack.c.b16 %v3751, %v3750
        %3816 = vmatpush.bf16.msra.mxu0 %v3759
        %3817 = vmatpush.bf16.msra.mxu0 %v3758
        %3818 = vmatpush.bf16.msra.mxu0 %v3757
        %3819 = vmatpush.bf16.msra.mxu0 %v3756
        %3820 = vmatpush.bf16.msra.mxu0 %v3755
        %3821 = vmatpush.bf16.msra.mxu0 %v3754
        %3822 = vmatpush.bf16.msra.mxu0 %v3753
        %3823 = vmatpush.bf16.msra.mxu0 %v3752
        %3824 = vmatmul.bf16.gmra.mxu0 %v3494
        %v3825 = vpop.f32.mrf.mxu0
        %v3826 = vadd.f32 %v3623, %v3825
        %v3827 = vpop.f32.mrf.mxu0
        %v3828 = vadd.f32 %v3623, %v3827
        %3829 = vmatmul.bf16.gmra.mxu0 %v3498
        %v3830 = vpop.f32.mrf.mxu0
        %v3831 = vadd.f32 %v3623, %v3830
        %v3832 = vpop.f32.mrf.mxu0
        %v3833 = vadd.f32 %v3623, %v3832
        %3834 = vmatmul.bf16.gmra.mxu0 %v3502
        %v3835 = vpop.f32.mrf.mxu0
        %v3836 = vadd.f32 %v3623, %v3835
        %v3837 = vpop.f32.mrf.mxu0
        %v3838 = vadd.f32 %v3623, %v3837
        %3839 = vmatmul.bf16.gmra.mxu0 %v3506
        %v3840 = vpop.f32.mrf.mxu0
        %v3841 = vadd.f32 %v3623, %v3840
        %v3842 = vpop.f32.mrf.mxu0
        %v3843 = vadd.f32 %v3623, %v3842
        %3844 = vmatmul.bf16.gmra.mxu0 %v3510
        %v3845 = vpop.f32.mrf.mxu0
        %v3846 = vadd.f32 %v3623, %v3845
        %v3847 = vpop.f32.mrf.mxu0
        %v3848 = vadd.f32 %v3623, %v3847
        %3849 = vmatmul.bf16.gmra.mxu0 %v3514
        %v3850 = vpop.f32.mrf.mxu0
        %v3851 = vadd.f32 %v3623, %v3850
        %v3852 = vpop.f32.mrf.mxu0
        %v3853 = vadd.f32 %v3623, %v3852
        %3854 = vmatmul.bf16.gmra.mxu0 %v3518
        %v3855 = vpop.f32.mrf.mxu0
        %v3856 = vadd.f32 %v3623, %v3855
        %v3857 = vpop.f32.mrf.mxu0
        %v3858 = vadd.f32 %v3623, %v3857
        %3859 = vmatmul.bf16.gmra.mxu0 %v3522
        %v3860 = vpop.f32.mrf.mxu0
        %v3861 = vadd.f32 %v3623, %v3860
        %v3862 = vpop.f32.mrf.mxu0
        %v3863 = vadd.f32 %v3623, %v3862
        %3864 = vmatmul.bf16.gmra.mxu0 %v3526
        %v3865 = vpop.f32.mrf.mxu0
        %v3866 = vadd.f32 %v3623, %v3865
        %v3867 = vpop.f32.mrf.mxu0
        %v3868 = vadd.f32 %v3623, %v3867
        %3869 = vmatmul.bf16.gmra.mxu0 %v3530
        %v3870 = vpop.f32.mrf.mxu0
        %v3871 = vadd.f32 %v3623, %v3870
        %v3872 = vpop.f32.mrf.mxu0
        %v3873 = vadd.f32 %v3623, %v3872
        %3874 = vmatmul.bf16.gmra.mxu0 %v3534
        %v3875 = vpop.f32.mrf.mxu0
        %v3876 = vadd.f32 %v3623, %v3875
        %v3877 = vpop.f32.mrf.mxu0
        %v3878 = vadd.f32 %v3623, %v3877
        %3879 = vmatmul.bf16.gmra.mxu0 %v3538
        %v3880 = vpop.f32.mrf.mxu0
        %v3881 = vadd.f32 %v3623, %v3880
        %v3882 = vpop.f32.mrf.mxu0
        %v3883 = vadd.f32 %v3623, %v3882
        %3884 = vmatmul.bf16.gmra.mxu0 %v3542
        %v3885 = vpop.f32.mrf.mxu0
        %v3886 = vadd.f32 %v3623, %v3885
        %v3887 = vpop.f32.mrf.mxu0
        %v3888 = vadd.f32 %v3623, %v3887
        %3889 = vmatmul.bf16.gmra.mxu0 %v3546
        %v3890 = vpop.f32.mrf.mxu0
        %v3891 = vadd.f32 %v3623, %v3890
        %v3892 = vpop.f32.mrf.mxu0
        %v3893 = vadd.f32 %v3623, %v3892
        %3894 = vmatmul.bf16.gmra.mxu0 %v3550
        %v3895 = vpop.f32.mrf.mxu0
        %v3896 = vadd.f32 %v3623, %v3895
        %v3897 = vpop.f32.mrf.mxu0
        %v3898 = vadd.f32 %v3623, %v3897
        %3899 = vmatmul.bf16.gmra.mxu0 %v3554
        %v3900 = vpop.f32.mrf.mxu0
        %v3901 = vadd.f32 %v3623, %v3900
        %v3902 = vpop.f32.mrf.mxu0
        %v3903 = vadd.f32 %v3623, %v3902
        %3904 = vdwg.mxu0
        %3905 = vmatpush.bf16.msra.mxu0 %v3767
        %3906 = vmatpush.bf16.msra.mxu0 %v3766
        %3907 = vmatpush.bf16.msra.mxu0 %v3765
        %3908 = vmatpush.bf16.msra.mxu0 %v3764
        %3909 = vmatpush.bf16.msra.mxu0 %v3763
        %3910 = vmatpush.bf16.msra.mxu0 %v3762
        %3911 = vmatpush.bf16.msra.mxu0 %v3761
        %3912 = vmatpush.bf16.msra.mxu0 %v3760
        %3913 = vmatmul.bf16.gmra.mxu0 %v3495
        %v3914 = vpop.f32.mrf.mxu0
        %v3915 = vadd.f32 %v3826, %v3914
        %v3916 = vpop.f32.mrf.mxu0
        %v3917 = vadd.f32 %v3828, %v3916
        %3918 = vmatmul.bf16.gmra.mxu0 %v3499
        %v3919 = vpop.f32.mrf.mxu0
        %v3920 = vadd.f32 %v3831, %v3919
        %v3921 = vpop.f32.mrf.mxu0
        %v3922 = vadd.f32 %v3833, %v3921
        %3923 = vmatmul.bf16.gmra.mxu0 %v3503
        %v3924 = vpop.f32.mrf.mxu0
        %v3925 = vadd.f32 %v3836, %v3924
        %v3926 = vpop.f32.mrf.mxu0
        %v3927 = vadd.f32 %v3838, %v3926
        %3928 = vmatmul.bf16.gmra.mxu0 %v3507
        %v3929 = vpop.f32.mrf.mxu0
        %v3930 = vadd.f32 %v3841, %v3929
        %v3931 = vpop.f32.mrf.mxu0
        %v3932 = vadd.f32 %v3843, %v3931
        %3933 = vmatmul.bf16.gmra.mxu0 %v3511
        %v3934 = vpop.f32.mrf.mxu0
        %v3935 = vadd.f32 %v3846, %v3934
        %v3936 = vpop.f32.mrf.mxu0
        %v3937 = vadd.f32 %v3848, %v3936
        %3938 = vmatmul.bf16.gmra.mxu0 %v3515
        %v3939 = vpop.f32.mrf.mxu0
        %v3940 = vadd.f32 %v3851, %v3939
        %v3941 = vpop.f32.mrf.mxu0
        %v3942 = vadd.f32 %v3853, %v3941
        %3943 = vmatmul.bf16.gmra.mxu0 %v3519
        %v3944 = vpop.f32.mrf.mxu0
        %v3945 = vadd.f32 %v3856, %v3944
        %v3946 = vpop.f32.mrf.mxu0
        %v3947 = vadd.f32 %v3858, %v3946
        %3948 = vmatmul.bf16.gmra.mxu0 %v3523
        %v3949 = vpop.f32.mrf.mxu0
        %v3950 = vadd.f32 %v3861, %v3949
        %v3951 = vpop.f32.mrf.mxu0
        %v3952 = vadd.f32 %v3863, %v3951
        %3953 = vmatmul.bf16.gmra.mxu0 %v3527
        %v3954 = vpop.f32.mrf.mxu0
        %v3955 = vadd.f32 %v3866, %v3954
        %v3956 = vpop.f32.mrf.mxu0
        %v3957 = vadd.f32 %v3868, %v3956
        %3958 = vmatmul.bf16.gmra.mxu0 %v3531
        %v3959 = vpop.f32.mrf.mxu0
        %v3960 = vadd.f32 %v3871, %v3959
        %v3961 = vpop.f32.mrf.mxu0
        %v3962 = vadd.f32 %v3873, %v3961
        %3963 = vmatmul.bf16.gmra.mxu0 %v3535
        %v3964 = vpop.f32.mrf.mxu0
        %v3965 = vadd.f32 %v3876, %v3964
        %v3966 = vpop.f32.mrf.mxu0
        %v3967 = vadd.f32 %v3878, %v3966
        %3968 = vmatmul.bf16.gmra.mxu0 %v3539
        %v3969 = vpop.f32.mrf.mxu0
        %v3970 = vadd.f32 %v3881, %v3969
        %v3971 = vpop.f32.mrf.mxu0
        %v3972 = vadd.f32 %v3883, %v3971
        %3973 = vmatmul.bf16.gmra.mxu0 %v3543
        %v3974 = vpop.f32.mrf.mxu0
        %v3975 = vadd.f32 %v3886, %v3974
        %v3976 = vpop.f32.mrf.mxu0
        %v3977 = vadd.f32 %v3888, %v3976
        %3978 = vmatmul.bf16.gmra.mxu0 %v3547
        %v3979 = vpop.f32.mrf.mxu0
        %v3980 = vadd.f32 %v3891, %v3979
        %v3981 = vpop.f32.mrf.mxu0
        %v3982 = vadd.f32 %v3893, %v3981
        %3983 = vmatmul.bf16.gmra.mxu0 %v3551
        %v3984 = vpop.f32.mrf.mxu0
        %v3985 = vadd.f32 %v3896, %v3984
        %v3986 = vpop.f32.mrf.mxu0
        %v3987 = vadd.f32 %v3898, %v3986
        %3988 = vmatmul.bf16.gmra.mxu0 %v3555
        %v3989 = vpop.f32.mrf.mxu0
        %v3990 = vadd.f32 %v3901, %v3989
        %v3991 = vpop.f32.mrf.mxu0
        %v3992 = vadd.f32 %v3903, %v3991
        %3993 = vdwg.mxu0
        %3994 = vmatpush.bf16.msra.mxu0 %v3775
        %3995 = vmatpush.bf16.msra.mxu0 %v3774
        %3996 = vmatpush.bf16.msra.mxu0 %v3773
        %3997 = vmatpush.bf16.msra.mxu0 %v3772
        %3998 = vmatpush.bf16.msra.mxu0 %v3771
        %3999 = vmatpush.bf16.msra.mxu0 %v3770
        %4000 = vmatpush.bf16.msra.mxu0 %v3769
        %4001 = vmatpush.bf16.msra.mxu0 %v3768
        %4002 = vmatmul.bf16.gmra.mxu0 %v3496
        %v4003 = vpop.f32.mrf.mxu0
        %v4004 = vadd.f32 %v3915, %v4003
        %v4005 = vpop.f32.mrf.mxu0
        %v4006 = vadd.f32 %v3917, %v4005
        %4007 = vmatmul.bf16.gmra.mxu0 %v3500
        %v4008 = vpop.f32.mrf.mxu0
        %v4009 = vadd.f32 %v3920, %v4008
        %v4010 = vpop.f32.mrf.mxu0
        %v4011 = vadd.f32 %v3922, %v4010
        %4012 = vmatmul.bf16.gmra.mxu0 %v3504
        %v4013 = vpop.f32.mrf.mxu0
        %v4014 = vadd.f32 %v3925, %v4013
        %v4015 = vpop.f32.mrf.mxu0
        %v4016 = vadd.f32 %v3927, %v4015
        %4017 = vmatmul.bf16.gmra.mxu0 %v3508
        %v4018 = vpop.f32.mrf.mxu0
        %v4019 = vadd.f32 %v3930, %v4018
        %v4020 = vpop.f32.mrf.mxu0
        %v4021 = vadd.f32 %v3932, %v4020
        %4022 = vmatmul.bf16.gmra.mxu0 %v3512
        %v4023 = vpop.f32.mrf.mxu0
        %v4024 = vadd.f32 %v3935, %v4023
        %v4025 = vpop.f32.mrf.mxu0
        %v4026 = vadd.f32 %v3937, %v4025
        %4027 = vmatmul.bf16.gmra.mxu0 %v3516
        %v4028 = vpop.f32.mrf.mxu0
        %v4029 = vadd.f32 %v3940, %v4028
        %v4030 = vpop.f32.mrf.mxu0
        %v4031 = vadd.f32 %v3942, %v4030
        %4032 = vmatmul.bf16.gmra.mxu0 %v3520
        %v4033 = vpop.f32.mrf.mxu0
        %v4034 = vadd.f32 %v3945, %v4033
        %v4035 = vpop.f32.mrf.mxu0
        %v4036 = vadd.f32 %v3947, %v4035
        %4037 = vmatmul.bf16.gmra.mxu0 %v3524
        %v4038 = vpop.f32.mrf.mxu0
        %v4039 = vadd.f32 %v3950, %v4038
        %v4040 = vpop.f32.mrf.mxu0
        %v4041 = vadd.f32 %v3952, %v4040
        %4042 = vmatmul.bf16.gmra.mxu0 %v3528
        %v4043 = vpop.f32.mrf.mxu0
        %v4044 = vadd.f32 %v3955, %v4043
        %v4045 = vpop.f32.mrf.mxu0
        %v4046 = vadd.f32 %v3957, %v4045
        %4047 = vmatmul.bf16.gmra.mxu0 %v3532
        %v4048 = vpop.f32.mrf.mxu0
        %v4049 = vadd.f32 %v3960, %v4048
        %v4050 = vpop.f32.mrf.mxu0
        %v4051 = vadd.f32 %v3962, %v4050
        %4052 = vmatmul.bf16.gmra.mxu0 %v3536
        %v4053 = vpop.f32.mrf.mxu0
        %v4054 = vadd.f32 %v3965, %v4053
        %v4055 = vpop.f32.mrf.mxu0
        %v4056 = vadd.f32 %v3967, %v4055
        %4057 = vmatmul.bf16.gmra.mxu0 %v3540
        %v4058 = vpop.f32.mrf.mxu0
        %v4059 = vadd.f32 %v3970, %v4058
        %v4060 = vpop.f32.mrf.mxu0
        %v4061 = vadd.f32 %v3972, %v4060
        %4062 = vmatmul.bf16.gmra.mxu0 %v3544
        %v4063 = vpop.f32.mrf.mxu0
        %v4064 = vadd.f32 %v3975, %v4063
        %v4065 = vpop.f32.mrf.mxu0
        %v4066 = vadd.f32 %v3977, %v4065
        %4067 = vmatmul.bf16.gmra.mxu0 %v3548
        %v4068 = vpop.f32.mrf.mxu0
        %v4069 = vadd.f32 %v3980, %v4068
        %v4070 = vpop.f32.mrf.mxu0
        %v4071 = vadd.f32 %v3982, %v4070
        %4072 = vmatmul.bf16.gmra.mxu0 %v3552
        %v4073 = vpop.f32.mrf.mxu0
        %v4074 = vadd.f32 %v3985, %v4073
        %v4075 = vpop.f32.mrf.mxu0
        %v4076 = vadd.f32 %v3987, %v4075
        %4077 = vmatmul.bf16.gmra.mxu0 %v3556
        %v4078 = vpop.f32.mrf.mxu0
        %v4079 = vadd.f32 %v3990, %v4078
        %v4080 = vpop.f32.mrf.mxu0
        %v4081 = vadd.f32 %v3992, %v4080
        %4082 = vdwg.mxu0
        %4083 = vmatpush.bf16.msra.mxu0 %v3783
        %4084 = vmatpush.bf16.msra.mxu0 %v3782
        %4085 = vmatpush.bf16.msra.mxu0 %v3781
        %4086 = vmatpush.bf16.msra.mxu0 %v3780
        %4087 = vmatpush.bf16.msra.mxu0 %v3779
        %4088 = vmatpush.bf16.msra.mxu0 %v3778
        %4089 = vmatpush.bf16.msra.mxu0 %v3777
        %4090 = vmatpush.bf16.msra.mxu0 %v3776
        %4091 = vmatmul.bf16.gmra.mxu0 %v3497
        %v4092 = vpop.f32.mrf.mxu0
        %v4093 = vadd.f32 %v4004, %v4092
        %v4094 = vpop.f32.mrf.mxu0
        %v4095 = vadd.f32 %v4006, %v4094
        %4096 = vmatmul.bf16.gmra.mxu0 %v3501
        %v4097 = vpop.f32.mrf.mxu0
        %v4098 = vadd.f32 %v4009, %v4097
        %v4099 = vpop.f32.mrf.mxu0
        %v4100 = vadd.f32 %v4011, %v4099
        %4101 = vmatmul.bf16.gmra.mxu0 %v3505
        %v4102 = vpop.f32.mrf.mxu0
        %v4103 = vadd.f32 %v4014, %v4102
        %v4104 = vpop.f32.mrf.mxu0
        %v4105 = vadd.f32 %v4016, %v4104
        %4106 = vmatmul.bf16.gmra.mxu0 %v3509
        %v4107 = vpop.f32.mrf.mxu0
        %v4108 = vadd.f32 %v4019, %v4107
        %v4109 = vpop.f32.mrf.mxu0
        %v4110 = vadd.f32 %v4021, %v4109
        %4111 = vmatmul.bf16.gmra.mxu0 %v3513
        %v4112 = vpop.f32.mrf.mxu0
        %v4113 = vadd.f32 %v4024, %v4112
        %v4114 = vpop.f32.mrf.mxu0
        %v4115 = vadd.f32 %v4026, %v4114
        %4116 = vmatmul.bf16.gmra.mxu0 %v3517
        %v4117 = vpop.f32.mrf.mxu0
        %v4118 = vadd.f32 %v4029, %v4117
        %v4119 = vpop.f32.mrf.mxu0
        %v4120 = vadd.f32 %v4031, %v4119
        %4121 = vmatmul.bf16.gmra.mxu0 %v3521
        %v4122 = vpop.f32.mrf.mxu0
        %v4123 = vadd.f32 %v4034, %v4122
        %v4124 = vpop.f32.mrf.mxu0
        %v4125 = vadd.f32 %v4036, %v4124
        %4126 = vmatmul.bf16.gmra.mxu0 %v3525
        %v4127 = vpop.f32.mrf.mxu0
        %v4128 = vadd.f32 %v4039, %v4127
        %v4129 = vpop.f32.mrf.mxu0
        %v4130 = vadd.f32 %v4041, %v4129
        %4131 = vmatmul.bf16.gmra.mxu0 %v3529
        %v4132 = vpop.f32.mrf.mxu0
        %v4133 = vadd.f32 %v4044, %v4132
        %v4134 = vpop.f32.mrf.mxu0
        %v4135 = vadd.f32 %v4046, %v4134
        %4136 = vmatmul.bf16.gmra.mxu0 %v3533
        %v4137 = vpop.f32.mrf.mxu0
        %v4138 = vadd.f32 %v4049, %v4137
        %v4139 = vpop.f32.mrf.mxu0
        %v4140 = vadd.f32 %v4051, %v4139
        %4141 = vmatmul.bf16.gmra.mxu0 %v3537
        %v4142 = vpop.f32.mrf.mxu0
        %v4143 = vadd.f32 %v4054, %v4142
        %v4144 = vpop.f32.mrf.mxu0
        %v4145 = vadd.f32 %v4056, %v4144
        %4146 = vmatmul.bf16.gmra.mxu0 %v3541
        %v4147 = vpop.f32.mrf.mxu0
        %v4148 = vadd.f32 %v4059, %v4147
        %v4149 = vpop.f32.mrf.mxu0
        %v4150 = vadd.f32 %v4061, %v4149
        %4151 = vmatmul.bf16.gmra.mxu0 %v3545
        %v4152 = vpop.f32.mrf.mxu0
        %v4153 = vadd.f32 %v4064, %v4152
        %v4154 = vpop.f32.mrf.mxu0
        %v4155 = vadd.f32 %v4066, %v4154
        %4156 = vmatmul.bf16.gmra.mxu0 %v3549
        %v4157 = vpop.f32.mrf.mxu0
        %v4158 = vadd.f32 %v4069, %v4157
        %v4159 = vpop.f32.mrf.mxu0
        %v4160 = vadd.f32 %v4071, %v4159
        %4161 = vmatmul.bf16.gmra.mxu0 %v3553
        %v4162 = vpop.f32.mrf.mxu0
        %v4163 = vadd.f32 %v4074, %v4162
        %v4164 = vpop.f32.mrf.mxu0
        %v4165 = vadd.f32 %v4076, %v4164
        %4166 = vmatmul.bf16.gmra.mxu0 %v3557
        %v4167 = vpop.f32.mrf.mxu0
        %v4168 = vadd.f32 %v4079, %v4167
        %v4169 = vpop.f32.mrf.mxu0
        %v4170 = vadd.f32 %v4081, %v4169
        %4171 = vdwg.mxu0
        %v4172 = vmax.f32 %v4093, -30.0
        %v4173 = vmax.f32 %v4095, -30.0
        %v4174 = vmax.f32 %v4098, -30.0
        %v4175 = vmax.f32 %v4100, -30.0
        %v4176 = vmax.f32 %v4103, -30.0
        %v4177 = vmax.f32 %v4105, -30.0
        %v4178 = vmax.f32 %v4108, -30.0
        %v4179 = vmax.f32 %v4110, -30.0
        %v4180 = vmax.f32 %v4113, -30.0
        %v4181 = vmax.f32 %v4115, -30.0
        %v4182 = vmax.f32 %v4118, -30.0
        %v4183 = vmax.f32 %v4120, -30.0
        %v4184 = vmax.f32 %v4123, -30.0
        %v4185 = vmax.f32 %v4125, -30.0
        %v4186 = vmax.f32 %v4128, -30.0
        %v4187 = vmax.f32 %v4130, -30.0
        %v4188 = vmax.f32 %v4133, -30.0
        %v4189 = vmax.f32 %v4135, -30.0
        %v4190 = vmax.f32 %v4138, -30.0
        %v4191 = vmax.f32 %v4140, -30.0
        %v4192 = vmax.f32 %v4143, -30.0
        %v4193 = vmax.f32 %v4145, -30.0
        %v4194 = vmax.f32 %v4148, -30.0
        %v4195 = vmax.f32 %v4150, -30.0
        %v4196 = vmax.f32 %v4153, -30.0
        %v4197 = vmax.f32 %v4155, -30.0
        %v4198 = vmax.f32 %v4158, -30.0
        %v4199 = vmax.f32 %v4160, -30.0
        %v4200 = vmax.f32 %v4163, -30.0
        %v4201 = vmax.f32 %v4165, -30.0
        %v4202 = vmax.f32 %v4168, -30.0
        %v4203 = vmax.f32 %v4170, -30.0
        %v4204 = vmin.f32 %v4172, 30.0
        %v4205 = vmin.f32 %v4173, 30.0
        %v4206 = vmin.f32 %v4174, 30.0
        %v4207 = vmin.f32 %v4175, 30.0
        %v4208 = vmin.f32 %v4176, 30.0
        %v4209 = vmin.f32 %v4177, 30.0
        %v4210 = vmin.f32 %v4178, 30.0
        %v4211 = vmin.f32 %v4179, 30.0
        %v4212 = vmin.f32 %v4180, 30.0
        %v4213 = vmin.f32 %v4181, 30.0
        %v4214 = vmin.f32 %v4182, 30.0
        %v4215 = vmin.f32 %v4183, 30.0
        %v4216 = vmin.f32 %v4184, 30.0
        %v4217 = vmin.f32 %v4185, 30.0
        %v4218 = vmin.f32 %v4186, 30.0
        %v4219 = vmin.f32 %v4187, 30.0
        %v4220 = vmin.f32 %v4188, 30.0
        %v4221 = vmin.f32 %v4189, 30.0
        %v4222 = vmin.f32 %v4190, 30.0
        %v4223 = vmin.f32 %v4191, 30.0
        %v4224 = vmin.f32 %v4192, 30.0
        %v4225 = vmin.f32 %v4193, 30.0
        %v4226 = vmin.f32 %v4194, 30.0
        %v4227 = vmin.f32 %v4195, 30.0
        %v4228 = vmin.f32 %v4196, 30.0
        %v4229 = vmin.f32 %v4197, 30.0
        %v4230 = vmin.f32 %v4198, 30.0
        %v4231 = vmin.f32 %v4199, 30.0
        %v4232 = vmin.f32 %v4200, 30.0
        %v4233 = vmin.f32 %v4201, 30.0
        %v4234 = vmin.f32 %v4202, 30.0
        %v4235 = vmin.f32 %v4203, 30.0
        %v4236 = vsub.f32 0.0, %v4204
        %v4237 = vsub.f32 0.0, %v4205
        %v4238 = vsub.f32 0.0, %v4206
        %v4239 = vsub.f32 0.0, %v4207
        %v4240 = vsub.f32 0.0, %v4208
        %v4241 = vsub.f32 0.0, %v4209
        %v4242 = vsub.f32 0.0, %v4210
        %v4243 = vsub.f32 0.0, %v4211
        %v4244 = vsub.f32 0.0, %v4212
        %v4245 = vsub.f32 0.0, %v4213
        %v4246 = vsub.f32 0.0, %v4214
        %v4247 = vsub.f32 0.0, %v4215
        %v4248 = vsub.f32 0.0, %v4216
        %v4249 = vsub.f32 0.0, %v4217
        %v4250 = vsub.f32 0.0, %v4218
        %v4251 = vsub.f32 0.0, %v4219
        %v4252 = vsub.f32 0.0, %v4220
        %v4253 = vsub.f32 0.0, %v4221
        %v4254 = vsub.f32 0.0, %v4222
        %v4255 = vsub.f32 0.0, %v4223
        %v4256 = vsub.f32 0.0, %v4224
        %v4257 = vsub.f32 0.0, %v4225
        %v4258 = vsub.f32 0.0, %v4226
        %v4259 = vsub.f32 0.0, %v4227
        %v4260 = vsub.f32 0.0, %v4228
        %v4261 = vsub.f32 0.0, %v4229
        %v4262 = vsub.f32 0.0, %v4230
        %v4263 = vsub.f32 0.0, %v4231
        %v4264 = vsub.f32 0.0, %v4232
        %v4265 = vsub.f32 0.0, %v4233
        %v4266 = vsub.f32 0.0, %v4234
        %v4267 = vsub.f32 0.0, %v4235
        %v4268 = vmul.f32 %v4236, 1.442695
        %v4269 = vpow.pop %v4268
        %v4270 = vmul.f32 %v4237, 1.442695
        %v4271 = vpow.pop %v4270
        %v4272 = vmul.f32 %v4238, 1.442695
        %v4273 = vpow.pop %v4272
        %v4274 = vmul.f32 %v4239, 1.442695
        %v4275 = vpow.pop %v4274
        %v4276 = vmul.f32 %v4240, 1.442695
        %v4277 = vpow.pop %v4276
        %v4278 = vmul.f32 %v4241, 1.442695
        %v4279 = vpow.pop %v4278
        %v4280 = vmul.f32 %v4242, 1.442695
        %v4281 = vpow.pop %v4280
        %v4282 = vmul.f32 %v4243, 1.442695
        %v4283 = vpow.pop %v4282
        %v4284 = vmul.f32 %v4244, 1.442695
        %v4285 = vpow.pop %v4284
        %v4286 = vmul.f32 %v4245, 1.442695
        %v4287 = vpow.pop %v4286
        %v4288 = vmul.f32 %v4246, 1.442695
        %v4289 = vpow.pop %v4288
        %v4290 = vmul.f32 %v4247, 1.442695
        %v4291 = vpow.pop %v4290
        %v4292 = vmul.f32 %v4248, 1.442695
        %v4293 = vpow.pop %v4292
        %v4294 = vmul.f32 %v4249, 1.442695
        %v4295 = vpow.pop %v4294
        %v4296 = vmul.f32 %v4250, 1.442695
        %v4297 = vpow.pop %v4296
        %v4298 = vmul.f32 %v4251, 1.442695
        %v4299 = vpow.pop %v4298
        %v4300 = vmul.f32 %v4252, 1.442695
        %v4301 = vpow.pop %v4300
        %v4302 = vmul.f32 %v4253, 1.442695
        %v4303 = vpow.pop %v4302
        %v4304 = vmul.f32 %v4254, 1.442695
        %v4305 = vpow.pop %v4304
        %v4306 = vmul.f32 %v4255, 1.442695
        %v4307 = vpow.pop %v4306
        %v4308 = vmul.f32 %v4256, 1.442695
        %v4309 = vpow.pop %v4308
        %v4310 = vmul.f32 %v4257, 1.442695
        %v4311 = vpow.pop %v4310
        %v4312 = vmul.f32 %v4258, 1.442695
        %v4313 = vpow.pop %v4312
        %v4314 = vmul.f32 %v4259, 1.442695
        %v4315 = vpow.pop %v4314
        %v4316 = vmul.f32 %v4260, 1.442695
        %v4317 = vpow.pop %v4316
        %v4318 = vmul.f32 %v4261, 1.442695
        %v4319 = vpow.pop %v4318
        %v4320 = vmul.f32 %v4262, 1.442695
        %v4321 = vpow.pop %v4320
        %v4322 = vmul.f32 %v4263, 1.442695
        %v4323 = vpow.pop %v4322
        %v4324 = vmul.f32 %v4264, 1.442695
        %v4325 = vpow.pop %v4324
        %v4326 = vmul.f32 %v4265, 1.442695
        %v4327 = vpow.pop %v4326
        %v4328 = vmul.f32 %v4266, 1.442695
        %v4329 = vpow.pop %v4328
        %v4330 = vmul.f32 %v4267, 1.442695
        %v4331 = vpow.pop %v4330
        %v4332 = vadd.f32 %v4269, 1.0
        %v4333 = vadd.f32 %v4271, 1.0
        %v4334 = vadd.f32 %v4273, 1.0
        %v4335 = vadd.f32 %v4275, 1.0
        %v4336 = vadd.f32 %v4277, 1.0
        %v4337 = vadd.f32 %v4279, 1.0
        %v4338 = vadd.f32 %v4281, 1.0
        %v4339 = vadd.f32 %v4283, 1.0
        %v4340 = vadd.f32 %v4285, 1.0
        %v4341 = vadd.f32 %v4287, 1.0
        %v4342 = vadd.f32 %v4289, 1.0
        %v4343 = vadd.f32 %v4291, 1.0
        %v4344 = vadd.f32 %v4293, 1.0
        %v4345 = vadd.f32 %v4295, 1.0
        %v4346 = vadd.f32 %v4297, 1.0
        %v4347 = vadd.f32 %v4299, 1.0
        %v4348 = vadd.f32 %v4301, 1.0
        %v4349 = vadd.f32 %v4303, 1.0
        %v4350 = vadd.f32 %v4305, 1.0
        %v4351 = vadd.f32 %v4307, 1.0
        %v4352 = vadd.f32 %v4309, 1.0
        %v4353 = vadd.f32 %v4311, 1.0
        %v4354 = vadd.f32 %v4313, 1.0
        %v4355 = vadd.f32 %v4315, 1.0
        %v4356 = vadd.f32 %v4317, 1.0
        %v4357 = vadd.f32 %v4319, 1.0
        %v4358 = vadd.f32 %v4321, 1.0
        %v4359 = vadd.f32 %v4323, 1.0
        %v4360 = vadd.f32 %v4325, 1.0
        %v4361 = vadd.f32 %v4327, 1.0
        %v4362 = vadd.f32 %v4329, 1.0
        %v4363 = vadd.f32 %v4331, 1.0
        %v4364 = vrcp.pop %v4332
        %v4365 = vrcp.pop %v4333
        %v4366 = vrcp.pop %v4334
        %v4367 = vrcp.pop %v4335
        %v4368 = vrcp.pop %v4336
        %v4369 = vrcp.pop %v4337
        %v4370 = vrcp.pop %v4338
        %v4371 = vrcp.pop %v4339
        %v4372 = vrcp.pop %v4340
        %v4373 = vrcp.pop %v4341
        %v4374 = vrcp.pop %v4342
        %v4375 = vrcp.pop %v4343
        %v4376 = vrcp.pop %v4344
        %v4377 = vrcp.pop %v4345
        %v4378 = vrcp.pop %v4346
        %v4379 = vrcp.pop %v4347
        %v4380 = vrcp.pop %v4348
        %v4381 = vrcp.pop %v4349
        %v4382 = vrcp.pop %v4350
        %v4383 = vrcp.pop %v4351
        %v4384 = vrcp.pop %v4352
        %v4385 = vrcp.pop %v4353
        %v4386 = vrcp.pop %v4354
        %v4387 = vrcp.pop %v4355
        %v4388 = vrcp.pop %v4356
        %v4389 = vrcp.pop %v4357
        %v4390 = vrcp.pop %v4358
        %v4391 = vrcp.pop %v4359
        %v4392 = vrcp.pop %v4360
        %v4393 = vrcp.pop %v4361
        %v4394 = vrcp.pop %v4362
        %v4395 = vrcp.pop %v4363
        %v4396 = vmul.f32 %v4332, %v4364
        %v4397 = vmul.f32 %v4333, %v4365
        %v4398 = vmul.f32 %v4334, %v4366
        %v4399 = vmul.f32 %v4335, %v4367
        %v4400 = vmul.f32 %v4336, %v4368
        %v4401 = vmul.f32 %v4337, %v4369
        %v4402 = vmul.f32 %v4338, %v4370
        %v4403 = vmul.f32 %v4339, %v4371
        %v4404 = vmul.f32 %v4340, %v4372
        %v4405 = vmul.f32 %v4341, %v4373
        %v4406 = vmul.f32 %v4342, %v4374
        %v4407 = vmul.f32 %v4343, %v4375
        %v4408 = vmul.f32 %v4344, %v4376
        %v4409 = vmul.f32 %v4345, %v4377
        %v4410 = vmul.f32 %v4346, %v4378
        %v4411 = vmul.f32 %v4347, %v4379
        %v4412 = vmul.f32 %v4348, %v4380
        %v4413 = vmul.f32 %v4349, %v4381
        %v4414 = vmul.f32 %v4350, %v4382
        %v4415 = vmul.f32 %v4351, %v4383
        %v4416 = vmul.f32 %v4352, %v4384
        %v4417 = vmul.f32 %v4353, %v4385
        %v4418 = vmul.f32 %v4354, %v4386
        %v4419 = vmul.f32 %v4355, %v4387
        %v4420 = vmul.f32 %v4356, %v4388
        %v4421 = vmul.f32 %v4357, %v4389
        %v4422 = vmul.f32 %v4358, %v4390
        %v4423 = vmul.f32 %v4359, %v4391
        %v4424 = vmul.f32 %v4360, %v4392
        %v4425 = vmul.f32 %v4361, %v4393
        %v4426 = vmul.f32 %v4362, %v4394
        %v4427 = vmul.f32 %v4363, %v4395
        %v4428 = vsub.f32 2.0, %v4396
        %v4429 = vsub.f32 2.0, %v4397
        %v4430 = vsub.f32 2.0, %v4398
        %v4431 = vsub.f32 2.0, %v4399
        %v4432 = vsub.f32 2.0, %v4400
        %v4433 = vsub.f32 2.0, %v4401
        %v4434 = vsub.f32 2.0, %v4402
        %v4435 = vsub.f32 2.0, %v4403
        %v4436 = vsub.f32 2.0, %v4404
        %v4437 = vsub.f32 2.0, %v4405
        %v4438 = vsub.f32 2.0, %v4406
        %v4439 = vsub.f32 2.0, %v4407
        %v4440 = vsub.f32 2.0, %v4408
        %v4441 = vsub.f32 2.0, %v4409
        %v4442 = vsub.f32 2.0, %v4410
        %v4443 = vsub.f32 2.0, %v4411
        %v4444 = vsub.f32 2.0, %v4412
        %v4445 = vsub.f32 2.0, %v4413
        %v4446 = vsub.f32 2.0, %v4414
        %v4447 = vsub.f32 2.0, %v4415
        %v4448 = vsub.f32 2.0, %v4416
        %v4449 = vsub.f32 2.0, %v4417
        %v4450 = vsub.f32 2.0, %v4418
        %v4451 = vsub.f32 2.0, %v4419
        %v4452 = vsub.f32 2.0, %v4420
        %v4453 = vsub.f32 2.0, %v4421
        %v4454 = vsub.f32 2.0, %v4422
        %v4455 = vsub.f32 2.0, %v4423
        %v4456 = vsub.f32 2.0, %v4424
        %v4457 = vsub.f32 2.0, %v4425
        %v4458 = vsub.f32 2.0, %v4426
        %v4459 = vsub.f32 2.0, %v4427
        %v4460 = vmul.f32 %v4364, %v4428
        %v4461 = vmul.f32 %v4365, %v4429
        %v4462 = vmul.f32 %v4366, %v4430
        %v4463 = vmul.f32 %v4367, %v4431
        %v4464 = vmul.f32 %v4368, %v4432
        %v4465 = vmul.f32 %v4369, %v4433
        %v4466 = vmul.f32 %v4370, %v4434
        %v4467 = vmul.f32 %v4371, %v4435
        %v4468 = vmul.f32 %v4372, %v4436
        %v4469 = vmul.f32 %v4373, %v4437
        %v4470 = vmul.f32 %v4374, %v4438
        %v4471 = vmul.f32 %v4375, %v4439
        %v4472 = vmul.f32 %v4376, %v4440
        %v4473 = vmul.f32 %v4377, %v4441
        %v4474 = vmul.f32 %v4378, %v4442
        %v4475 = vmul.f32 %v4379, %v4443
        %v4476 = vmul.f32 %v4380, %v4444
        %v4477 = vmul.f32 %v4381, %v4445
        %v4478 = vmul.f32 %v4382, %v4446
        %v4479 = vmul.f32 %v4383, %v4447
        %v4480 = vmul.f32 %v4384, %v4448
        %v4481 = vmul.f32 %v4385, %v4449
        %v4482 = vmul.f32 %v4386, %v4450
        %v4483 = vmul.f32 %v4387, %v4451
        %v4484 = vmul.f32 %v4388, %v4452
        %v4485 = vmul.f32 %v4389, %v4453
        %v4486 = vmul.f32 %v4390, %v4454
        %v4487 = vmul.f32 %v4391, %v4455
        %v4488 = vmul.f32 %v4392, %v4456
        %v4489 = vmul.f32 %v4393, %v4457
        %v4490 = vmul.f32 %v4394, %v4458
        %v4491 = vmul.f32 %v4395, %v4459
        %4492 = vst [vmem:[%s363] sm:$0xff] %v4460
        %4493 = vst [vmem:[%s363 + $0x8] sm:$0xff] %v4461
        %4494 = vst [vmem:[%s363 + $0x10] sm:$0xff] %v4462
        %4495 = vst [vmem:[%s363 + $0x18] sm:$0xff] %v4463
        %4496 = vst [vmem:[%s363 + $0x20] sm:$0xff] %v4464
        %4497 = vst [vmem:[%s363 + $0x28] sm:$0xff] %v4465
        %4498 = vst [vmem:[%s363 + $0x30] sm:$0xff] %v4466
        %4499 = vst [vmem:[%s363 + $0x38] sm:$0xff] %v4467
        %4500 = vst [vmem:[%s363 + $0x40] sm:$0xff] %v4468
        %4501 = vst [vmem:[%s363 + $0x48] sm:$0xff] %v4469
        %4502 = vst [vmem:[%s363 + $0x50] sm:$0xff] %v4470
        %4503 = vst [vmem:[%s363 + $0x58] sm:$0xff] %v4471
        %4504 = vst [vmem:[%s363 + $0x60] sm:$0xff] %v4472
        %4505 = vst [vmem:[%s363 + $0x68] sm:$0xff] %v4473
        %4506 = vst [vmem:[%s363 + $0x70] sm:$0xff] %v4474
        %4507 = vst [vmem:[%s363 + $0x78] sm:$0xff] %v4475
        %4508 = vst [vmem:[%s363 + $0x80] sm:$0xff] %v4476
        %4509 = vst [vmem:[%s363 + $0x88] sm:$0xff] %v4477
        %4510 = vst [vmem:[%s363 + $0x90] sm:$0xff] %v4478
        %4511 = vst [vmem:[%s363 + $0x98] sm:$0xff] %v4479
        %4512 = vst [vmem:[%s363 + $0xa0] sm:$0xff] %v4480
        %4513 = vst [vmem:[%s363 + $0xa8] sm:$0xff] %v4481
        %4514 = vst [vmem:[%s363 + $0xb0] sm:$0xff] %v4482
        %4515 = vst [vmem:[%s363 + $0xb8] sm:$0xff] %v4483
        %4516 = vst [vmem:[%s363 + $0xc0] sm:$0xff] %v4484
        %4517 = vst [vmem:[%s363 + $0xc8] sm:$0xff] %v4485
        %4518 = vst [vmem:[%s363 + $0xd0] sm:$0xff] %v4486
        %4519 = vst [vmem:[%s363 + $0xd8] sm:$0xff] %v4487
        %4520 = vst [vmem:[%s363 + $0xe0] sm:$0xff] %v4488
        %4521 = vst [vmem:[%s363 + $0xe8] sm:$0xff] %v4489
        %4522 = vst [vmem:[%s363 + $0xf0] sm:$0xff] %v4490
        %4523 = vst [vmem:[%s363 + $0xf8] sm:$0xff] %v4491
        %s4524 = sand.u32 %s187, 1
        %s4525 = scalar_lea.sflag [#allocation5], %s4524
        %s4526 = sand.u32 %s187, 1
        %s4527 = smul.addr %s4526, 256
        %s4528 = scalar_lea.vmem [#allocation12], %s4527
        // Predicated region
        $region69: #{tpu_custom_call.1} parent=47 // pred_check
          %p4529 = pneg %p197
        $region70: #{tpu_custom_call.1} parent=47 // pred_check_branch
          %4531 = sbr.rel (%p4529) target = $region72
        $region71: #{tpu_custom_call.1} parent=47 // pred_region
          %s4532 = smul.u32 32, %s27
          %4534 = vsyncadd %s4525, 0
          %s4535 = smul.addr %s4532, 8
          %s4536 = scalar_lea.hbm %s7, %s4535
          %s4537 = sshll.u32 %s4528, 4
          %s4538 = int_to_ptr.vmem [resolvable:$true] %s4537
          %s4539 = sshll.u32 %s4536, 4
          %s4540 = int_to_ptr.hbm [resolvable:$true] %s4539
          %4545 = dma.vmem_to_hbm [thread:$0]  %s4538, 4096, %s4540, %s4525, 128, 128, 8
        $region72: #{tpu_custom_call.1} parent=47 // pred_fallthru
          _
      $region48: #{tpu_custom_call.1} parent=5 // pred_fallthru
        _
      %p4546 = scmp.le.s32.totalorder 2, %s22
      // Predicated region
      $region73: #{tpu_custom_call.1} parent=5 // pred_check
        %p4547 = pneg %p4546
      $region74: #{tpu_custom_call.1} parent=5 // pred_check_branch
        %4549 = sbr.rel (%p4547) target = $region76
      $region75: #{tpu_custom_call.1} parent=5 // pred_region
        %s4550 = ssub.s32 %s22, 2
        // Predicated region
        $region77: #{tpu_custom_call.1} parent=75 // pred_check
          %p4551 = pneg %p203
        $region78: #{tpu_custom_call.1} parent=75 // pred_check_branch
          %4553 = sbr.rel (%p4551) target = $region80
        $region79: #{tpu_custom_call.1} parent=75 // pred_region
          %s4554 = sand.u32 %s188, 1
          %s4555 = scalar_lea.sflag [#allocation5], %s4554
          %s4556 = sand.u32 %s188, 1
          %s4557 = smul.addr %s4556, 256
          %s4558 = scalar_lea.vmem [#allocation12], %s4557
          %4560 = dma.done %s4555, 4096
        $region80: #{tpu_custom_call.1} parent=75 // pred_fallthru
          _
      $region76: #{tpu_custom_call.1} parent=5 // pred_fallthru
        _
    $region6: #{tpu_custom_call.1} parent=1 // loop_footer
      %s26 = sadd.s32 1, %s22
    $region7: #{tpu_custom_call.1} parent=1 // loop_footer_branch
      %21 = sbr.rel target = $region3
    $region8: #{tpu_custom_call.1} parent=1 // loop_exit
      _
    %4561 = vsyncpa [#allocation4], 1
    %s4562 = scalar_lea.sflag [#allocation4], 1
    %4563 = vsyncpa %s4562, 1
    %4564 = vsyncpa [#allocation7], 1
    %4565 = vsyncpa [#allocation10], 1
    %4566 = vsyncpa [#allocation5], 1
    %s4567 = scalar_lea.sflag [#allocation5], 1
    %4568 = vsyncpa %s4567, 1

</llo_original>
